<compile_context>
chip_gen: v7x
topology: tpu7x:2x2x1
jax: 0.10.0
libtpu: 0.0.40
codegen_flags: <defaults>
</compile_context>

<pallas_src>
import functools
import math

import jax
import jax.numpy as jnp
from jax import lax
from jax.experimental import pallas as pl
from jax.experimental.pallas import tpu as pltpu


def _round_up(x, m):
    return ((x + m - 1) // m) * m


# -----------------------------------------------------------------------------
# Kernel body: one grid step == one decoder layer over the whole batch.
# -----------------------------------------------------------------------------
def _gnova_decoder_kernel(
    # resident data (constant index maps)
    x0_ref, mem_ref, qcos_ref, qsa_ref, qsb_ref, kcos_ref, ksa_ref, ksb_ref,
    # per-layer weights (pipelined over the layer grid axis)
    w_sqkv_ref, b_sqkv_ref, w_so_ref, b_so_ref, ln1_g_ref, ln1_b_ref,
    w_cq_ref, b_cq_ref, w_ckv_ref, b_ckv_ref, w_co_ref, b_co_ref,
    ln2_g_ref, ln2_b_ref,
    w_f1_ref, b_f1_ref, w_f2_ref, b_f2_ref, ln3_g_ref, ln3_b_ref,
    # output + residual-stream scratch
    o_ref, x_state_ref,
    *, batch, tgt_len, mem_len, num_heads, head_size, head_pad,
    tgt_hidden, n_pos_heads, alpha, eps):
    f32 = jnp.float32
    bf16 = jnp.bfloat16
    H, hd, hdp = num_heads, head_size, head_pad
    Dp = H * hdp
    Hp = o_ref.shape[-1]
    scale = 1.0 / math.sqrt(hd)
    layer = pl.program_id(0)

    @pl.when(layer == 0)
    def _init():
        x_state_ref[...] = x0_ref[...]

    x = x_state_ref[...]                  # (B*L, Hp) f32 residual stream
    mem = mem_ref[...]                    # (B*M, Hmp) bf16 encoder memory

    # ---- per-step constants (hoisted above the attention / head structure) ----
    lane = lax.broadcasted_iota(jnp.int32, (1, Hp), 1)
    vmask = (lane < tgt_hidden).astype(f32)                 # LayerNorm valid lanes
    row = lax.broadcasted_iota(jnp.int32, (tgt_len, tgt_len), 0)
    col = lax.broadcasted_iota(jnp.int32, (tgt_len, tgt_len), 1)
    causal = col <= row                                     # (L, L)

    def tile_heads(t):                                      # (R, hdp) -> (R, Dp)
        return jnp.concatenate([t] * H, axis=-1)

    qcos = tile_heads(qcos_ref[...])
    qsa = tile_heads(qsa_ref[...])
    qsb = tile_heads(qsb_ref[...])
    kcos = tile_heads(kcos_ref[...])
    # half the heads attend with +m/z rotated keys, the rest with -m/z
    # (cos is even, sin is odd -> only the sin tables flip sign per head group).
    ksa_h = ksa_ref[...]
    ksb_h = ksb_ref[...]
    ksa = jnp.concatenate([ksa_h] * n_pos_heads + [-ksa_h] * (H - n_pos_heads), axis=-1)
    ksb = jnp.concatenate([ksb_h] * n_pos_heads + [-ksb_h] * (H - n_pos_heads), axis=-1)

    def rope(t, cos, sin_a, sin_b):
        # half-split rotary with XLU rolls + sign/lane-mask folded sin tables:
        #   out[j] = t[j]*cos[j] + t[j+hd/2]*sin_a[j] + t[j-hd/2]*sin_b[j]
        fwd = pltpu.roll(t, Dp - hd // 2, axis=1)           # fetches t[j + hd/2]
        bwd = pltpu.roll(t, hd // 2, axis=1)                # fetches t[j - hd/2]
        return t * cos + fwd * sin_a + bwd * sin_b

    def deepnorm(res, sub, g, b):
        h = alpha * res + sub                               # padded lanes stay 0
        mu = jnp.sum(h, axis=-1, keepdims=True) * (1.0 / tgt_hidden)
        diff = (h - mu) * vmask                             # masked LN statistics
        var = jnp.sum(diff * diff, axis=-1, keepdims=True) * (1.0 / tgt_hidden)
        return diff * lax.rsqrt(var + eps) * g + b          # g,b zero on pad lanes

    def split_heads(t, rows):             # (B*rows, Dp) f32 -> (H*B, rows, hdp) bf16
        tb = t.astype(bf16)
        pieces = [tb[:, h * hdp:(h + 1) * hdp].reshape(batch, rows, hdp)
                  for h in range(H)]
        return jnp.concatenate(pieces, axis=0)

    def merge_heads(t, rows):             # (H*B, rows, hdp) f32 -> (B*rows, Dp) f32
        pieces = [t[h * batch:(h + 1) * batch].reshape(batch * rows, hdp)
                  for h in range(H)]
        return jnp.concatenate(pieces, axis=-1)

    def attention(q, k, v, q_rows, kv_rows, mask):
        qg = split_heads(q, q_rows)
        kg = split_heads(k, kv_rows)
        vg = split_heads(v, kv_rows)
        s = jnp.einsum('gld,gmd->glm', qg, kg,
                       preferred_element_type=f32) * scale          # (H*B, L, M)
        if mask is not None:
            s = jnp.where(mask[None], s, jnp.float32(-1e30))
        s = s - jnp.max(s, axis=-1, keepdims=True)
        p = jnp.exp(s)
        p = p * pl.reciprocal(jnp.sum(p, axis=-1, keepdims=True), approx=True)
        og = jnp.einsum('glm,gmd->gld', p.astype(bf16), vg,
                        preferred_element_type=f32)                 # (H*B, L, hdp)
        return merge_heads(og, q_rows)

    # ---------------- masked (causal) self attention, step-mass rotary --------
    qkv = jnp.dot(x.astype(bf16), w_sqkv_ref[0],
                  preferred_element_type=f32) + b_sqkv_ref[0]
    q = rope(qkv[:, :Dp], qcos, qsa, qsb)
    k = rope(qkv[:, Dp:2 * Dp], qcos, qsa, qsb)
    v = qkv[:, 2 * Dp:]
    attn = attention(q, k, v, tgt_len, tgt_len, causal)
    sub = jnp.dot(attn.astype(bf16), w_so_ref[0],
                  preferred_element_type=f32) + b_so_ref[0]
    x = deepnorm(x, sub, ln1_g_ref[0], ln1_b_ref[0])

    # ---------------- cross attention to encoder memory -----------------------
    qc = jnp.dot(x.astype(bf16), w_cq_ref[0],
                 preferred_element_type=f32) + b_cq_ref[0]
    kv = jnp.dot(mem, w_ckv_ref[0], preferred_element_type=f32) + b_ckv_ref[0]
    qc = rope(qc, qcos, qsa, qsb)
    kc = rope(kv[:, :Dp], kcos, ksa, ksb)
    vc = kv[:, Dp:]
    attn = attention(qc, kc, vc, tgt_len, mem_len, None)
    sub = jnp.dot(attn.astype(bf16), w_co_ref[0],
                  preferred_element_type=f32) + b_co_ref[0]
    x = deepnorm(x, sub, ln2_g_ref[0], ln2_b_ref[0])

    # ---------------- ReLU FFN -------------------------------------------------
    h1 = jnp.dot(x.astype(bf16), w_f1_ref[0],
                 preferred_element_type=f32) + b_f1_ref[0]
    h1 = jnp.maximum(h1, 0.0)
    h2 = jnp.dot(h1.astype(bf16), w_f2_ref[0],
                 preferred_element_type=f32) + b_f2_ref[0]
    x = deepnorm(x, h2, ln3_g_ref[0], ln3_b_ref[0])

    x_state_ref[...] = x
    o_ref[...] = x                        # lane-dense (B*L, Hp) writeback


# -----------------------------------------------------------------------------
# Glue: rotary tables, parameter init (padded + bf16), pallas_call wrapper.
# -----------------------------------------------------------------------------
def _rope_tables(x, head_size, head_pad):
    """Half-split rotary tables for one head, padded to head_pad lanes.
    rotate(t)[j] = t[j]*cos[j] + t[j+hd/2]*sin_a[j] + t[j-hd/2]*sin_b[j]."""
    half = head_size // 2
    freqs = jnp.exp(-math.log(10000.0) * jnp.arange(half, dtype=jnp.float32) / half)
    ang = x[..., None].astype(jnp.float32) * freqs               # (..., half)
    c, s = jnp.cos(ang), jnp.sin(ang)
    zh = jnp.zeros_like(s)
    zp = jnp.zeros(ang.shape[:-1] + (head_pad - head_size,), jnp.float32)
    cos = jnp.concatenate([c, c, zp], axis=-1)
    sin_a = jnp.concatenate([-s, zh, zp], axis=-1)
    sin_b = jnp.concatenate([zh, s, zp], axis=-1)
    return cos, sin_a, sin_b


def init_params(key, *, num_layers, tgt_hidden, mem_hidden, num_heads, head_size,
                ffn_hidden, peptide_max_len, beta, lane=128):
    assert head_size % 2 == 0, "rotary embedding requires an even head size"
    Ht, Hm, F, H, hd = tgt_hidden, mem_hidden, ffn_hidden, num_heads, head_size
    step = lane // math.gcd(H, lane)
    hdp = _round_up(hd, step)                      # per-head pad so H*hdp % 128 == 0
    Hp, Hmp, Fp = _round_up(Ht, lane), _round_up(Hm, lane), _round_up(F, lane)
    Dp = H * hdp
    bf = jnp.bfloat16

    keys = jax.random.split(key, 1 + num_layers)

    def dense(k, din, dout, scale=1.0):
        w = scale / math.sqrt(din) * jax.random.normal(k, (din, dout), jnp.float32)
        return w, jnp.zeros((1, dout), jnp.float32)

    def pad_cols_heads(w):                         # (din, H*hd) -> (din, Dp)
        din = w.shape[0]
        w = w.reshape(din, H, hd)
        return jnp.pad(w, ((0, 0), (0, 0), (0, hdp - hd))).reshape(din, Dp)

    def pad_rows_heads(w):                         # (H*hd, dout) -> (Dp, dout)
        dout = w.shape[1]
        w = w.reshape(H, hd, dout)
        return jnp.pad(w, ((0, 0), (0, hdp - hd), (0, 0))).reshape(Dp, dout)

    def pad_rows(w, rp):
        return jnp.pad(w, ((0, rp - w.shape[0]), (0, 0)))

    def pad_cols(w, cp):
        return jnp.pad(w, ((0, 0), (0, cp - w.shape[1])))

    layers = []
    for li in range(num_layers):
        lk = jax.random.split(keys[1 + li], 10)
        d_rel = H * hd
        w_sq, b_sq = dense(lk[0], Ht, d_rel)
        w_sk, b_sk = dense(lk[1], Ht, d_rel)
        w_sv, b_sv = dense(lk[2], Ht, d_rel, scale=beta)
        w_so, b_so = dense(lk[3], d_rel, Ht, scale=beta)
        w_cq, b_cq = dense(lk[4], Ht, d_rel)
        w_ck, b_ck = dense(lk[5], Hm, d_rel)
        w_cv, b_cv = dense(lk[6], Hm, d_rel, scale=beta)
        w_co, b_co = dense(lk[7], d_rel, Ht, scale=beta)
        w_f1, b_f1 = dense(lk[8], Ht, F, scale=beta)
        w_f2, b_f2 = dense(lk[9], F, Ht, scale=beta)

        ones = jnp.pad(jnp.ones((1, Ht), jnp.float32), ((0, 0), (0, Hp - Ht)))
        zeros = jnp.zeros((1, Hp), jnp.float32)

        layers.append(dict(
            w_sqkv=jnp.concatenate(
                [pad_rows(pad_cols_heads(w), Hp) for w in (w_sq, w_sk, w_sv)],
                axis=1).astype(bf),
            b_sqkv=jnp.concatenate(
                [pad_cols_heads(b) for b in (b_sq, b_sk, b_sv)], axis=1),
            w_so=pad_cols(pad_rows_heads(w_so), Hp).astype(bf),
            b_so=pad_cols(b_so, Hp), ln1_g=ones, ln1_b=zeros,
            w_cq=pad_rows(pad_cols_heads(w_cq), Hp).astype(bf),
            b_cq=pad_cols_heads(b_cq),
            w_ckv=jnp.concatenate(
                [pad_rows(pad_cols_heads(w), Hmp) for w in (w_ck, w_cv)],
                axis=1).astype(bf),
            b_ckv=jnp.concatenate([pad_cols_heads(b) for b in (b_ck, b_cv)], axis=1),
            w_co=pad_cols(pad_rows_heads(w_co), Hp).astype(bf),
            b_co=pad_cols(b_co, Hp), ln2_g=ones, ln2_b=zeros,
            w_f1=pad_cols(pad_rows(w_f1, Hp), Fp).astype(bf),
            b_f1=pad_cols(b_f1, Fp),
            w_f2=pad_cols(pad_rows(w_f2, Fp), Hp).astype(bf),
            b_f2=pad_cols(b_f2, Hp), ln3_g=ones, ln3_b=zeros,
        ))
    params = {k: jnp.stack([ly[k] for ly in layers], axis=0) for k in layers[0]}
    params["pos_embedding"] = 0.02 * jax.random.normal(
        keys[0], (peptide_max_len, tgt_hidden), jnp.float32)
    return params


_WEIGHT_ORDER = ["w_sqkv", "b_sqkv", "w_so", "b_so", "ln1_g", "ln1_b",
                 "w_cq", "b_cq", "w_ckv", "b_ckv", "w_co", "b_co", "ln2_g", "ln2_b",
                 "w_f1", "b_f1", "w_f2", "b_f2", "ln3_g", "ln3_b"]


def gnova_decoder_forward(params, tgt, step_mass, pos, encoder_output, peak_mzs,
                          *, num_heads, head_size, alpha, eps=1e-5):
    B, L, Ht = tgt.shape
    M, Hm = encoder_output.shape[1], encoder_output.shape[2]
    num_layers = params["w_sqkv"].shape[0]
    Hp = params["w_sqkv"].shape[1]
    Hmp = params["w_ckv"].shape[1]
    Dp = params["w_cq"].shape[-1]
    hdp = Dp // num_heads
    n_pos = max(1, num_heads // 2)              # heads with +m/z rotated keys
    assert Dp % 128 == 0 and Hp % 128 == 0

    # learned absolute positional embedding (gather kept in cheap XLA glue)
    x0 = tgt + params["pos_embedding"][pos]                              # (B, L, Ht)
    x0p = jnp.pad(x0, ((0, 0), (0, 0), (0, Hp - Ht))) \
             .reshape(B * L, Hp).astype(jnp.float32)
    memp = jnp.pad(encoder_output, ((0, 0), (0, 0), (0, Hmp - Hm))) \
              .reshape(B * M, Hmp).astype(jnp.bfloat16)

    qcos, qsa, qsb = _rope_tables(step_mass, head_size, hdp)             # (B, L, hdp)
    kcos, ksa, ksb = _rope_tables(peak_mzs, head_size, hdp)              # (B, M, hdp)
    qcos, qsa, qsb = [t.reshape(B * L, hdp) for t in (qcos, qsa, qsb)]
    kcos, ksa, ksb = [t.reshape(B * M, hdp) for t in (kcos, ksa, ksb)]

    data = [x0p, memp, qcos, qsa, qsb, kcos, ksa, ksb]
    weights = [params[n] for n in _WEIGHT_ORDER]

    def resident_spec(a):                       # whole array resident in VMEM
        nd = a.ndim
        return pl.BlockSpec(a.shape, lambda l: (0,) * nd)

    def layer_spec(a):                          # one layer slab per grid step
        nd = a.ndim
        return pl.BlockSpec((1,) + a.shape[1:], lambda l: (l,) + (0,) * (nd - 1))

    # explicit scoped-VMEM budget: double-buffered blocks + output + scratch
    def blk_bytes(a, per_layer):
        shape = a.shape[1:] if per_layer else a.shape
        return math.prod(shape) * a.dtype.itemsize
    est = (sum(blk_bytes(a, False) for a in data)
           + sum(blk_bytes(w, True) for w in weights)
           + 2 * B * L * Hp * 4)
    vmem_limit = int(max(2 * est + (4 << 20), 16 << 20))

    kernel = functools.partial(
        _gnova_decoder_kernel, batch=B, tgt_len=L, mem_len=M,
        num_heads=num_heads, head_size=head_size, head_pad=hdp,
        tgt_hidden=Ht, n_pos_heads=n_pos, alpha=alpha, eps=eps)

    out = pl.pallas_call(
        kernel,
        out_shape=jax.ShapeDtypeStruct((B * L, Hp), jnp.float32),
        grid=(num_layers,),
        in_specs=[resident_spec(a) for a in data] + [layer_spec(w) for w in weights],
        out_specs=pl.BlockSpec((B * L, Hp), lambda l: (0, 0)),
        scratch_shapes=[pltpu.VMEM((B * L, Hp), jnp.float32)],
        compiler_params=pltpu.CompilerParams(
            dimension_semantics=("arbitrary",),
            vmem_limit_bytes=vmem_limit),
    )(*data, *weights)

    return out.reshape(B, L, Hp)[:, :, :Ht].astype(tgt.dtype)


# -----------------------------------------------------------------------------
# Main
# -----------------------------------------------------------------------------
if __name__ == "__main__":
    NUM_LAYERS = 2
    TGT_HIDDEN = 32          # cfg.decoder_gnova.hidden_size
    MEM_HIDDEN = 32          # cfg.encoder_gnova.hidden_size
    NUM_HEADS = 4            # cfg.decoder_gnova.num_heads
    D_RELATION = 32          # cfg.decoder_gnova.d_relation
    HEAD_SIZE = D_RELATION // NUM_HEADS
    FFN_HIDDEN = 4 * TGT_HIDDEN
    PEPTIDE_MAX_LEN = 16     # cfg.data.peptide_max_len
    ALPHA = (2 * NUM_LAYERS) ** 0.25
    BETA = (8 * NUM_LAYERS) ** (-0.25)

    B, L, M = 2, 8, 16

    key = jax.random.PRNGKey(0)
    k_param, k_tgt, k_mass, k_mem, k_mz = jax.random.split(key, 5)

    params = init_params(k_param, num_layers=NUM_LAYERS, tgt_hidden=TGT_HIDDEN,
                         mem_hidden=MEM_HIDDEN, num_heads=NUM_HEADS,
                         head_size=HEAD_SIZE, ffn_hidden=FFN_HIDDEN,
                         peptide_max_len=PEPTIDE_MAX_LEN, beta=BETA)

    tgt = jax.random.normal(k_tgt, (B, L, TGT_HIDDEN), jnp.float32)
    step_mass = jnp.cumsum(jax.random.uniform(k_mass, (B, L), jnp.float32,
                                              minval=57.0, maxval=186.0), axis=1)
    pos = jnp.tile(jnp.arange(L, dtype=jnp.int32), (B, 1))
    encoder_output = jax.random.normal(k_mem, (B, M, MEM_HIDDEN), jnp.float32)
    peak_mzs = jax.random.uniform(k_mz, (B, M), jnp.float32, minval=50.0, maxval=2000.0)

    fwd = jax.jit(functools.partial(gnova_decoder_forward, num_heads=NUM_HEADS,
                                    head_size=HEAD_SIZE, alpha=ALPHA))
    out = jax.block_until_ready(fwd(params, tgt, step_mass, pos, encoder_output, peak_mzs))
    assert out.shape == (B, L, TGT_HIDDEN) and out.dtype == jnp.float32
    assert bool(jnp.all(jnp.isfinite(out)))
    print("KERNEL_OK")
</pallas_src>

<mosaic_0001>
module attributes {stable_mosaic.version = 11 : i64} {
  func.func @_gnova_decoder_kernel(%arg0: i32, %arg1: memref<16x128xf32, #tpu.memory_space<vmem>>, %arg2: memref<32x128xbf16, #tpu.memory_space<vmem>>, %arg3: memref<16x32xf32, #tpu.memory_space<vmem>>, %arg4: memref<16x32xf32, #tpu.memory_space<vmem>>, %arg5: memref<16x32xf32, #tpu.memory_space<vmem>>, %arg6: memref<32x32xf32, #tpu.memory_space<vmem>>, %arg7: memref<32x32xf32, #tpu.memory_space<vmem>>, %arg8: memref<32x32xf32, #tpu.memory_space<vmem>>, %arg9: memref<1x128x384xbf16, #tpu.memory_space<vmem>>, %arg10: memref<1x1x384xf32, #tpu.memory_space<vmem>>, %arg11: memref<1x128x128xbf16, #tpu.memory_space<vmem>>, %arg12: memref<1x1x128xf32, #tpu.memory_space<vmem>>, %arg13: memref<1x1x128xf32, #tpu.memory_space<vmem>>, %arg14: memref<1x1x128xf32, #tpu.memory_space<vmem>>, %arg15: memref<1x128x128xbf16, #tpu.memory_space<vmem>>, %arg16: memref<1x1x128xf32, #tpu.memory_space<vmem>>, %arg17: memref<1x128x256xbf16, #tpu.memory_space<vmem>>, %arg18: memref<1x1x256xf32, #tpu.memory_space<vmem>>, %arg19: memref<1x128x128xbf16, #tpu.memory_space<vmem>>, %arg20: memref<1x1x128xf32, #tpu.memory_space<vmem>>, %arg21: memref<1x1x128xf32, #tpu.memory_space<vmem>>, %arg22: memref<1x1x128xf32, #tpu.memory_space<vmem>>, %arg23: memref<1x128x128xbf16, #tpu.memory_space<vmem>>, %arg24: memref<1x1x128xf32, #tpu.memory_space<vmem>>, %arg25: memref<1x128x128xbf16, #tpu.memory_space<vmem>>, %arg26: memref<1x1x128xf32, #tpu.memory_space<vmem>>, %arg27: memref<1x1x128xf32, #tpu.memory_space<vmem>>, %arg28: memref<1x1x128xf32, #tpu.memory_space<vmem>>, %arg29: memref<16x128xf32, #tpu.memory_space<vmem>>, %arg30: memref<16x128xf32, #tpu.memory_space<vmem>>) attributes {dimension_semantics = [#tpu.dimension_semantics<arbitrary>], iteration_bounds = array<i64: 2>, scalar_prefetch = 0 : i64, scratch_operands = 1 : i64, tpu.core_type = #tpu.core_type<tc>, window_params = [{pipeline_mode = #tpu.pipeline_mode<synchronous>, transform_indices = @transform_0, window_bounds = array<i64: 16, 128>}, {pipeline_mode = #tpu.pipeline_mode<synchronous>, transform_indices = @transform_1, window_bounds = array<i64: 32, 128>}, {pipeline_mode = #tpu.pipeline_mode<synchronous>, transform_indices = @transform_2, window_bounds = array<i64: 16, 32>}, {pipeline_mode = #tpu.pipeline_mode<synchronous>, transform_indices = @transform_3, window_bounds = array<i64: 16, 32>}, {pipeline_mode = #tpu.pipeline_mode<synchronous>, transform_indices = @transform_4, window_bounds = array<i64: 16, 32>}, {pipeline_mode = #tpu.pipeline_mode<synchronous>, transform_indices = @transform_5, window_bounds = array<i64: 32, 32>}, {pipeline_mode = #tpu.pipeline_mode<synchronous>, transform_indices = @transform_6, window_bounds = array<i64: 32, 32>}, {pipeline_mode = #tpu.pipeline_mode<synchronous>, transform_indices = @transform_7, window_bounds = array<i64: 32, 32>}, {transform_indices = @transform_8, window_bounds = array<i64: 1, 128, 384>}, {transform_indices = @transform_9, window_bounds = array<i64: 1, 1, 384>}, {transform_indices = @transform_10, window_bounds = array<i64: 1, 128, 128>}, {transform_indices = @transform_11, window_bounds = array<i64: 1, 1, 128>}, {transform_indices = @transform_12, window_bounds = array<i64: 1, 1, 128>}, {transform_indices = @transform_13, window_bounds = array<i64: 1, 1, 128>}, {transform_indices = @transform_14, window_bounds = array<i64: 1, 128, 128>}, {transform_indices = @transform_15, window_bounds = array<i64: 1, 1, 128>}, {transform_indices = @transform_16, window_bounds = array<i64: 1, 128, 256>}, {transform_indices = @transform_17, window_bounds = array<i64: 1, 1, 256>}, {transform_indices = @transform_18, window_bounds = array<i64: 1, 128, 128>}, {transform_indices = @transform_19, window_bounds = array<i64: 1, 1, 128>}, {transform_indices = @transform_20, window_bounds = array<i64: 1, 1, 128>}, {transform_indices = @transform_21, window_bounds = array<i64: 1, 1, 128>}, {transform_indices = @transform_22, window_bounds = array<i64: 1, 128, 128>}, {transform_indices = @transform_23, window_bounds = array<i64: 1, 1, 128>}, {transform_indices = @transform_24, window_bounds = array<i64: 1, 128, 128>}, {transform_indices = @transform_25, window_bounds = array<i64: 1, 1, 128>}, {transform_indices = @transform_26, window_bounds = array<i64: 1, 1, 128>}, {transform_indices = @transform_27, window_bounds = array<i64: 1, 1, 128>}, {pipeline_mode = #tpu.pipeline_mode<synchronous>, transform_indices = @transform_28, window_bounds = array<i64: 16, 128>}]} {
    %c0_i32 = arith.constant 0 : i32
    %0 = arith.cmpi eq, %arg0, %c0_i32 : i32
    %1 = arith.extui %0 : i1 to i32
    %c0_i32_0 = arith.constant 0 : i32
    %2 = arith.cmpi ne, %1, %c0_i32_0 : i32
    scf.if %2 {
      %c0_124 = arith.constant 0 : index
      %c0_125 = arith.constant 0 : index
      %321 = vector.load %arg1[%c0_124, %c0_125] : memref<16x128xf32, #tpu.memory_space<vmem>>, vector<16x128xf32>
      %c0_126 = arith.constant 0 : index
      %c0_127 = arith.constant 0 : index
      %322 = vector.load %arg30[%c0_126, %c0_127] : memref<16x128xf32, #tpu.memory_space<vmem>>, vector<16x128xf32>
      tpu.vector_store %arg30[%c0_126, %c0_127], %321 {strides = array<i32>} : memref<16x128xf32, #tpu.memory_space<vmem>>, vector<16x128xf32>,
    } else {
    }
    %c0 = arith.constant 0 : index
    %c0_1 = arith.constant 0 : index
    %3 = vector.load %arg30[%c0, %c0_1] : memref<16x128xf32, #tpu.memory_space<vmem>>, vector<16x128xf32>
    %c0_2 = arith.constant 0 : index
    %c0_3 = arith.constant 0 : index
    %4 = vector.load %arg2[%c0_2, %c0_3] : memref<32x128xbf16, #tpu.memory_space<vmem>>, vector<32x128xbf16>
    %5 = tpu.iota {dimensions = array<i32: 1>} : vector<1x128xi32>
    %c32_i32 = arith.constant 32 : i32
    %6 = vector.broadcast %c32_i32 : i32 to vector<1x128xi32>
    %7 = arith.cmpi slt, %5, %6 : vector<1x128xi32>
    %8 = arith.extui %7 : vector<1x128xi1> to vector<1x128xi32>
    %9 = arith.sitofp %8 : vector<1x128xi32> to vector<1x128xf32>
    %10 = tpu.iota {dimensions = array<i32: 0>} : vector<8x8xi32>
    %11 = tpu.iota {dimensions = array<i32: 1>} : vector<8x8xi32>
    %12 = arith.cmpi sle, %11, %10 : vector<8x8xi32>
    %c0_4 = arith.constant 0 : index
    %c0_5 = arith.constant 0 : index
    %13 = vector.load %arg3[%c0_4, %c0_5] : memref<16x32xf32, #tpu.memory_space<vmem>>, vector<16x32xf32>
    %14 = tpu.concatenate %13, %13, %13, %13 in 1 : vector<16x32xf32>, vector<16x32xf32>, vector<16x32xf32>, vector<16x32xf32> -> vector<16x128xf32>
    %c0_6 = arith.constant 0 : index
    %c0_7 = arith.constant 0 : index
    %15 = vector.load %arg4[%c0_6, %c0_7] : memref<16x32xf32, #tpu.memory_space<vmem>>, vector<16x32xf32>
    %16 = tpu.concatenate %15, %15, %15, %15 in 1 : vector<16x32xf32>, vector<16x32xf32>, vector<16x32xf32>, vector<16x32xf32> -> vector<16x128xf32>
    %c0_8 = arith.constant 0 : index
    %c0_9 = arith.constant 0 : index
    %17 = vector.load %arg5[%c0_8, %c0_9] : memref<16x32xf32, #tpu.memory_space<vmem>>, vector<16x32xf32>
    %18 = tpu.concatenate %17, %17, %17, %17 in 1 : vector<16x32xf32>, vector<16x32xf32>, vector<16x32xf32>, vector<16x32xf32> -> vector<16x128xf32>
    %c0_10 = arith.constant 0 : index
    %c0_11 = arith.constant 0 : index
    %19 = vector.load %arg6[%c0_10, %c0_11] : memref<32x32xf32, #tpu.memory_space<vmem>>, vector<32x32xf32>
    %20 = tpu.concatenate %19, %19, %19, %19 in 1 : vector<32x32xf32>, vector<32x32xf32>, vector<32x32xf32>, vector<32x32xf32> -> vector<32x128xf32>
    %c0_12 = arith.constant 0 : index
    %c0_13 = arith.constant 0 : index
    %21 = vector.load %arg7[%c0_12, %c0_13] : memref<32x32xf32, #tpu.memory_space<vmem>>, vector<32x32xf32>
    %c0_14 = arith.constant 0 : index
    %c0_15 = arith.constant 0 : index
    %22 = vector.load %arg8[%c0_14, %c0_15] : memref<32x32xf32, #tpu.memory_space<vmem>>, vector<32x32xf32>
    %cst = arith.constant 0.000000e+00 : f32
    %23 = vector.broadcast %cst : f32 to vector<32x32xf32>
    %24 = arith.subf %23, %21 : vector<32x32xf32>
    %25 = tpu.concatenate %21, %21, %24, %24 in 1 : vector<32x32xf32>, vector<32x32xf32>, vector<32x32xf32>, vector<32x32xf32> -> vector<32x128xf32>
    %cst_16 = arith.constant 0.000000e+00 : f32
    %26 = vector.broadcast %cst_16 : f32 to vector<32x32xf32>
    %27 = arith.subf %26, %22 : vector<32x32xf32>
    %28 = tpu.concatenate %22, %22, %27, %27 in 1 : vector<32x32xf32>, vector<32x32xf32>, vector<32x32xf32>, vector<32x32xf32> -> vector<32x128xf32>
    %29 = arith.truncf %3 : vector<16x128xf32> to vector<16x128xbf16>
    %c0_17 = arith.constant 0 : index
    %c0_18 = arith.constant 0 : index
    %c0_19 = arith.constant 0 : index
    %30 = vector.load %arg9[%c0_17, %c0_18, %c0_19] : memref<1x128x384xbf16, #tpu.memory_space<vmem>>, vector<1x128x384xbf16>
    %31 = vector.shape_cast %30 : vector<1x128x384xbf16> to vector<128x384xbf16>
    %cst_20 = arith.constant dense<0.000000e+00> : vector<16x384xf32>
    %32 = tpu.matmul %29, %31, %cst_20 {dimension_numbers = #tpu.dot_dimension_numbers<[1], [0], [0], [1], [0, 0, 1, 1], [], []>} : vector<16x128xbf16>, vector<128x384xbf16>, vector<16x384xf32> -> vector<16x384xf32>
    %c0_21 = arith.constant 0 : index
    %c0_22 = arith.constant 0 : index
    %c0_23 = arith.constant 0 : index
    %33 = vector.load %arg10[%c0_21, %c0_22, %c0_23] : memref<1x1x384xf32, #tpu.memory_space<vmem>>, vector<1x1x384xf32>
    %34 = vector.shape_cast %33 : vector<1x1x384xf32> to vector<1x384xf32>
    %35 = vector.broadcast %34 : vector<1x384xf32> to vector<16x384xf32>
    %36 = arith.addf %32, %35 : vector<16x384xf32>
    %37 = vector.extract_strided_slice %36 {offsets = [0, 0], sizes = [16, 128], strides = [1, 1]} : vector<16x384xf32> to vector<16x128xf32>
    %c124_i32 = arith.constant 124 : i32
    %38 = tpu.dynamic_rotate %37 by %c124_i32 dim 1 : vector<16x128xf32>, i32 -> vector<16x128xf32>
    %c4_i32 = arith.constant 4 : i32
    %39 = tpu.dynamic_rotate %37 by %c4_i32 dim 1 : vector<16x128xf32>, i32 -> vector<16x128xf32>
    %40 = arith.mulf %37, %14 : vector<16x128xf32>
    %41 = arith.mulf %38, %16 : vector<16x128xf32>
    %42 = arith.addf %40, %41 : vector<16x128xf32>
    %43 = arith.mulf %39, %18 : vector<16x128xf32>
    %44 = arith.addf %42, %43 : vector<16x128xf32>
    %45 = vector.extract_strided_slice %36 {offsets = [0, 128], sizes = [16, 128], strides = [1, 1]} : vector<16x384xf32> to vector<16x128xf32>
    %c124_i32_24 = arith.constant 124 : i32
    %46 = tpu.dynamic_rotate %45 by %c124_i32_24 dim 1 : vector<16x128xf32>, i32 -> vector<16x128xf32>
    %c4_i32_25 = arith.constant 4 : i32
    %47 = tpu.dynamic_rotate %45 by %c4_i32_25 dim 1 : vector<16x128xf32>, i32 -> vector<16x128xf32>
    %48 = arith.mulf %45, %14 : vector<16x128xf32>
    %49 = arith.mulf %46, %16 : vector<16x128xf32>
    %50 = arith.addf %48, %49 : vector<16x128xf32>
    %51 = arith.mulf %47, %18 : vector<16x128xf32>
    %52 = arith.addf %50, %51 : vector<16x128xf32>
    %53 = vector.extract_strided_slice %36 {offsets = [0, 256], sizes = [16, 128], strides = [1, 1]} : vector<16x384xf32> to vector<16x128xf32>
    %54 = arith.truncf %44 : vector<16x128xf32> to vector<16x128xbf16>
    %55 = vector.extract_strided_slice %54 {offsets = [0, 0], sizes = [16, 32], strides = [1, 1]} : vector<16x128xbf16> to vector<16x32xbf16>
    %56 = vector.shape_cast %55 : vector<16x32xbf16> to vector<2x8x32xbf16>
    %57 = vector.extract_strided_slice %54 {offsets = [0, 32], sizes = [16, 32], strides = [1, 1]} : vector<16x128xbf16> to vector<16x32xbf16>
    %58 = vector.shape_cast %57 : vector<16x32xbf16> to vector<2x8x32xbf16>
    %59 = vector.extract_strided_slice %54 {offsets = [0, 64], sizes = [16, 32], strides = [1, 1]} : vector<16x128xbf16> to vector<16x32xbf16>
    %60 = vector.shape_cast %59 : vector<16x32xbf16> to vector<2x8x32xbf16>
    %61 = vector.extract_strided_slice %54 {offsets = [0, 96], sizes = [16, 32], strides = [1, 1]} : vector<16x128xbf16> to vector<16x32xbf16>
    %62 = vector.shape_cast %61 : vector<16x32xbf16> to vector<2x8x32xbf16>
    %63 = tpu.concatenate %56, %58, %60, %62 in 0 : vector<2x8x32xbf16>, vector<2x8x32xbf16>, vector<2x8x32xbf16>, vector<2x8x32xbf16> -> vector<8x8x32xbf16>
    %64 = arith.truncf %52 : vector<16x128xf32> to vector<16x128xbf16>
    %65 = vector.extract_strided_slice %64 {offsets = [0, 0], sizes = [16, 32], strides = [1, 1]} : vector<16x128xbf16> to vector<16x32xbf16>
    %66 = vector.shape_cast %65 : vector<16x32xbf16> to vector<2x8x32xbf16>
    %67 = vector.extract_strided_slice %64 {offsets = [0, 32], sizes = [16, 32], strides = [1, 1]} : vector<16x128xbf16> to vector<16x32xbf16>
    %68 = vector.shape_cast %67 : vector<16x32xbf16> to vector<2x8x32xbf16>
    %69 = vector.extract_strided_slice %64 {offsets = [0, 64], sizes = [16, 32], strides = [1, 1]} : vector<16x128xbf16> to vector<16x32xbf16>
    %70 = vector.shape_cast %69 : vector<16x32xbf16> to vector<2x8x32xbf16>
    %71 = vector.extract_strided_slice %64 {offsets = [0, 96], sizes = [16, 32], strides = [1, 1]} : vector<16x128xbf16> to vector<16x32xbf16>
    %72 = vector.shape_cast %71 : vector<16x32xbf16> to vector<2x8x32xbf16>
    %73 = tpu.concatenate %66, %68, %70, %72 in 0 : vector<2x8x32xbf16>, vector<2x8x32xbf16>, vector<2x8x32xbf16>, vector<2x8x32xbf16> -> vector<8x8x32xbf16>
    %74 = arith.truncf %53 : vector<16x128xf32> to vector<16x128xbf16>
    %75 = vector.extract_strided_slice %74 {offsets = [0, 0], sizes = [16, 32], strides = [1, 1]} : vector<16x128xbf16> to vector<16x32xbf16>
    %76 = vector.shape_cast %75 : vector<16x32xbf16> to vector<2x8x32xbf16>
    %77 = vector.extract_strided_slice %74 {offsets = [0, 32], sizes = [16, 32], strides = [1, 1]} : vector<16x128xbf16> to vector<16x32xbf16>
    %78 = vector.shape_cast %77 : vector<16x32xbf16> to vector<2x8x32xbf16>
    %79 = vector.extract_strided_slice %74 {offsets = [0, 64], sizes = [16, 32], strides = [1, 1]} : vector<16x128xbf16> to vector<16x32xbf16>
    %80 = vector.shape_cast %79 : vector<16x32xbf16> to vector<2x8x32xbf16>
    %81 = vector.extract_strided_slice %74 {offsets = [0, 96], sizes = [16, 32], strides = [1, 1]} : vector<16x128xbf16> to vector<16x32xbf16>
    %82 = vector.shape_cast %81 : vector<16x32xbf16> to vector<2x8x32xbf16>
    %83 = tpu.concatenate %76, %78, %80, %82 in 0 : vector<2x8x32xbf16>, vector<2x8x32xbf16>, vector<2x8x32xbf16>, vector<2x8x32xbf16> -> vector<8x8x32xbf16>
    "tpu.trace_start"() <{level = 10 : i32, message = "gld,gmd->glm"}> : () -> ()
    %cst_26 = arith.constant dense<0.000000e+00> : vector<8x8x8xf32>
    %84 = tpu.matmul %63, %73, %cst_26 {dimension_numbers = #tpu.dot_dimension_numbers<[2], [2], [1], [1], [0, 0, 0, 1, 1, 1], [0], [0]>} : vector<8x8x32xbf16>, vector<8x8x32xbf16>, vector<8x8x8xf32> -> vector<8x8x8xf32>
    "tpu.trace_stop"() : () -> ()
    %cst_27 = arith.constant 0.353553385 : f32
    %85 = vector.broadcast %cst_27 : f32 to vector<8x8x8xf32>
    %86 = arith.mulf %84, %85 : vector<8x8x8xf32>
    %87 = vector.shape_cast %12 : vector<8x8xi1> to vector<1x8x8xi1>
    %cst_28 = arith.constant -1.000000e+30 : f32
    %88 = vector.shape_cast %87 : vector<1x8x8xi1> to vector<1x8x8xi1>
    %89 = vector.broadcast %88 : vector<1x8x8xi1> to vector<8x8x8xi1>
    %90 = vector.broadcast %cst_28 : f32 to vector<8x8x8xf32>
    %91 = arith.select %89, %86, %90 : vector<8x8x8xi1>, vector<8x8x8xf32>
    %cst_29 = arith.constant dense<0xFF800000> : vector<8x8xf32>
    %92 = vector.multi_reduction <maximumf>, %91, %cst_29 [2] : vector<8x8x8xf32> to vector<8x8xf32>
    %93 = vector.shape_cast %92 : vector<8x8xf32> to vector<8x8x1xf32>
    %94 = vector.broadcast %93 : vector<8x8x1xf32> to vector<8x8x8xf32>
    %95 = arith.subf %91, %94 : vector<8x8x8xf32>
    %96 = math.exp %95 : vector<8x8x8xf32>
    %cst_30 = arith.constant dense<0.000000e+00> : vector<8x8xf32>
    %97 = vector.multi_reduction <add>, %96, %cst_30 [2] : vector<8x8x8xf32> to vector<8x8xf32>
    %98 = vector.shape_cast %97 : vector<8x8xf32> to vector<8x8x1xf32>
    %99 = tpu.reciprocal %98 {approx = true} : vector<8x8x1xf32> -> vector<8x8x1xf32>
    %100 = vector.broadcast %99 : vector<8x8x1xf32> to vector<8x8x8xf32>
    %101 = arith.mulf %96, %100 : vector<8x8x8xf32>
    %102 = arith.truncf %101 : vector<8x8x8xf32> to vector<8x8x8xbf16>
    "tpu.trace_start"() <{level = 10 : i32, message = "glm,gmd->gld"}> : () -> ()
    %cst_31 = arith.constant dense<0.000000e+00> : vector<8x8x32xf32>
    %103 = tpu.matmul %102, %83, %cst_31 {dimension_numbers = #tpu.dot_dimension_numbers<[2], [1], [1], [2], [0, 0, 0, 1, 1, 2], [0], [0]>} : vector<8x8x8xbf16>, vector<8x8x32xbf16>, vector<8x8x32xf32> -> vector<8x8x32xf32>
    "tpu.trace_stop"() : () -> ()
    %104 = vector.extract_strided_slice %103 {offsets = [0, 0, 0], sizes = [2, 8, 32], strides = [1, 1, 1]} : vector<8x8x32xf32> to vector<2x8x32xf32>
    %105 = vector.shape_cast %104 : vector<2x8x32xf32> to vector<16x32xf32>
    %106 = vector.extract_strided_slice %103 {offsets = [2, 0, 0], sizes = [2, 8, 32], strides = [1, 1, 1]} : vector<8x8x32xf32> to vector<2x8x32xf32>
    %107 = vector.shape_cast %106 : vector<2x8x32xf32> to vector<16x32xf32>
    %108 = vector.extract_strided_slice %103 {offsets = [4, 0, 0], sizes = [2, 8, 32], strides = [1, 1, 1]} : vector<8x8x32xf32> to vector<2x8x32xf32>
    %109 = vector.shape_cast %108 : vector<2x8x32xf32> to vector<16x32xf32>
    %110 = vector.extract_strided_slice %103 {offsets = [6, 0, 0], sizes = [2, 8, 32], strides = [1, 1, 1]} : vector<8x8x32xf32> to vector<2x8x32xf32>
    %111 = vector.shape_cast %110 : vector<2x8x32xf32> to vector<16x32xf32>
    %112 = tpu.concatenate %105, %107, %109, %111 in 1 : vector<16x32xf32>, vector<16x32xf32>, vector<16x32xf32>, vector<16x32xf32> -> vector<16x128xf32>
    %113 = arith.truncf %112 : vector<16x128xf32> to vector<16x128xbf16>
    %c0_32 = arith.constant 0 : index
    %c0_33 = arith.constant 0 : index
    %c0_34 = arith.constant 0 : index
    %114 = vector.load %arg11[%c0_32, %c0_33, %c0_34] : memref<1x128x128xbf16, #tpu.memory_space<vmem>>, vector<1x128x128xbf16>
    %115 = vector.shape_cast %114 : vector<1x128x128xbf16> to vector<128x128xbf16>
    %cst_35 = arith.constant dense<0.000000e+00> : vector<16x128xf32>
    %116 = tpu.matmul %113, %115, %cst_35 {dimension_numbers = #tpu.dot_dimension_numbers<[1], [0], [0], [1], [0, 0, 1, 1], [], []>} : vector<16x128xbf16>, vector<128x128xbf16>, vector<16x128xf32> -> vector<16x128xf32>
    %c0_36 = arith.constant 0 : index
    %c0_37 = arith.constant 0 : index
    %c0_38 = arith.constant 0 : index
    %117 = vector.load %arg12[%c0_36, %c0_37, %c0_38] : memref<1x1x128xf32, #tpu.memory_space<vmem>>, vector<1x1x128xf32>
    %118 = vector.shape_cast %117 : vector<1x1x128xf32> to vector<1x128xf32>
    %119 = vector.broadcast %118 : vector<1x128xf32> to vector<16x128xf32>
    %120 = arith.addf %116, %119 : vector<16x128xf32>
    %c0_39 = arith.constant 0 : index
    %c0_40 = arith.constant 0 : index
    %c0_41 = arith.constant 0 : index
    %121 = vector.load %arg13[%c0_39, %c0_40, %c0_41] : memref<1x1x128xf32, #tpu.memory_space<vmem>>, vector<1x1x128xf32>
    %122 = vector.shape_cast %121 : vector<1x1x128xf32> to vector<1x128xf32>
    %c0_42 = arith.constant 0 : index
    %c0_43 = arith.constant 0 : index
    %c0_44 = arith.constant 0 : index
    %123 = vector.load %arg14[%c0_42, %c0_43, %c0_44] : memref<1x1x128xf32, #tpu.memory_space<vmem>>, vector<1x1x128xf32>
    %124 = vector.shape_cast %123 : vector<1x1x128xf32> to vector<1x128xf32>
    %cst_45 = arith.constant 1.41421354 : f32
    %125 = vector.broadcast %cst_45 : f32 to vector<16x128xf32>
    %126 = arith.mulf %125, %3 : vector<16x128xf32>
    %127 = arith.addf %126, %120 : vector<16x128xf32>
    %cst_46 = arith.constant dense<0.000000e+00> : vector<16xf32>
    %128 = vector.multi_reduction <add>, %127, %cst_46 [1] : vector<16x128xf32> to vector<16xf32>
    %129 = vector.shape_cast %128 : vector<16xf32> to vector<16x1xf32>
    %cst_47 = arith.constant 3.125000e-02 : f32
    %130 = vector.broadcast %cst_47 : f32 to vector<16x1xf32>
    %131 = arith.mulf %129, %130 : vector<16x1xf32>
    %132 = vector.broadcast %131 : vector<16x1xf32> to vector<16x128xf32>
    %133 = arith.subf %127, %132 : vector<16x128xf32>
    %134 = vector.broadcast %9 : vector<1x128xf32> to vector<16x128xf32>
    %135 = arith.mulf %133, %134 : vector<16x128xf32>
    %136 = arith.mulf %135, %135 : vector<16x128xf32>
    %cst_48 = arith.constant dense<0.000000e+00> : vector<16xf32>
    %137 = vector.multi_reduction <add>, %136, %cst_48 [1] : vector<16x128xf32> to vector<16xf32>
    %138 = vector.shape_cast %137 : vector<16xf32> to vector<16x1xf32>
    %cst_49 = arith.constant 3.125000e-02 : f32
    %139 = vector.broadcast %cst_49 : f32 to vector<16x1xf32>
    %140 = arith.mulf %138, %139 : vector<16x1xf32>
    %cst_50 = arith.constant 9.99999974E-6 : f32
    %141 = vector.broadcast %cst_50 : f32 to vector<16x1xf32>
    %142 = arith.addf %140, %141 : vector<16x1xf32>
    %143 = math.rsqrt %142 : vector<16x1xf32>
    %144 = vector.broadcast %143 : vector<16x1xf32> to vector<16x128xf32>
    %145 = arith.mulf %135, %144 : vector<16x128xf32>
    %146 = vector.broadcast %122 : vector<1x128xf32> to vector<16x128xf32>
    %147 = arith.mulf %145, %146 : vector<16x128xf32>
    %148 = vector.broadcast %124 : vector<1x128xf32> to vector<16x128xf32>
    %149 = arith.addf %147, %148 : vector<16x128xf32>
    %150 = arith.truncf %149 : vector<16x128xf32> to vector<16x128xbf16>
    %c0_51 = arith.constant 0 : index
    %c0_52 = arith.constant 0 : index
    %c0_53 = arith.constant 0 : index
    %151 = vector.load %arg15[%c0_51, %c0_52, %c0_53] : memref<1x128x128xbf16, #tpu.memory_space<vmem>>, vector<1x128x128xbf16>
    %152 = vector.shape_cast %151 : vector<1x128x128xbf16> to vector<128x128xbf16>
    %cst_54 = arith.constant dense<0.000000e+00> : vector<16x128xf32>
    %153 = tpu.matmul %150, %152, %cst_54 {dimension_numbers = #tpu.dot_dimension_numbers<[1], [0], [0], [1], [0, 0, 1, 1], [], []>} : vector<16x128xbf16>, vector<128x128xbf16>, vector<16x128xf32> -> vector<16x128xf32>
    %c0_55 = arith.constant 0 : index
    %c0_56 = arith.constant 0 : index
    %c0_57 = arith.constant 0 : index
    %154 = vector.load %arg16[%c0_55, %c0_56, %c0_57] : memref<1x1x128xf32, #tpu.memory_space<vmem>>, vector<1x1x128xf32>
    %155 = vector.shape_cast %154 : vector<1x1x128xf32> to vector<1x128xf32>
    %156 = vector.broadcast %155 : vector<1x128xf32> to vector<16x128xf32>
    %157 = arith.addf %153, %156 : vector<16x128xf32>
    %c0_58 = arith.constant 0 : index
    %c0_59 = arith.constant 0 : index
    %c0_60 = arith.constant 0 : index
    %158 = vector.load %arg17[%c0_58, %c0_59, %c0_60] : memref<1x128x256xbf16, #tpu.memory_space<vmem>>, vector<1x128x256xbf16>
    %159 = vector.shape_cast %158 : vector<1x128x256xbf16> to vector<128x256xbf16>
    %cst_61 = arith.constant dense<0.000000e+00> : vector<32x256xf32>
    %160 = tpu.matmul %4, %159, %cst_61 {dimension_numbers = #tpu.dot_dimension_numbers<[1], [0], [0], [1], [0, 0, 1, 1], [], []>} : vector<32x128xbf16>, vector<128x256xbf16>, vector<32x256xf32> -> vector<32x256xf32>
    %c0_62 = arith.constant 0 : index
    %c0_63 = arith.constant 0 : index
    %c0_64 = arith.constant 0 : index
    %161 = vector.load %arg18[%c0_62, %c0_63, %c0_64] : memref<1x1x256xf32, #tpu.memory_space<vmem>>, vector<1x1x256xf32>
    %162 = vector.shape_cast %161 : vector<1x1x256xf32> to vector<1x256xf32>
    %163 = vector.broadcast %162 : vector<1x256xf32> to vector<32x256xf32>
    %164 = arith.addf %160, %163 : vector<32x256xf32>
    %c124_i32_65 = arith.constant 124 : i32
    %165 = tpu.dynamic_rotate %157 by %c124_i32_65 dim 1 : vector<16x128xf32>, i32 -> vector<16x128xf32>
    %c4_i32_66 = arith.constant 4 : i32
    %166 = tpu.dynamic_rotate %157 by %c4_i32_66 dim 1 : vector<16x128xf32>, i32 -> vector<16x128xf32>
    %167 = arith.mulf %157, %14 : vector<16x128xf32>
    %168 = arith.mulf %165, %16 : vector<16x128xf32>
    %169 = arith.addf %167, %168 : vector<16x128xf32>
    %170 = arith.mulf %166, %18 : vector<16x128xf32>
    %171 = arith.addf %169, %170 : vector<16x128xf32>
    %172 = vector.extract_strided_slice %164 {offsets = [0, 0], sizes = [32, 128], strides = [1, 1]} : vector<32x256xf32> to vector<32x128xf32>
    %c124_i32_67 = arith.constant 124 : i32
    %173 = tpu.dynamic_rotate %172 by %c124_i32_67 dim 1 : vector<32x128xf32>, i32 -> vector<32x128xf32>
    %c4_i32_68 = arith.constant 4 : i32
    %174 = tpu.dynamic_rotate %172 by %c4_i32_68 dim 1 : vector<32x128xf32>, i32 -> vector<32x128xf32>
    %175 = arith.mulf %172, %20 : vector<32x128xf32>
    %176 = arith.mulf %173, %25 : vector<32x128xf32>
    %177 = arith.addf %175, %176 : vector<32x128xf32>
    %178 = arith.mulf %174, %28 : vector<32x128xf32>
    %179 = arith.addf %177, %178 : vector<32x128xf32>
    %180 = vector.extract_strided_slice %164 {offsets = [0, 128], sizes = [32, 128], strides = [1, 1]} : vector<32x256xf32> to vector<32x128xf32>
    %181 = arith.truncf %171 : vector<16x128xf32> to vector<16x128xbf16>
    %182 = vector.extract_strided_slice %181 {offsets = [0, 0], sizes = [16, 32], strides = [1, 1]} : vector<16x128xbf16> to vector<16x32xbf16>
    %183 = vector.shape_cast %182 : vector<16x32xbf16> to vector<2x8x32xbf16>
    %184 = vector.extract_strided_slice %181 {offsets = [0, 32], sizes = [16, 32], strides = [1, 1]} : vector<16x128xbf16> to vector<16x32xbf16>
    %185 = vector.shape_cast %184 : vector<16x32xbf16> to vector<2x8x32xbf16>
    %186 = vector.extract_strided_slice %181 {offsets = [0, 64], sizes = [16, 32], strides = [1, 1]} : vector<16x128xbf16> to vector<16x32xbf16>
    %187 = vector.shape_cast %186 : vector<16x32xbf16> to vector<2x8x32xbf16>
    %188 = vector.extract_strided_slice %181 {offsets = [0, 96], sizes = [16, 32], strides = [1, 1]} : vector<16x128xbf16> to vector<16x32xbf16>
    %189 = vector.shape_cast %188 : vector<16x32xbf16> to vector<2x8x32xbf16>
    %190 = tpu.concatenate %183, %185, %187, %189 in 0 : vector<2x8x32xbf16>, vector<2x8x32xbf16>, vector<2x8x32xbf16>, vector<2x8x32xbf16> -> vector<8x8x32xbf16>
    %191 = arith.truncf %179 : vector<32x128xf32> to vector<32x128xbf16>
    %192 = vector.extract_strided_slice %191 {offsets = [0, 0], sizes = [32, 32], strides = [1, 1]} : vector<32x128xbf16> to vector<32x32xbf16>
    %193 = vector.shape_cast %192 : vector<32x32xbf16> to vector<2x16x32xbf16>
    %194 = vector.extract_strided_slice %191 {offsets = [0, 32], sizes = [32, 32], strides = [1, 1]} : vector<32x128xbf16> to vector<32x32xbf16>
    %195 = vector.shape_cast %194 : vector<32x32xbf16> to vector<2x16x32xbf16>
    %196 = vector.extract_strided_slice %191 {offsets = [0, 64], sizes = [32, 32], strides = [1, 1]} : vector<32x128xbf16> to vector<32x32xbf16>
    %197 = vector.shape_cast %196 : vector<32x32xbf16> to vector<2x16x32xbf16>
    %198 = vector.extract_strided_slice %191 {offsets = [0, 96], sizes = [32, 32], strides = [1, 1]} : vector<32x128xbf16> to vector<32x32xbf16>
    %199 = vector.shape_cast %198 : vector<32x32xbf16> to vector<2x16x32xbf16>
    %200 = tpu.concatenate %193, %195, %197, %199 in 0 : vector<2x16x32xbf16>, vector<2x16x32xbf16>, vector<2x16x32xbf16>, vector<2x16x32xbf16> -> vector<8x16x32xbf16>
    %201 = arith.truncf %180 : vector<32x128xf32> to vector<32x128xbf16>
    %202 = vector.extract_strided_slice %201 {offsets = [0, 0], sizes = [32, 32], strides = [1, 1]} : vector<32x128xbf16> to vector<32x32xbf16>
    %203 = vector.shape_cast %202 : vector<32x32xbf16> to vector<2x16x32xbf16>
    %204 = vector.extract_strided_slice %201 {offsets = [0, 32], sizes = [32, 32], strides = [1, 1]} : vector<32x128xbf16> to vector<32x32xbf16>
    %205 = vector.shape_cast %204 : vector<32x32xbf16> to vector<2x16x32xbf16>
    %206 = vector.extract_strided_slice %201 {offsets = [0, 64], sizes = [32, 32], strides = [1, 1]} : vector<32x128xbf16> to vector<32x32xbf16>
    %207 = vector.shape_cast %206 : vector<32x32xbf16> to vector<2x16x32xbf16>
    %208 = vector.extract_strided_slice %201 {offsets = [0, 96], sizes = [32, 32], strides = [1, 1]} : vector<32x128xbf16> to vector<32x32xbf16>
    %209 = vector.shape_cast %208 : vector<32x32xbf16> to vector<2x16x32xbf16>
    %210 = tpu.concatenate %203, %205, %207, %209 in 0 : vector<2x16x32xbf16>, vector<2x16x32xbf16>, vector<2x16x32xbf16>, vector<2x16x32xbf16> -> vector<8x16x32xbf16>
    "tpu.trace_start"() <{level = 10 : i32, message = "gld,gmd->glm"}> : () -> ()
    %cst_69 = arith.constant dense<0.000000e+00> : vector<8x8x16xf32>
    %211 = tpu.matmul %190, %200, %cst_69 {dimension_numbers = #tpu.dot_dimension_numbers<[2], [2], [1], [1], [0, 0, 0, 1, 1, 1], [0], [0]>} : vector<8x8x32xbf16>, vector<8x16x32xbf16>, vector<8x8x16xf32> -> vector<8x8x16xf32>
    "tpu.trace_stop"() : () -> ()
    %cst_70 = arith.constant 0.353553385 : f32
    %212 = vector.broadcast %cst_70 : f32 to vector<8x8x16xf32>
    %213 = arith.mulf %211, %212 : vector<8x8x16xf32>
    %cst_71 = arith.constant dense<0xFF800000> : vector<8x8xf32>
    %214 = vector.multi_reduction <maximumf>, %213, %cst_71 [2] : vector<8x8x16xf32> to vector<8x8xf32>
    %215 = vector.shape_cast %214 : vector<8x8xf32> to vector<8x8x1xf32>
    %216 = vector.broadcast %215 : vector<8x8x1xf32> to vector<8x8x16xf32>
    %217 = arith.subf %213, %216 : vector<8x8x16xf32>
    %218 = math.exp %217 : vector<8x8x16xf32>
    %cst_72 = arith.constant dense<0.000000e+00> : vector<8x8xf32>
    %219 = vector.multi_reduction <add>, %218, %cst_72 [2] : vector<8x8x16xf32> to vector<8x8xf32>
    %220 = vector.shape_cast %219 : vector<8x8xf32> to vector<8x8x1xf32>
    %221 = tpu.reciprocal %220 {approx = true} : vector<8x8x1xf32> -> vector<8x8x1xf32>
    %222 = vector.broadcast %221 : vector<8x8x1xf32> to vector<8x8x16xf32>
    %223 = arith.mulf %218, %222 : vector<8x8x16xf32>
    %224 = arith.truncf %223 : vector<8x8x16xf32> to vector<8x8x16xbf16>
    "tpu.trace_start"() <{level = 10 : i32, message = "glm,gmd->gld"}> : () -> ()
    %cst_73 = arith.constant dense<0.000000e+00> : vector<8x8x32xf32>
    %225 = tpu.matmul %224, %210, %cst_73 {dimension_numbers = #tpu.dot_dimension_numbers<[2], [1], [1], [2], [0, 0, 0, 1, 1, 2], [0], [0]>} : vector<8x8x16xbf16>, vector<8x16x32xbf16>, vector<8x8x32xf32> -> vector<8x8x32xf32>
    "tpu.trace_stop"() : () -> ()
    %226 = vector.extract_strided_slice %225 {offsets = [0, 0, 0], sizes = [2, 8, 32], strides = [1, 1, 1]} : vector<8x8x32xf32> to vector<2x8x32xf32>
    %227 = vector.shape_cast %226 : vector<2x8x32xf32> to vector<16x32xf32>
    %228 = vector.extract_strided_slice %225 {offsets = [2, 0, 0], sizes = [2, 8, 32], strides = [1, 1, 1]} : vector<8x8x32xf32> to vector<2x8x32xf32>
    %229 = vector.shape_cast %228 : vector<2x8x32xf32> to vector<16x32xf32>
    %230 = vector.extract_strided_slice %225 {offsets = [4, 0, 0], sizes = [2, 8, 32], strides = [1, 1, 1]} : vector<8x8x32xf32> to vector<2x8x32xf32>
    %231 = vector.shape_cast %230 : vector<2x8x32xf32> to vector<16x32xf32>
    %232 = vector.extract_strided_slice %225 {offsets = [6, 0, 0], sizes = [2, 8, 32], strides = [1, 1, 1]} : vector<8x8x32xf32> to vector<2x8x32xf32>
    %233 = vector.shape_cast %232 : vector<2x8x32xf32> to vector<16x32xf32>
    %234 = tpu.concatenate %227, %229, %231, %233 in 1 : vector<16x32xf32>, vector<16x32xf32>, vector<16x32xf32>, vector<16x32xf32> -> vector<16x128xf32>
    %235 = arith.truncf %234 : vector<16x128xf32> to vector<16x128xbf16>
    %c0_74 = arith.constant 0 : index
    %c0_75 = arith.constant 0 : index
    %c0_76 = arith.constant 0 : index
    %236 = vector.load %arg19[%c0_74, %c0_75, %c0_76] : memref<1x128x128xbf16, #tpu.memory_space<vmem>>, vector<1x128x128xbf16>
    %237 = vector.shape_cast %236 : vector<1x128x128xbf16> to vector<128x128xbf16>
    %cst_77 = arith.constant dense<0.000000e+00> : vector<16x128xf32>
    %238 = tpu.matmul %235, %237, %cst_77 {dimension_numbers = #tpu.dot_dimension_numbers<[1], [0], [0], [1], [0, 0, 1, 1], [], []>} : vector<16x128xbf16>, vector<128x128xbf16>, vector<16x128xf32> -> vector<16x128xf32>
    %c0_78 = arith.constant 0 : index
    %c0_79 = arith.constant 0 : index
    %c0_80 = arith.constant 0 : index
    %239 = vector.load %arg20[%c0_78, %c0_79, %c0_80] : memref<1x1x128xf32, #tpu.memory_space<vmem>>, vector<1x1x128xf32>
    %240 = vector.shape_cast %239 : vector<1x1x128xf32> to vector<1x128xf32>
    %241 = vector.broadcast %240 : vector<1x128xf32> to vector<16x128xf32>
    %242 = arith.addf %238, %241 : vector<16x128xf32>
    %c0_81 = arith.constant 0 : index
    %c0_82 = arith.constant 0 : index
    %c0_83 = arith.constant 0 : index
    %243 = vector.load %arg21[%c0_81, %c0_82, %c0_83] : memref<1x1x128xf32, #tpu.memory_space<vmem>>, vector<1x1x128xf32>
    %244 = vector.shape_cast %243 : vector<1x1x128xf32> to vector<1x128xf32>
    %c0_84 = arith.constant 0 : index
    %c0_85 = arith.constant 0 : index
    %c0_86 = arith.constant 0 : index
    %245 = vector.load %arg22[%c0_84, %c0_85, %c0_86] : memref<1x1x128xf32, #tpu.memory_space<vmem>>, vector<1x1x128xf32>
    %246 = vector.shape_cast %245 : vector<1x1x128xf32> to vector<1x128xf32>
    %cst_87 = arith.constant 1.41421354 : f32
    %247 = vector.broadcast %cst_87 : f32 to vector<16x128xf32>
    %248 = arith.mulf %247, %149 : vector<16x128xf32>
    %249 = arith.addf %248, %242 : vector<16x128xf32>
    %cst_88 = arith.constant dense<0.000000e+00> : vector<16xf32>
    %250 = vector.multi_reduction <add>, %249, %cst_88 [1] : vector<16x128xf32> to vector<16xf32>
    %251 = vector.shape_cast %250 : vector<16xf32> to vector<16x1xf32>
    %cst_89 = arith.constant 3.125000e-02 : f32
    %252 = vector.broadcast %cst_89 : f32 to vector<16x1xf32>
    %253 = arith.mulf %251, %252 : vector<16x1xf32>
    %254 = vector.broadcast %253 : vector<16x1xf32> to vector<16x128xf32>
    %255 = arith.subf %249, %254 : vector<16x128xf32>
    %256 = vector.broadcast %9 : vector<1x128xf32> to vector<16x128xf32>
    %257 = arith.mulf %255, %256 : vector<16x128xf32>
    %258 = arith.mulf %257, %257 : vector<16x128xf32>
    %cst_90 = arith.constant dense<0.000000e+00> : vector<16xf32>
    %259 = vector.multi_reduction <add>, %258, %cst_90 [1] : vector<16x128xf32> to vector<16xf32>
    %260 = vector.shape_cast %259 : vector<16xf32> to vector<16x1xf32>
    %cst_91 = arith.constant 3.125000e-02 : f32
    %261 = vector.broadcast %cst_91 : f32 to vector<16x1xf32>
    %262 = arith.mulf %260, %261 : vector<16x1xf32>
    %cst_92 = arith.constant 9.99999974E-6 : f32
    %263 = vector.broadcast %cst_92 : f32 to vector<16x1xf32>
    %264 = arith.addf %262, %263 : vector<16x1xf32>
    %265 = math.rsqrt %264 : vector<16x1xf32>
    %266 = vector.broadcast %265 : vector<16x1xf32> to vector<16x128xf32>
    %267 = arith.mulf %257, %266 : vector<16x128xf32>
    %268 = vector.broadcast %244 : vector<1x128xf32> to vector<16x128xf32>
    %269 = arith.mulf %267, %268 : vector<16x128xf32>
    %270 = vector.broadcast %246 : vector<1x128xf32> to vector<16x128xf32>
    %271 = arith.addf %269, %270 : vector<16x128xf32>
    %272 = arith.truncf %271 : vector<16x128xf32> to vector<16x128xbf16>
    %c0_93 = arith.constant 0 : index
    %c0_94 = arith.constant 0 : index
    %c0_95 = arith.constant 0 : index
    %273 = vector.load %arg23[%c0_93, %c0_94, %c0_95] : memref<1x128x128xbf16, #tpu.memory_space<vmem>>, vector<1x128x128xbf16>
    %274 = vector.shape_cast %273 : vector<1x128x128xbf16> to vector<128x128xbf16>
    %cst_96 = arith.constant dense<0.000000e+00> : vector<16x128xf32>
    %275 = tpu.matmul %272, %274, %cst_96 {dimension_numbers = #tpu.dot_dimension_numbers<[1], [0], [0], [1], [0, 0, 1, 1], [], []>} : vector<16x128xbf16>, vector<128x128xbf16>, vector<16x128xf32> -> vector<16x128xf32>
    %c0_97 = arith.constant 0 : index
    %c0_98 = arith.constant 0 : index
    %c0_99 = arith.constant 0 : index
    %276 = vector.load %arg24[%c0_97, %c0_98, %c0_99] : memref<1x1x128xf32, #tpu.memory_space<vmem>>, vector<1x1x128xf32>
    %277 = vector.shape_cast %276 : vector<1x1x128xf32> to vector<1x128xf32>
    %278 = vector.broadcast %277 : vector<1x128xf32> to vector<16x128xf32>
    %279 = arith.addf %275, %278 : vector<16x128xf32>
    %cst_100 = arith.constant 0.000000e+00 : f32
    %280 = vector.broadcast %cst_100 : f32 to vector<16x128xf32>
    %281 = arith.maximumf %279, %280 : vector<16x128xf32>
    %282 = arith.truncf %281 : vector<16x128xf32> to vector<16x128xbf16>
    %c0_101 = arith.constant 0 : index
    %c0_102 = arith.constant 0 : index
    %c0_103 = arith.constant 0 : index
    %283 = vector.load %arg25[%c0_101, %c0_102, %c0_103] : memref<1x128x128xbf16, #tpu.memory_space<vmem>>, vector<1x128x128xbf16>
    %284 = vector.shape_cast %283 : vector<1x128x128xbf16> to vector<128x128xbf16>
    %cst_104 = arith.constant dense<0.000000e+00> : vector<16x128xf32>
    %285 = tpu.matmul %282, %284, %cst_104 {dimension_numbers = #tpu.dot_dimension_numbers<[1], [0], [0], [1], [0, 0, 1, 1], [], []>} : vector<16x128xbf16>, vector<128x128xbf16>, vector<16x128xf32> -> vector<16x128xf32>
    %c0_105 = arith.constant 0 : index
    %c0_106 = arith.constant 0 : index
    %c0_107 = arith.constant 0 : index
    %286 = vector.load %arg26[%c0_105, %c0_106, %c0_107] : memref<1x1x128xf32, #tpu.memory_space<vmem>>, vector<1x1x128xf32>
    %287 = vector.shape_cast %286 : vector<1x1x128xf32> to vector<1x128xf32>
    %288 = vector.broadcast %287 : vector<1x128xf32> to vector<16x128xf32>
    %289 = arith.addf %285, %288 : vector<16x128xf32>
    %c0_108 = arith.constant 0 : index
    %c0_109 = arith.constant 0 : index
    %c0_110 = arith.constant 0 : index
    %290 = vector.load %arg27[%c0_108, %c0_109, %c0_110] : memref<1x1x128xf32, #tpu.memory_space<vmem>>, vector<1x1x128xf32>
    %291 = vector.shape_cast %290 : vector<1x1x128xf32> to vector<1x128xf32>
    %c0_111 = arith.constant 0 : index
    %c0_112 = arith.constant 0 : index
    %c0_113 = arith.constant 0 : index
    %292 = vector.load %arg28[%c0_111, %c0_112, %c0_113] : memref<1x1x128xf32, #tpu.memory_space<vmem>>, vector<1x1x128xf32>
    %293 = vector.shape_cast %292 : vector<1x1x128xf32> to vector<1x128xf32>
    %cst_114 = arith.constant 1.41421354 : f32
    %294 = vector.broadcast %cst_114 : f32 to vector<16x128xf32>
    %295 = arith.mulf %294, %271 : vector<16x128xf32>
    %296 = arith.addf %295, %289 : vector<16x128xf32>
    %cst_115 = arith.constant dense<0.000000e+00> : vector<16xf32>
    %297 = vector.multi_reduction <add>, %296, %cst_115 [1] : vector<16x128xf32> to vector<16xf32>
    %298 = vector.shape_cast %297 : vector<16xf32> to vector<16x1xf32>
    %cst_116 = arith.constant 3.125000e-02 : f32
    %299 = vector.broadcast %cst_116 : f32 to vector<16x1xf32>
    %300 = arith.mulf %298, %299 : vector<16x1xf32>
    %301 = vector.broadcast %300 : vector<16x1xf32> to vector<16x128xf32>
    %302 = arith.subf %296, %301 : vector<16x128xf32>
    %303 = vector.broadcast %9 : vector<1x128xf32> to vector<16x128xf32>
    %304 = arith.mulf %302, %303 : vector<16x128xf32>
    %305 = arith.mulf %304, %304 : vector<16x128xf32>
    %cst_117 = arith.constant dense<0.000000e+00> : vector<16xf32>
    %306 = vector.multi_reduction <add>, %305, %cst_117 [1] : vector<16x128xf32> to vector<16xf32>
    %307 = vector.shape_cast %306 : vector<16xf32> to vector<16x1xf32>
    %cst_118 = arith.constant 3.125000e-02 : f32
    %308 = vector.broadcast %cst_118 : f32 to vector<16x1xf32>
    %309 = arith.mulf %307, %308 : vector<16x1xf32>
    %cst_119 = arith.constant 9.99999974E-6 : f32
    %310 = vector.broadcast %cst_119 : f32 to vector<16x1xf32>
    %311 = arith.addf %309, %310 : vector<16x1xf32>
    %312 = math.rsqrt %311 : vector<16x1xf32>
    %313 = vector.broadcast %312 : vector<16x1xf32> to vector<16x128xf32>
    %314 = arith.mulf %304, %313 : vector<16x128xf32>
    %315 = vector.broadcast %291 : vector<1x128xf32> to vector<16x128xf32>
    %316 = arith.mulf %314, %315 : vector<16x128xf32>
    %317 = vector.broadcast %293 : vector<1x128xf32> to vector<16x128xf32>
    %318 = arith.addf %316, %317 : vector<16x128xf32>
    %c0_120 = arith.constant 0 : index
    %c0_121 = arith.constant 0 : index
    %319 = vector.load %arg30[%c0_120, %c0_121] : memref<16x128xf32, #tpu.memory_space<vmem>>, vector<16x128xf32>
    tpu.vector_store %arg30[%c0_120, %c0_121], %318 {strides = array<i32>} : memref<16x128xf32, #tpu.memory_space<vmem>>, vector<16x128xf32>,
    %c0_122 = arith.constant 0 : index
    %c0_123 = arith.constant 0 : index
    %320 = vector.load %arg29[%c0_122, %c0_123] : memref<16x128xf32, #tpu.memory_space<vmem>>, vector<16x128xf32>
    tpu.vector_store %arg29[%c0_122, %c0_123], %318 {strides = array<i32>} : memref<16x128xf32, #tpu.memory_space<vmem>>, vector<16x128xf32>,
    return
  }
  func.func @transform_0(%arg0: i32) -> (i32, i32) {
    %c0_i32 = arith.constant 0 : i32
    %c0_i32_0 = arith.constant 0 : i32
    %c0_i32_1 = arith.constant 0 : i32
    return %c0_i32, %c0_i32_0 : i32, i32
  }
  func.func @transform_1(%arg0: i32) -> (i32, i32) {
    %c0_i32 = arith.constant 0 : i32
    %c0_i32_0 = arith.constant 0 : i32
    %c0_i32_1 = arith.constant 0 : i32
    return %c0_i32, %c0_i32_0 : i32, i32
  }
  func.func @transform_2(%arg0: i32) -> (i32, i32) {
    %c0_i32 = arith.constant 0 : i32
    %c0_i32_0 = arith.constant 0 : i32
    %c0_i32_1 = arith.constant 0 : i32
    return %c0_i32, %c0_i32_0 : i32, i32
  }
  func.func @transform_3(%arg0: i32) -> (i32, i32) {
    %c0_i32 = arith.constant 0 : i32
    %c0_i32_0 = arith.constant 0 : i32
    %c0_i32_1 = arith.constant 0 : i32
    return %c0_i32, %c0_i32_0 : i32, i32
  }
  func.func @transform_4(%arg0: i32) -> (i32, i32) {
    %c0_i32 = arith.constant 0 : i32
    %c0_i32_0 = arith.constant 0 : i32
    %c0_i32_1 = arith.constant 0 : i32
    return %c0_i32, %c0_i32_0 : i32, i32
  }
  func.func @transform_5(%arg0: i32) -> (i32, i32) {
    %c0_i32 = arith.constant 0 : i32
    %c0_i32_0 = arith.constant 0 : i32
    %c0_i32_1 = arith.constant 0 : i32
    return %c0_i32, %c0_i32_0 : i32, i32
  }
  func.func @transform_6(%arg0: i32) -> (i32, i32) {
    %c0_i32 = arith.constant 0 : i32
    %c0_i32_0 = arith.constant 0 : i32
    %c0_i32_1 = arith.constant 0 : i32
    return %c0_i32, %c0_i32_0 : i32, i32
  }
  func.func @transform_7(%arg0: i32) -> (i32, i32) {
    %c0_i32 = arith.constant 0 : i32
    %c0_i32_0 = arith.constant 0 : i32
    %c0_i32_1 = arith.constant 0 : i32
    return %c0_i32, %c0_i32_0 : i32, i32
  }
  func.func @transform_8(%arg0: i32) -> (i32, i32, i32) {
    %c0_i32 = arith.constant 0 : i32
    %c0_i32_0 = arith.constant 0 : i32
    %c0_i32_1 = arith.constant 0 : i32
    return %arg0, %c0_i32, %c0_i32_0 : i32, i32, i32
  }
  func.func @transform_9(%arg0: i32) -> (i32, i32, i32) {
    %c0_i32 = arith.constant 0 : i32
    %c0_i32_0 = arith.constant 0 : i32
    %c0_i32_1 = arith.constant 0 : i32
    return %arg0, %c0_i32, %c0_i32_0 : i32, i32, i32
  }
  func.func @transform_10(%arg0: i32) -> (i32, i32, i32) {
    %c0_i32 = arith.constant 0 : i32
    %c0_i32_0 = arith.constant 0 : i32
    %c0_i32_1 = arith.constant 0 : i32
    return %arg0, %c0_i32, %c0_i32_0 : i32, i32, i32
  }
  func.func @transform_11(%arg0: i32) -> (i32, i32, i32) {
    %c0_i32 = arith.constant 0 : i32
    %c0_i32_0 = arith.constant 0 : i32
    %c0_i32_1 = arith.constant 0 : i32
    return %arg0, %c0_i32, %c0_i32_0 : i32, i32, i32
  }
  func.func @transform_12(%arg0: i32) -> (i32, i32, i32) {
    %c0_i32 = arith.constant 0 : i32
    %c0_i32_0 = arith.constant 0 : i32
    %c0_i32_1 = arith.constant 0 : i32
    return %arg0, %c0_i32, %c0_i32_0 : i32, i32, i32
  }
  func.func @transform_13(%arg0: i32) -> (i32, i32, i32) {
    %c0_i32 = arith.constant 0 : i32
    %c0_i32_0 = arith.constant 0 : i32
    %c0_i32_1 = arith.constant 0 : i32
    return %arg0, %c0_i32, %c0_i32_0 : i32, i32, i32
  }
  func.func @transform_14(%arg0: i32) -> (i32, i32, i32) {
    %c0_i32 = arith.constant 0 : i32
    %c0_i32_0 = arith.constant 0 : i32
    %c0_i32_1 = arith.constant 0 : i32
    return %arg0, %c0_i32, %c0_i32_0 : i32, i32, i32
  }
  func.func @transform_15(%arg0: i32) -> (i32, i32, i32) {
    %c0_i32 = arith.constant 0 : i32
    %c0_i32_0 = arith.constant 0 : i32
    %c0_i32_1 = arith.constant 0 : i32
    return %arg0, %c0_i32, %c0_i32_0 : i32, i32, i32
  }
  func.func @transform_16(%arg0: i32) -> (i32, i32, i32) {
    %c0_i32 = arith.constant 0 : i32
    %c0_i32_0 = arith.constant 0 : i32
    %c0_i32_1 = arith.constant 0 : i32
    return %arg0, %c0_i32, %c0_i32_0 : i32, i32, i32
  }
  func.func @transform_17(%arg0: i32) -> (i32, i32, i32) {
    %c0_i32 = arith.constant 0 : i32
    %c0_i32_0 = arith.constant 0 : i32
    %c0_i32_1 = arith.constant 0 : i32
    return %arg0, %c0_i32, %c0_i32_0 : i32, i32, i32
  }
  func.func @transform_18(%arg0: i32) -> (i32, i32, i32) {
    %c0_i32 = arith.constant 0 : i32
    %c0_i32_0 = arith.constant 0 : i32
    %c0_i32_1 = arith.constant 0 : i32
    return %arg0, %c0_i32, %c0_i32_0 : i32, i32, i32
  }
  func.func @transform_19(%arg0: i32) -> (i32, i32, i32) {
    %c0_i32 = arith.constant 0 : i32
    %c0_i32_0 = arith.constant 0 : i32
    %c0_i32_1 = arith.constant 0 : i32
    return %arg0, %c0_i32, %c0_i32_0 : i32, i32, i32
  }
  func.func @transform_20(%arg0: i32) -> (i32, i32, i32) {
    %c0_i32 = arith.constant 0 : i32
    %c0_i32_0 = arith.constant 0 : i32
    %c0_i32_1 = arith.constant 0 : i32
    return %arg0, %c0_i32, %c0_i32_0 : i32, i32, i32
  }
  func.func @transform_21(%arg0: i32) -> (i32, i32, i32) {
    %c0_i32 = arith.constant 0 : i32
    %c0_i32_0 = arith.constant 0 : i32
    %c0_i32_1 = arith.constant 0 : i32
    return %arg0, %c0_i32, %c0_i32_0 : i32, i32, i32
  }
  func.func @transform_22(%arg0: i32) -> (i32, i32, i32) {
    %c0_i32 = arith.constant 0 : i32
    %c0_i32_0 = arith.constant 0 : i32
    %c0_i32_1 = arith.constant 0 : i32
    return %arg0, %c0_i32, %c0_i32_0 : i32, i32, i32
  }
  func.func @transform_23(%arg0: i32) -> (i32, i32, i32) {
    %c0_i32 = arith.constant 0 : i32
    %c0_i32_0 = arith.constant 0 : i32
    %c0_i32_1 = arith.constant 0 : i32
    return %arg0, %c0_i32, %c0_i32_0 : i32, i32, i32
  }
  func.func @transform_24(%arg0: i32) -> (i32, i32, i32) {
    %c0_i32 = arith.constant 0 : i32
    %c0_i32_0 = arith.constant 0 : i32
    %c0_i32_1 = arith.constant 0 : i32
    return %arg0, %c0_i32, %c0_i32_0 : i32, i32, i32
  }
  func.func @transform_25(%arg0: i32) -> (i32, i32, i32) {
    %c0_i32 = arith.constant 0 : i32
    %c0_i32_0 = arith.constant 0 : i32
    %c0_i32_1 = arith.constant 0 : i32
    return %arg0, %c0_i32, %c0_i32_0 : i32, i32, i32
  }
  func.func @transform_26(%arg0: i32) -> (i32, i32, i32) {
    %c0_i32 = arith.constant 0 : i32
    %c0_i32_0 = arith.constant 0 : i32
    %c0_i32_1 = arith.constant 0 : i32
    return %arg0, %c0_i32, %c0_i32_0 : i32, i32, i32
  }
  func.func @transform_27(%arg0: i32) -> (i32, i32, i32) {
    %c0_i32 = arith.constant 0 : i32
    %c0_i32_0 = arith.constant 0 : i32
    %c0_i32_1 = arith.constant 0 : i32
    return %arg0, %c0_i32, %c0_i32_0 : i32, i32, i32
  }
  func.func @transform_28(%arg0: i32) -> (i32, i32) {
    %c0_i32 = arith.constant 0 : i32
    %c0_i32_0 = arith.constant 0 : i32
    %c0_i32_1 = arith.constant 0 : i32
    return %c0_i32, %c0_i32_0 : i32, i32
  }
}

</mosaic_0001>

<llo_original>
// kernel: gnova_decoder_forward.1
$region0: #{gnova_decoder_forward.1}
  #allocation0 [shape = 'u32[]', space=smem, size = 0x4, offset = 0x4, fixed_abs, tag = 'smem constant byte address 0x4 - core index']
  #allocation1 [shape = 'u32[144,128]{1,0:T(1,128)}', space=vmem, size = 0x12000, scoped, tag = 'internal scratch']
  #allocation2 [shape = 'f32[16,128]{1,0:T(8,128)}', space=vmem, size = 0x2000, scoped, tag = 'scratch operand']
  %s0 = inlined_call_operand.vmem [shape: f32[16,128], index: 0, kind: input, shape index: {}]
  %s1 = inlined_call_operand.vmem [shape: bf16[32,128], index: 1, kind: input, shape index: {}]
  %s2 = inlined_call_operand.vmem [shape: f32[16,32], index: 2, kind: input, shape index: {}]
  %s3 = inlined_call_operand.vmem [shape: f32[16,32], index: 3, kind: input, shape index: {}]
  %s4 = inlined_call_operand.vmem [shape: f32[16,32], index: 4, kind: input, shape index: {}]
  %s5 = inlined_call_operand.vmem [shape: f32[32,32], index: 5, kind: input, shape index: {}]
  %s6 = inlined_call_operand.vmem [shape: f32[32,32], index: 6, kind: input, shape index: {}]
  %s7 = inlined_call_operand.vmem [shape: f32[32,32], index: 7, kind: input, shape index: {}]
  %s8 = inlined_call_operand.vmem [shape: bf16[2,128,384], index: 8, kind: input, shape index: {}]
  %s9 = inlined_call_operand.vmem [shape: f32[2,1,384], index: 9, kind: input, shape index: {}]
  %s10 = inlined_call_operand.vmem [shape: bf16[2,128,128], index: 10, kind: input, shape index: {}]
  %s11 = inlined_call_operand.vmem [shape: f32[2,1,128], index: 11, kind: input, shape index: {}]
  %s12 = inlined_call_operand.vmem [shape: f32[2,1,128], index: 12, kind: input, shape index: {}]
  %s13 = inlined_call_operand.vmem [shape: f32[2,1,128], index: 13, kind: input, shape index: {}]
  %s14 = inlined_call_operand.vmem [shape: bf16[2,128,128], index: 14, kind: input, shape index: {}]
  %s15 = inlined_call_operand.vmem [shape: f32[2,1,128], index: 15, kind: input, shape index: {}]
  %s16 = inlined_call_operand.vmem [shape: bf16[2,128,256], index: 16, kind: input, shape index: {}]
  %s17 = inlined_call_operand.vmem [shape: f32[2,1,256], index: 17, kind: input, shape index: {}]
  %s18 = inlined_call_operand.hbm [shape: bf16[2,128,128], index: 18, kind: input, shape index: {}]
  %s19 = inlined_call_operand.vmem [shape: f32[2,1,128], index: 19, kind: input, shape index: {}]
  %s20 = inlined_call_operand.hbm [shape: f32[2,1,128], index: 20, kind: input, shape index: {}]
  %s21 = inlined_call_operand.hbm [shape: f32[2,1,128], index: 21, kind: input, shape index: {}]
  %s22 = inlined_call_operand.hbm [shape: bf16[2,128,128], index: 22, kind: input, shape index: {}]
  %s23 = inlined_call_operand.vmem [shape: f32[2,1,128], index: 23, kind: input, shape index: {}]
  %s24 = inlined_call_operand.hbm [shape: bf16[2,128,128], index: 24, kind: input, shape index: {}]
  %s25 = inlined_call_operand.vmem [shape: f32[2,1,128], index: 25, kind: input, shape index: {}]
  %s26 = inlined_call_operand.hbm [shape: f32[2,1,128], index: 26, kind: input, shape index: {}]
  %s27 = inlined_call_operand.hbm [shape: f32[2,1,128], index: 27, kind: input, shape index: {}]
  %s28 = inlined_call_operand.hbm [shape: f32[16,128], index: 28, kind: output, shape index: {}]
  %s29 = sld [smem:[#allocation0]]
  $region177: #{gnova_decoder_forward.1} parent=0
    _
  %s31 = ssub.s32 1, %s29
  %s32 = scalar_select 0, %s31, %s29
  $region1: #{gnova_decoder_forward.1} parent=0
    #allocation3 [shape = 'u8[65536]{0}', space=vmem, size = 0x10000, scoped, tag = 'input window, operand 18']
    #allocation4 [shape = 's32[2]{0}', space=sflag, size = 0x8, scoped, tag = 'scoped memory for gnova_decoder_forward.1']
    #allocation5 [shape = 's32[2]{0}', space=sflag, size = 0x8, scoped, tag = 'scoped memory for gnova_decoder_forward.1']
    #allocation6 [shape = 'u8[1024]{0}', space=vmem, size = 0x400, scoped, tag = 'input window, operand 20']
    #allocation7 [shape = 's32[2]{0}', space=sflag, size = 0x8, scoped, tag = 'scoped memory for gnova_decoder_forward.1']
    #allocation8 [shape = 'u8[1024]{0}', space=vmem, size = 0x400, scoped, tag = 'input window, operand 21']
    #allocation9 [shape = 'u8[65536]{0}', space=vmem, size = 0x10000, scoped, tag = 'input window, operand 22']
    #allocation10 [shape = 's32[2]{0}', space=sflag, size = 0x8, scoped, tag = 'scoped memory for gnova_decoder_forward.1']
    #allocation11 [shape = 'u8[65536]{0}', space=vmem, size = 0x10000, scoped, tag = 'input window, operand 24']
    #allocation12 [shape = 'u8[1024]{0}', space=vmem, size = 0x400, scoped, tag = 'input window, operand 26']
    #allocation13 [shape = 's32[2]{0}', space=sflag, size = 0x8, scoped, tag = 'scoped memory for gnova_decoder_forward.1']
    #allocation14 [shape = 'u8[1024]{0}', space=vmem, size = 0x400, scoped, tag = 'input window, operand 27']
    #allocation15 [shape = 'u8[8192]{0}', space=vmem, size = 0x2000, scoped, tag = 'output window, operand 0, single buffered']
    %33 = vsyncpa [#allocation4], 0
    %s34 = scalar_lea.sflag [#allocation4], 1
    %35 = vsyncpa %s34, 0
    %36 = vsyncpa [#allocation7], 0
    %s37 = scalar_lea.sflag [#allocation7], 1
    %38 = vsyncpa %s37, 0
    %39 = vsyncpa [#allocation10], 0
    %s40 = scalar_lea.sflag [#allocation10], 1
    %41 = vsyncpa %s40, 0
    %42 = vsyncpa [#allocation13], 0
    %s43 = scalar_lea.sflag [#allocation13], 1
    %44 = vsyncpa %s43, 0
    %45 = vsyncpa [#allocation5], 0
    loop: start=0, step=1, limit=4
    $region2: #{gnova_decoder_forward.1} parent=1 // loop_pre_header
      _
    $region3: #{gnova_decoder_forward.1} parent=1 // loop_header
      %s47 = sphi 0, %s51
      %p48 = scmp.ge.s32.totalorder %s47, 4
      %s55 = sphi 0, %s55
      %s57 = sphi 0, %s55
      %s58 = sphi 0, %s57
      %s72 = sphi 0, %s58
      %s76 = sphi 0, %s76
      %s78 = sphi 0, %s76
      %s79 = sphi 0, %s78
      %s93 = sphi 0, %s79
      %s97 = sphi 0, %s97
      %s99 = sphi 0, %s97
      %s100 = sphi 0, %s99
      %s114 = sphi 0, %s100
      %s118 = sphi 0, %s118
      %s120 = sphi 0, %s118
      %s121 = sphi 0, %s120
      %s135 = sphi 0, %s121
      %s139 = sphi 0, %s139
      %s141 = sphi 0, %s139
      %s142 = sphi 0, %s141
      %s156 = sphi 0, %s142
      %s160 = sphi 0, %s160
      %s162 = sphi 0, %s160
      %s163 = sphi 0, %s162
      %s177 = sphi 0, %s163
      %s181 = sphi 0, %s181
      %s183 = sphi 0, %s181
      %s184 = sphi 0, %s183
      %s198 = sphi 0, %s184
      %s202 = sphi 0, %s202
      %s204 = sphi 0, %s202
      %s205 = sphi 0, %s204
      %s219 = sphi 0, %s205
      %s225 = sphi 0, %s227
      %s228 = sphi 0, %s225
      %s229 = sphi 0, %s228
      %s245 = sphi 0, %s229
      %s251 = sphi 0, %s253
      %s254 = sphi 0, %s251
      %s255 = sphi 0, %s254
      %s271 = sphi 0, %s255
      %s277 = sphi 0, %s279
      %s280 = sphi 0, %s277
      %s281 = sphi 0, %s280
      %s297 = sphi 0, %s281
      %s303 = sphi 0, %s305
      %s306 = sphi 0, %s303
      %s307 = sphi 0, %s306
      %s323 = sphi 0, %s307
      %s329 = sphi 0, %s331
      %s332 = sphi 0, %s329
      %s333 = sphi 0, %s332
      %s349 = sphi 0, %s333
      %s355 = sphi 0, %s357
      %s358 = sphi 0, %s355
      %s359 = sphi 0, %s358
      %s375 = sphi 0, %s359
      %s381 = sphi 0, %s383
      %s384 = sphi 0, %s381
      %s385 = sphi 0, %s384
      %s401 = sphi 0, %s385
      %s407 = sphi 0, %s409
      %s410 = sphi 0, %s407
      %s411 = sphi 0, %s410
      %s427 = sphi 0, %s411
      %s433 = sphi 0, %s435
      %s436 = sphi 0, %s433
      %s437 = sphi 0, %s436
      %s453 = sphi 0, %s437
      %s459 = sphi 0, %s461
      %s462 = sphi 0, %s459
      %s463 = sphi 0, %s462
      %s479 = sphi 0, %s463
      %s485 = sphi 0, %s487
      %s488 = sphi 0, %s485
      %s489 = sphi 0, %s488
      %s505 = sphi 0, %s489
      %s511 = sphi 0, %s513
      %s514 = sphi 0, %s511
      %s515 = sphi 0, %s514
      %s531 = sphi 0, %s515
      %s537 = sphi 0, %s539
      %s540 = sphi 0, %s537
      %s541 = sphi 0, %s540
      %s557 = sphi 0, %s541
      %s563 = sphi 0, %s565
      %s566 = sphi 0, %s563
      %s567 = sphi 0, %s566
      %s583 = sphi 0, %s567
      %s589 = sphi 0, %s591
      %s592 = sphi 0, %s589
      %s593 = sphi 0, %s592
      %s609 = sphi 0, %s593
      %s615 = sphi 0, %s617
      %s618 = sphi 0, %s615
      %s619 = sphi 0, %s618
      %s635 = sphi 0, %s619
      %s641 = sphi 0, %s643
      %s644 = sphi 0, %s641
      %s645 = sphi 0, %s644
      %s661 = sphi 0, %s645
      %s667 = sphi 0, %s669
      %s670 = sphi 0, %s667
      %s671 = sphi 0, %s670
      %s687 = sphi 0, %s671
      %s693 = sphi 0, %s695
      %s696 = sphi 0, %s693
      %s697 = sphi 0, %s696
      %s713 = sphi 0, %s697
      %s719 = sphi 0, %s721
      %s722 = sphi 0, %s719
      %s723 = sphi 0, %s722
      %s739 = sphi 0, %s723
      %s743 = sphi 0, %s743
      %s745 = sphi 0, %s743
      %s746 = sphi 0, %s745
      %s760 = sphi 0, %s746
    $region4: #{gnova_decoder_forward.1} parent=1 // loop_header_branch
      %50 = sbr.rel (%p48) target = $region8
    $region5: #{gnova_decoder_forward.1} parent=1 // loop_body
      %s52 = ssub.s32 %s47, 1
      %s53 = ssub.s32 %s47, 2
      %s54 = sadd.s32 %s47, 1
      %s56 = sadd.s32 %s55, 1
      %p59 = scmp.eq.s32.totalorder %s47, 1
      %p60 = scmp.ne.s32.totalorder %s55, %s57
      %p61 = scmp.eq.s32.totalorder %s47, 0
      %p62 = por %p60, %p61
      %p63 = scmp.ne.s32.totalorder %s55, %s57
      %p64 = scmp.eq.s32.totalorder %s52, 1
      %p65 = por %p63, %p64
      %p66 = scmp.ne.s32.totalorder %s57, %s58
      %p67 = scmp.eq.s32.totalorder %s52, 0
      %p68 = por %p66, %p67
      %p69 = scmp.ne.s32.totalorder %s57, %s58
      %p70 = scmp.eq.s32.totalorder %s53, 1
      %p71 = por %p69, %p70
      %p73 = scmp.ne.s32.totalorder %s58, %s72
      %p74 = scmp.eq.s32.totalorder %s53, 0
      %p75 = por %p73, %p74
      %s77 = sadd.s32 %s76, 1
      %p80 = scmp.eq.s32.totalorder %s47, 1
      %p81 = scmp.ne.s32.totalorder %s76, %s78
      %p82 = scmp.eq.s32.totalorder %s47, 0
      %p83 = por %p81, %p82
      %p84 = scmp.ne.s32.totalorder %s76, %s78
      %p85 = scmp.eq.s32.totalorder %s52, 1
      %p86 = por %p84, %p85
      %p87 = scmp.ne.s32.totalorder %s78, %s79
      %p88 = scmp.eq.s32.totalorder %s52, 0
      %p89 = por %p87, %p88
      %p90 = scmp.ne.s32.totalorder %s78, %s79
      %p91 = scmp.eq.s32.totalorder %s53, 1
      %p92 = por %p90, %p91
      %p94 = scmp.ne.s32.totalorder %s79, %s93
      %p95 = scmp.eq.s32.totalorder %s53, 0
      %p96 = por %p94, %p95
      %s98 = sadd.s32 %s97, 1
      %p101 = scmp.eq.s32.totalorder %s47, 1
      %p102 = scmp.ne.s32.totalorder %s97, %s99
      %p103 = scmp.eq.s32.totalorder %s47, 0
      %p104 = por %p102, %p103
      %p105 = scmp.ne.s32.totalorder %s97, %s99
      %p106 = scmp.eq.s32.totalorder %s52, 1
      %p107 = por %p105, %p106
      %p108 = scmp.ne.s32.totalorder %s99, %s100
      %p109 = scmp.eq.s32.totalorder %s52, 0
      %p110 = por %p108, %p109
      %p111 = scmp.ne.s32.totalorder %s99, %s100
      %p112 = scmp.eq.s32.totalorder %s53, 1
      %p113 = por %p111, %p112
      %p115 = scmp.ne.s32.totalorder %s100, %s114
      %p116 = scmp.eq.s32.totalorder %s53, 0
      %p117 = por %p115, %p116
      %s119 = sadd.s32 %s118, 1
      %p122 = scmp.eq.s32.totalorder %s47, 1
      %p123 = scmp.ne.s32.totalorder %s118, %s120
      %p124 = scmp.eq.s32.totalorder %s47, 0
      %p125 = por %p123, %p124
      %p126 = scmp.ne.s32.totalorder %s118, %s120
      %p127 = scmp.eq.s32.totalorder %s52, 1
      %p128 = por %p126, %p127
      %p129 = scmp.ne.s32.totalorder %s120, %s121
      %p130 = scmp.eq.s32.totalorder %s52, 0
      %p131 = por %p129, %p130
      %p132 = scmp.ne.s32.totalorder %s120, %s121
      %p133 = scmp.eq.s32.totalorder %s53, 1
      %p134 = por %p132, %p133
      %p136 = scmp.ne.s32.totalorder %s121, %s135
      %p137 = scmp.eq.s32.totalorder %s53, 0
      %p138 = por %p136, %p137
      %s140 = sadd.s32 %s139, 1
      %p143 = scmp.eq.s32.totalorder %s47, 1
      %p144 = scmp.ne.s32.totalorder %s139, %s141
      %p145 = scmp.eq.s32.totalorder %s47, 0
      %p146 = por %p144, %p145
      %p147 = scmp.ne.s32.totalorder %s139, %s141
      %p148 = scmp.eq.s32.totalorder %s52, 1
      %p149 = por %p147, %p148
      %p150 = scmp.ne.s32.totalorder %s141, %s142
      %p151 = scmp.eq.s32.totalorder %s52, 0
      %p152 = por %p150, %p151
      %p153 = scmp.ne.s32.totalorder %s141, %s142
      %p154 = scmp.eq.s32.totalorder %s53, 1
      %p155 = por %p153, %p154
      %p157 = scmp.ne.s32.totalorder %s142, %s156
      %p158 = scmp.eq.s32.totalorder %s53, 0
      %p159 = por %p157, %p158
      %s161 = sadd.s32 %s160, 1
      %p164 = scmp.eq.s32.totalorder %s47, 1
      %p165 = scmp.ne.s32.totalorder %s160, %s162
      %p166 = scmp.eq.s32.totalorder %s47, 0
      %p167 = por %p165, %p166
      %p168 = scmp.ne.s32.totalorder %s160, %s162
      %p169 = scmp.eq.s32.totalorder %s52, 1
      %p170 = por %p168, %p169
      %p171 = scmp.ne.s32.totalorder %s162, %s163
      %p172 = scmp.eq.s32.totalorder %s52, 0
      %p173 = por %p171, %p172
      %p174 = scmp.ne.s32.totalorder %s162, %s163
      %p175 = scmp.eq.s32.totalorder %s53, 1
      %p176 = por %p174, %p175
      %p178 = scmp.ne.s32.totalorder %s163, %s177
      %p179 = scmp.eq.s32.totalorder %s53, 0
      %p180 = por %p178, %p179
      %s182 = sadd.s32 %s181, 1
      %p185 = scmp.eq.s32.totalorder %s47, 1
      %p186 = scmp.ne.s32.totalorder %s181, %s183
      %p187 = scmp.eq.s32.totalorder %s47, 0
      %p188 = por %p186, %p187
      %p189 = scmp.ne.s32.totalorder %s181, %s183
      %p190 = scmp.eq.s32.totalorder %s52, 1
      %p191 = por %p189, %p190
      %p192 = scmp.ne.s32.totalorder %s183, %s184
      %p193 = scmp.eq.s32.totalorder %s52, 0
      %p194 = por %p192, %p193
      %p195 = scmp.ne.s32.totalorder %s183, %s184
      %p196 = scmp.eq.s32.totalorder %s53, 1
      %p197 = por %p195, %p196
      %p199 = scmp.ne.s32.totalorder %s184, %s198
      %p200 = scmp.eq.s32.totalorder %s53, 0
      %p201 = por %p199, %p200
      %s203 = sadd.s32 %s202, 1
      %p206 = scmp.eq.s32.totalorder %s47, 1
      %p207 = scmp.ne.s32.totalorder %s202, %s204
      %p208 = scmp.eq.s32.totalorder %s47, 0
      %p209 = por %p207, %p208
      %p210 = scmp.ne.s32.totalorder %s202, %s204
      %p211 = scmp.eq.s32.totalorder %s52, 1
      %p212 = por %p210, %p211
      %p213 = scmp.ne.s32.totalorder %s204, %s205
      %p214 = scmp.eq.s32.totalorder %s52, 0
      %p215 = por %p213, %p214
      %p216 = scmp.ne.s32.totalorder %s204, %s205
      %p217 = scmp.eq.s32.totalorder %s53, 1
      %p218 = por %p216, %p217
      %p220 = scmp.ne.s32.totalorder %s205, %s219
      %p221 = scmp.eq.s32.totalorder %s53, 0
      %p222 = por %p220, %p221
      %s223 = ssub.s32 %s47, %s54
      %p224 = scmp.eq.s32.totalorder %s223, 0
      %s226 = sadd.s32 %s225, 1
      %s227 = scalar_select %p224, %s225, %s226
      %p230 = pneg %p224
      %p231 = scmp.eq.s32.totalorder %s47, 1
      %p232 = por %p230, %p231
      %p233 = scmp.ne.s32.totalorder %s225, %s228
      %p234 = scmp.eq.s32.totalorder %s47, 0
      %p235 = por %p233, %p234
      %p236 = scmp.ne.s32.totalorder %s225, %s228
      %p237 = scmp.eq.s32.totalorder %s52, 1
      %p238 = por %p236, %p237
      %p239 = scmp.ne.s32.totalorder %s228, %s229
      %p240 = scmp.eq.s32.totalorder %s52, 0
      %p241 = por %p239, %p240
      %p242 = scmp.ne.s32.totalorder %s228, %s229
      %p243 = scmp.eq.s32.totalorder %s53, 1
      %p244 = por %p242, %p243
      %p246 = scmp.ne.s32.totalorder %s229, %s245
      %p247 = scmp.eq.s32.totalorder %s53, 0
      %p248 = por %p246, %p247
      %s249 = ssub.s32 %s47, %s54
      %p250 = scmp.eq.s32.totalorder %s249, 0
      %s252 = sadd.s32 %s251, 1
      %s253 = scalar_select %p250, %s251, %s252
      %p256 = pneg %p250
      %p257 = scmp.eq.s32.totalorder %s47, 1
      %p258 = por %p256, %p257
      %p259 = scmp.ne.s32.totalorder %s251, %s254
      %p260 = scmp.eq.s32.totalorder %s47, 0
      %p261 = por %p259, %p260
      %p262 = scmp.ne.s32.totalorder %s251, %s254
      %p263 = scmp.eq.s32.totalorder %s52, 1
      %p264 = por %p262, %p263
      %p265 = scmp.ne.s32.totalorder %s254, %s255
      %p266 = scmp.eq.s32.totalorder %s52, 0
      %p267 = por %p265, %p266
      %p268 = scmp.ne.s32.totalorder %s254, %s255
      %p269 = scmp.eq.s32.totalorder %s53, 1
      %p270 = por %p268, %p269
      %p272 = scmp.ne.s32.totalorder %s255, %s271
      %p273 = scmp.eq.s32.totalorder %s53, 0
      %p274 = por %p272, %p273
      %s275 = ssub.s32 %s47, %s54
      %p276 = scmp.eq.s32.totalorder %s275, 0
      %s278 = sadd.s32 %s277, 1
      %s279 = scalar_select %p276, %s277, %s278
      %p282 = pneg %p276
      %p283 = scmp.eq.s32.totalorder %s47, 1
      %p284 = por %p282, %p283
      %p285 = scmp.ne.s32.totalorder %s277, %s280
      %p286 = scmp.eq.s32.totalorder %s47, 0
      %p287 = por %p285, %p286
      %p288 = scmp.ne.s32.totalorder %s277, %s280
      %p289 = scmp.eq.s32.totalorder %s52, 1
      %p290 = por %p288, %p289
      %p291 = scmp.ne.s32.totalorder %s280, %s281
      %p292 = scmp.eq.s32.totalorder %s52, 0
      %p293 = por %p291, %p292
      %p294 = scmp.ne.s32.totalorder %s280, %s281
      %p295 = scmp.eq.s32.totalorder %s53, 1
      %p296 = por %p294, %p295
      %p298 = scmp.ne.s32.totalorder %s281, %s297
      %p299 = scmp.eq.s32.totalorder %s53, 0
      %p300 = por %p298, %p299
      %s301 = ssub.s32 %s47, %s54
      %p302 = scmp.eq.s32.totalorder %s301, 0
      %s304 = sadd.s32 %s303, 1
      %s305 = scalar_select %p302, %s303, %s304
      %p308 = pneg %p302
      %p309 = scmp.eq.s32.totalorder %s47, 1
      %p310 = por %p308, %p309
      %p311 = scmp.ne.s32.totalorder %s303, %s306
      %p312 = scmp.eq.s32.totalorder %s47, 0
      %p313 = por %p311, %p312
      %p314 = scmp.ne.s32.totalorder %s303, %s306
      %p315 = scmp.eq.s32.totalorder %s52, 1
      %p316 = por %p314, %p315
      %p317 = scmp.ne.s32.totalorder %s306, %s307
      %p318 = scmp.eq.s32.totalorder %s52, 0
      %p319 = por %p317, %p318
      %p320 = scmp.ne.s32.totalorder %s306, %s307
      %p321 = scmp.eq.s32.totalorder %s53, 1
      %p322 = por %p320, %p321
      %p324 = scmp.ne.s32.totalorder %s307, %s323
      %p325 = scmp.eq.s32.totalorder %s53, 0
      %p326 = por %p324, %p325
      %s327 = ssub.s32 %s47, %s54
      %p328 = scmp.eq.s32.totalorder %s327, 0
      %s330 = sadd.s32 %s329, 1
      %s331 = scalar_select %p328, %s329, %s330
      %p334 = pneg %p328
      %p335 = scmp.eq.s32.totalorder %s47, 1
      %p336 = por %p334, %p335
      %p337 = scmp.ne.s32.totalorder %s329, %s332
      %p338 = scmp.eq.s32.totalorder %s47, 0
      %p339 = por %p337, %p338
      %p340 = scmp.ne.s32.totalorder %s329, %s332
      %p341 = scmp.eq.s32.totalorder %s52, 1
      %p342 = por %p340, %p341
      %p343 = scmp.ne.s32.totalorder %s332, %s333
      %p344 = scmp.eq.s32.totalorder %s52, 0
      %p345 = por %p343, %p344
      %p346 = scmp.ne.s32.totalorder %s332, %s333
      %p347 = scmp.eq.s32.totalorder %s53, 1
      %p348 = por %p346, %p347
      %p350 = scmp.ne.s32.totalorder %s333, %s349
      %p351 = scmp.eq.s32.totalorder %s53, 0
      %p352 = por %p350, %p351
      %s353 = ssub.s32 %s47, %s54
      %p354 = scmp.eq.s32.totalorder %s353, 0
      %s356 = sadd.s32 %s355, 1
      %s357 = scalar_select %p354, %s355, %s356
      %p360 = pneg %p354
      %p361 = scmp.eq.s32.totalorder %s47, 1
      %p362 = por %p360, %p361
      %p363 = scmp.ne.s32.totalorder %s355, %s358
      %p364 = scmp.eq.s32.totalorder %s47, 0
      %p365 = por %p363, %p364
      %p366 = scmp.ne.s32.totalorder %s355, %s358
      %p367 = scmp.eq.s32.totalorder %s52, 1
      %p368 = por %p366, %p367
      %p369 = scmp.ne.s32.totalorder %s358, %s359
      %p370 = scmp.eq.s32.totalorder %s52, 0
      %p371 = por %p369, %p370
      %p372 = scmp.ne.s32.totalorder %s358, %s359
      %p373 = scmp.eq.s32.totalorder %s53, 1
      %p374 = por %p372, %p373
      %p376 = scmp.ne.s32.totalorder %s359, %s375
      %p377 = scmp.eq.s32.totalorder %s53, 0
      %p378 = por %p376, %p377
      %s379 = ssub.s32 %s47, %s54
      %p380 = scmp.eq.s32.totalorder %s379, 0
      %s382 = sadd.s32 %s381, 1
      %s383 = scalar_select %p380, %s381, %s382
      %p386 = pneg %p380
      %p387 = scmp.eq.s32.totalorder %s47, 1
      %p388 = por %p386, %p387
      %p389 = scmp.ne.s32.totalorder %s381, %s384
      %p390 = scmp.eq.s32.totalorder %s47, 0
      %p391 = por %p389, %p390
      %p392 = scmp.ne.s32.totalorder %s381, %s384
      %p393 = scmp.eq.s32.totalorder %s52, 1
      %p394 = por %p392, %p393
      %p395 = scmp.ne.s32.totalorder %s384, %s385
      %p396 = scmp.eq.s32.totalorder %s52, 0
      %p397 = por %p395, %p396
      %p398 = scmp.ne.s32.totalorder %s384, %s385
      %p399 = scmp.eq.s32.totalorder %s53, 1
      %p400 = por %p398, %p399
      %p402 = scmp.ne.s32.totalorder %s385, %s401
      %p403 = scmp.eq.s32.totalorder %s53, 0
      %p404 = por %p402, %p403
      %s405 = ssub.s32 %s47, %s54
      %p406 = scmp.eq.s32.totalorder %s405, 0
      %s408 = sadd.s32 %s407, 1
      %s409 = scalar_select %p406, %s407, %s408
      %p412 = pneg %p406
      %p413 = scmp.eq.s32.totalorder %s47, 1
      %p414 = por %p412, %p413
      %p415 = scmp.ne.s32.totalorder %s407, %s410
      %p416 = scmp.eq.s32.totalorder %s47, 0
      %p417 = por %p415, %p416
      %p418 = scmp.ne.s32.totalorder %s407, %s410
      %p419 = scmp.eq.s32.totalorder %s52, 1
      %p420 = por %p418, %p419
      %p421 = scmp.ne.s32.totalorder %s410, %s411
      %p422 = scmp.eq.s32.totalorder %s52, 0
      %p423 = por %p421, %p422
      %p424 = scmp.ne.s32.totalorder %s410, %s411
      %p425 = scmp.eq.s32.totalorder %s53, 1
      %p426 = por %p424, %p425
      %p428 = scmp.ne.s32.totalorder %s411, %s427
      %p429 = scmp.eq.s32.totalorder %s53, 0
      %p430 = por %p428, %p429
      %s431 = ssub.s32 %s47, %s54
      %p432 = scmp.eq.s32.totalorder %s431, 0
      %s434 = sadd.s32 %s433, 1
      %s435 = scalar_select %p432, %s433, %s434
      %p438 = pneg %p432
      %p439 = scmp.eq.s32.totalorder %s47, 1
      %p440 = por %p438, %p439
      %p441 = scmp.ne.s32.totalorder %s433, %s436
      %p442 = scmp.eq.s32.totalorder %s47, 0
      %p443 = por %p441, %p442
      %p444 = scmp.ne.s32.totalorder %s433, %s436
      %p445 = scmp.eq.s32.totalorder %s52, 1
      %p446 = por %p444, %p445
      %p447 = scmp.ne.s32.totalorder %s436, %s437
      %p448 = scmp.eq.s32.totalorder %s52, 0
      %p449 = por %p447, %p448
      %p450 = scmp.ne.s32.totalorder %s436, %s437
      %p451 = scmp.eq.s32.totalorder %s53, 1
      %p452 = por %p450, %p451
      %p454 = scmp.ne.s32.totalorder %s437, %s453
      %p455 = scmp.eq.s32.totalorder %s53, 0
      %p456 = por %p454, %p455
      %s457 = ssub.s32 %s47, %s54
      %p458 = scmp.eq.s32.totalorder %s457, 0
      %s460 = sadd.s32 %s459, 1
      %s461 = scalar_select %p458, %s459, %s460
      %p464 = pneg %p458
      %p465 = scmp.eq.s32.totalorder %s47, 1
      %p466 = por %p464, %p465
      %p467 = scmp.ne.s32.totalorder %s459, %s462
      %p468 = scmp.eq.s32.totalorder %s47, 0
      %p469 = por %p467, %p468
      %p470 = scmp.ne.s32.totalorder %s459, %s462
      %p471 = scmp.eq.s32.totalorder %s52, 1
      %p472 = por %p470, %p471
      %p473 = scmp.ne.s32.totalorder %s462, %s463
      %p474 = scmp.eq.s32.totalorder %s52, 0
      %p475 = por %p473, %p474
      %p476 = scmp.ne.s32.totalorder %s462, %s463
      %p477 = scmp.eq.s32.totalorder %s53, 1
      %p478 = por %p476, %p477
      %p480 = scmp.ne.s32.totalorder %s463, %s479
      %p481 = scmp.eq.s32.totalorder %s53, 0
      %p482 = por %p480, %p481
      %s483 = ssub.s32 %s47, %s54
      %p484 = scmp.eq.s32.totalorder %s483, 0
      %s486 = sadd.s32 %s485, 1
      %s487 = scalar_select %p484, %s485, %s486
      %p490 = pneg %p484
      %p491 = scmp.eq.s32.totalorder %s47, 1
      %p492 = por %p490, %p491
      %p493 = scmp.ne.s32.totalorder %s485, %s488
      %p494 = scmp.eq.s32.totalorder %s47, 0
      %p495 = por %p493, %p494
      %p496 = scmp.ne.s32.totalorder %s485, %s488
      %p497 = scmp.eq.s32.totalorder %s52, 1
      %p498 = por %p496, %p497
      %p499 = scmp.ne.s32.totalorder %s488, %s489
      %p500 = scmp.eq.s32.totalorder %s52, 0
      %p501 = por %p499, %p500
      %p502 = scmp.ne.s32.totalorder %s488, %s489
      %p503 = scmp.eq.s32.totalorder %s53, 1
      %p504 = por %p502, %p503
      %p506 = scmp.ne.s32.totalorder %s489, %s505
      %p507 = scmp.eq.s32.totalorder %s53, 0
      %p508 = por %p506, %p507
      %s509 = ssub.s32 %s47, %s54
      %p510 = scmp.eq.s32.totalorder %s509, 0
      %s512 = sadd.s32 %s511, 1
      %s513 = scalar_select %p510, %s511, %s512
      %p516 = pneg %p510
      %p517 = scmp.eq.s32.totalorder %s47, 1
      %p518 = por %p516, %p517
      %p519 = scmp.ne.s32.totalorder %s511, %s514
      %p520 = scmp.eq.s32.totalorder %s47, 0
      %p521 = por %p519, %p520
      %p522 = scmp.ne.s32.totalorder %s511, %s514
      %p523 = scmp.eq.s32.totalorder %s52, 1
      %p524 = por %p522, %p523
      %p525 = scmp.ne.s32.totalorder %s514, %s515
      %p526 = scmp.eq.s32.totalorder %s52, 0
      %p527 = por %p525, %p526
      %p528 = scmp.ne.s32.totalorder %s514, %s515
      %p529 = scmp.eq.s32.totalorder %s53, 1
      %p530 = por %p528, %p529
      %p532 = scmp.ne.s32.totalorder %s515, %s531
      %p533 = scmp.eq.s32.totalorder %s53, 0
      %p534 = por %p532, %p533
      %s535 = ssub.s32 %s47, %s54
      %p536 = scmp.eq.s32.totalorder %s535, 0
      %s538 = sadd.s32 %s537, 1
      %s539 = scalar_select %p536, %s537, %s538
      %p542 = pneg %p536
      %p543 = scmp.eq.s32.totalorder %s47, 1
      %p544 = por %p542, %p543
      %p545 = scmp.ne.s32.totalorder %s537, %s540
      %p546 = scmp.eq.s32.totalorder %s47, 0
      %p547 = por %p545, %p546
      %p548 = scmp.ne.s32.totalorder %s537, %s540
      %p549 = scmp.eq.s32.totalorder %s52, 1
      %p550 = por %p548, %p549
      %p551 = scmp.ne.s32.totalorder %s540, %s541
      %p552 = scmp.eq.s32.totalorder %s52, 0
      %p553 = por %p551, %p552
      %p554 = scmp.ne.s32.totalorder %s540, %s541
      %p555 = scmp.eq.s32.totalorder %s53, 1
      %p556 = por %p554, %p555
      %p558 = scmp.ne.s32.totalorder %s541, %s557
      %p559 = scmp.eq.s32.totalorder %s53, 0
      %p560 = por %p558, %p559
      %s561 = ssub.s32 %s47, %s54
      %p562 = scmp.eq.s32.totalorder %s561, 0
      %s564 = sadd.s32 %s563, 1
      %s565 = scalar_select %p562, %s563, %s564
      %p568 = pneg %p562
      %p569 = scmp.eq.s32.totalorder %s47, 1
      %p570 = por %p568, %p569
      %p571 = scmp.ne.s32.totalorder %s563, %s566
      %p572 = scmp.eq.s32.totalorder %s47, 0
      %p573 = por %p571, %p572
      %p574 = scmp.ne.s32.totalorder %s563, %s566
      %p575 = scmp.eq.s32.totalorder %s52, 1
      %p576 = por %p574, %p575
      %p577 = scmp.ne.s32.totalorder %s566, %s567
      %p578 = scmp.eq.s32.totalorder %s52, 0
      %p579 = por %p577, %p578
      %p580 = scmp.ne.s32.totalorder %s566, %s567
      %p581 = scmp.eq.s32.totalorder %s53, 1
      %p582 = por %p580, %p581
      %p584 = scmp.ne.s32.totalorder %s567, %s583
      %p585 = scmp.eq.s32.totalorder %s53, 0
      %p586 = por %p584, %p585
      %s587 = ssub.s32 %s47, %s54
      %p588 = scmp.eq.s32.totalorder %s587, 0
      %s590 = sadd.s32 %s589, 1
      %s591 = scalar_select %p588, %s589, %s590
      %p594 = pneg %p588
      %p595 = scmp.eq.s32.totalorder %s47, 1
      %p596 = por %p594, %p595
      %p597 = scmp.ne.s32.totalorder %s589, %s592
      %p598 = scmp.eq.s32.totalorder %s47, 0
      %p599 = por %p597, %p598
      %p600 = scmp.ne.s32.totalorder %s589, %s592
      %p601 = scmp.eq.s32.totalorder %s52, 1
      %p602 = por %p600, %p601
      %p603 = scmp.ne.s32.totalorder %s592, %s593
      %p604 = scmp.eq.s32.totalorder %s52, 0
      %p605 = por %p603, %p604
      %p606 = scmp.ne.s32.totalorder %s592, %s593
      %p607 = scmp.eq.s32.totalorder %s53, 1
      %p608 = por %p606, %p607
      %p610 = scmp.ne.s32.totalorder %s593, %s609
      %p611 = scmp.eq.s32.totalorder %s53, 0
      %p612 = por %p610, %p611
      %s613 = ssub.s32 %s47, %s54
      %p614 = scmp.eq.s32.totalorder %s613, 0
      %s616 = sadd.s32 %s615, 1
      %s617 = scalar_select %p614, %s615, %s616
      %p620 = pneg %p614
      %p621 = scmp.eq.s32.totalorder %s47, 1
      %p622 = por %p620, %p621
      %p623 = scmp.ne.s32.totalorder %s615, %s618
      %p624 = scmp.eq.s32.totalorder %s47, 0
      %p625 = por %p623, %p624
      %p626 = scmp.ne.s32.totalorder %s615, %s618
      %p627 = scmp.eq.s32.totalorder %s52, 1
      %p628 = por %p626, %p627
      %p629 = scmp.ne.s32.totalorder %s618, %s619
      %p630 = scmp.eq.s32.totalorder %s52, 0
      %p631 = por %p629, %p630
      %p632 = scmp.ne.s32.totalorder %s618, %s619
      %p633 = scmp.eq.s32.totalorder %s53, 1
      %p634 = por %p632, %p633
      %p636 = scmp.ne.s32.totalorder %s619, %s635
      %p637 = scmp.eq.s32.totalorder %s53, 0
      %p638 = por %p636, %p637
      %s639 = ssub.s32 %s47, %s54
      %p640 = scmp.eq.s32.totalorder %s639, 0
      %s642 = sadd.s32 %s641, 1
      %s643 = scalar_select %p640, %s641, %s642
      %p646 = pneg %p640
      %p647 = scmp.eq.s32.totalorder %s47, 1
      %p648 = por %p646, %p647
      %p649 = scmp.ne.s32.totalorder %s641, %s644
      %p650 = scmp.eq.s32.totalorder %s47, 0
      %p651 = por %p649, %p650
      %p652 = scmp.ne.s32.totalorder %s641, %s644
      %p653 = scmp.eq.s32.totalorder %s52, 1
      %p654 = por %p652, %p653
      %p655 = scmp.ne.s32.totalorder %s644, %s645
      %p656 = scmp.eq.s32.totalorder %s52, 0
      %p657 = por %p655, %p656
      %p658 = scmp.ne.s32.totalorder %s644, %s645
      %p659 = scmp.eq.s32.totalorder %s53, 1
      %p660 = por %p658, %p659
      %p662 = scmp.ne.s32.totalorder %s645, %s661
      %p663 = scmp.eq.s32.totalorder %s53, 0
      %p664 = por %p662, %p663
      %s665 = ssub.s32 %s47, %s54
      %p666 = scmp.eq.s32.totalorder %s665, 0
      %s668 = sadd.s32 %s667, 1
      %s669 = scalar_select %p666, %s667, %s668
      %p672 = pneg %p666
      %p673 = scmp.eq.s32.totalorder %s47, 1
      %p674 = por %p672, %p673
      %p675 = scmp.ne.s32.totalorder %s667, %s670
      %p676 = scmp.eq.s32.totalorder %s47, 0
      %p677 = por %p675, %p676
      %p678 = scmp.ne.s32.totalorder %s667, %s670
      %p679 = scmp.eq.s32.totalorder %s52, 1
      %p680 = por %p678, %p679
      %p681 = scmp.ne.s32.totalorder %s670, %s671
      %p682 = scmp.eq.s32.totalorder %s52, 0
      %p683 = por %p681, %p682
      %p684 = scmp.ne.s32.totalorder %s670, %s671
      %p685 = scmp.eq.s32.totalorder %s53, 1
      %p686 = por %p684, %p685
      %p688 = scmp.ne.s32.totalorder %s671, %s687
      %p689 = scmp.eq.s32.totalorder %s53, 0
      %p690 = por %p688, %p689
      %s691 = ssub.s32 %s47, %s54
      %p692 = scmp.eq.s32.totalorder %s691, 0
      %s694 = sadd.s32 %s693, 1
      %s695 = scalar_select %p692, %s693, %s694
      %p698 = pneg %p692
      %p699 = scmp.eq.s32.totalorder %s47, 1
      %p700 = por %p698, %p699
      %p701 = scmp.ne.s32.totalorder %s693, %s696
      %p702 = scmp.eq.s32.totalorder %s47, 0
      %p703 = por %p701, %p702
      %p704 = scmp.ne.s32.totalorder %s693, %s696
      %p705 = scmp.eq.s32.totalorder %s52, 1
      %p706 = por %p704, %p705
      %p707 = scmp.ne.s32.totalorder %s696, %s697
      %p708 = scmp.eq.s32.totalorder %s52, 0
      %p709 = por %p707, %p708
      %p710 = scmp.ne.s32.totalorder %s696, %s697
      %p711 = scmp.eq.s32.totalorder %s53, 1
      %p712 = por %p710, %p711
      %p714 = scmp.ne.s32.totalorder %s697, %s713
      %p715 = scmp.eq.s32.totalorder %s53, 0
      %p716 = por %p714, %p715
      %s717 = ssub.s32 %s47, %s54
      %p718 = scmp.eq.s32.totalorder %s717, 0
      %s720 = sadd.s32 %s719, 1
      %s721 = scalar_select %p718, %s719, %s720
      %p724 = pneg %p718
      %p725 = scmp.eq.s32.totalorder %s47, 1
      %p726 = por %p724, %p725
      %p727 = scmp.ne.s32.totalorder %s719, %s722
      %p728 = scmp.eq.s32.totalorder %s47, 0
      %p729 = por %p727, %p728
      %p730 = scmp.ne.s32.totalorder %s719, %s722
      %p731 = scmp.eq.s32.totalorder %s52, 1
      %p732 = por %p730, %p731
      %p733 = scmp.ne.s32.totalorder %s722, %s723
      %p734 = scmp.eq.s32.totalorder %s52, 0
      %p735 = por %p733, %p734
      %p736 = scmp.ne.s32.totalorder %s722, %s723
      %p737 = scmp.eq.s32.totalorder %s53, 1
      %p738 = por %p736, %p737
      %p740 = scmp.ne.s32.totalorder %s723, %s739
      %p741 = scmp.eq.s32.totalorder %s53, 0
      %p742 = por %p740, %p741
      %s744 = sadd.s32 %s743, 1
      %p747 = scmp.eq.s32.totalorder %s47, 1
      %p748 = scmp.ne.s32.totalorder %s743, %s745
      %p749 = scmp.eq.s32.totalorder %s47, 0
      %p750 = por %p748, %p749
      %p751 = scmp.ne.s32.totalorder %s743, %s745
      %p752 = scmp.eq.s32.totalorder %s52, 1
      %p753 = por %p751, %p752
      %p754 = scmp.ne.s32.totalorder %s745, %s746
      %p755 = scmp.eq.s32.totalorder %s52, 0
      %p756 = por %p754, %p755
      %p757 = scmp.ne.s32.totalorder %s745, %s746
      %p758 = scmp.eq.s32.totalorder %s53, 1
      %p759 = por %p757, %p758
      %p761 = scmp.ne.s32.totalorder %s746, %s760
      %p762 = scmp.eq.s32.totalorder %s53, 0
      %p763 = por %p761, %p762
      %p764 = scmp.le.s32.totalorder 1, %s47
      %p765 = scmp.lt.s32.totalorder %s47, 3
      %p766 = pnand %p764, %p765
      %p767 = pneg %p766
      // Predicated region
      $region9: #{gnova_decoder_forward.1} parent=5 // pred_check
        _
      $region10: #{gnova_decoder_forward.1} parent=5 // pred_check_branch
        %769 = sbr.rel (%p766) target = $region12
      $region11: #{gnova_decoder_forward.1} parent=5 // pred_region
        %s770 = ssub.s32 %s47, 1
        // Predicated region
        $region13: #{gnova_decoder_forward.1} parent=11 // pred_check
          %p771 = pneg %p68
        $region14: #{gnova_decoder_forward.1} parent=11 // pred_check_branch
          %773 = sbr.rel (%p771) target = $region16
        $region15: #{gnova_decoder_forward.1} parent=11 // pred_region
          _
        $region16: #{gnova_decoder_forward.1} parent=11 // pred_fallthru
          _
        // Predicated region
        $region17: #{gnova_decoder_forward.1} parent=11 // pred_check
          %p774 = pneg %p89
        $region18: #{gnova_decoder_forward.1} parent=11 // pred_check_branch
          %776 = sbr.rel (%p774) target = $region20
        $region19: #{gnova_decoder_forward.1} parent=11 // pred_region
          _
        $region20: #{gnova_decoder_forward.1} parent=11 // pred_fallthru
          _
        // Predicated region
        $region21: #{gnova_decoder_forward.1} parent=11 // pred_check
          %p777 = pneg %p110
        $region22: #{gnova_decoder_forward.1} parent=11 // pred_check_branch
          %779 = sbr.rel (%p777) target = $region24
        $region23: #{gnova_decoder_forward.1} parent=11 // pred_region
          _
        $region24: #{gnova_decoder_forward.1} parent=11 // pred_fallthru
          _
        // Predicated region
        $region25: #{gnova_decoder_forward.1} parent=11 // pred_check
          %p780 = pneg %p131
        $region26: #{gnova_decoder_forward.1} parent=11 // pred_check_branch
          %782 = sbr.rel (%p780) target = $region28
        $region27: #{gnova_decoder_forward.1} parent=11 // pred_region
          _
        $region28: #{gnova_decoder_forward.1} parent=11 // pred_fallthru
          _
        // Predicated region
        $region29: #{gnova_decoder_forward.1} parent=11 // pred_check
          %p783 = pneg %p152
        $region30: #{gnova_decoder_forward.1} parent=11 // pred_check_branch
          %785 = sbr.rel (%p783) target = $region32
        $region31: #{gnova_decoder_forward.1} parent=11 // pred_region
          _
        $region32: #{gnova_decoder_forward.1} parent=11 // pred_fallthru
          _
        // Predicated region
        $region33: #{gnova_decoder_forward.1} parent=11 // pred_check
          %p786 = pneg %p173
        $region34: #{gnova_decoder_forward.1} parent=11 // pred_check_branch
          %788 = sbr.rel (%p786) target = $region36
        $region35: #{gnova_decoder_forward.1} parent=11 // pred_region
          _
        $region36: #{gnova_decoder_forward.1} parent=11 // pred_fallthru
          _
        // Predicated region
        $region37: #{gnova_decoder_forward.1} parent=11 // pred_check
          %p789 = pneg %p194
        $region38: #{gnova_decoder_forward.1} parent=11 // pred_check_branch
          %791 = sbr.rel (%p789) target = $region40
        $region39: #{gnova_decoder_forward.1} parent=11 // pred_region
          _
        $region40: #{gnova_decoder_forward.1} parent=11 // pred_fallthru
          _
        // Predicated region
        $region41: #{gnova_decoder_forward.1} parent=11 // pred_check
          %p792 = pneg %p215
        $region42: #{gnova_decoder_forward.1} parent=11 // pred_check_branch
          %794 = sbr.rel (%p792) target = $region44
        $region43: #{gnova_decoder_forward.1} parent=11 // pred_region
          _
        $region44: #{gnova_decoder_forward.1} parent=11 // pred_fallthru
          _
      $region12: #{gnova_decoder_forward.1} parent=5 // pred_fallthru
        _
      %p795 = scmp.lt.s32.totalorder %s47, 2
      // Predicated region
      $region45: #{gnova_decoder_forward.1} parent=5 // pred_check
        %p796 = pneg %p795
      $region46: #{gnova_decoder_forward.1} parent=5 // pred_check_branch
        %798 = sbr.rel (%p796) target = $region48
      $region47: #{gnova_decoder_forward.1} parent=5 // pred_region
        // Predicated region
        $region49: #{gnova_decoder_forward.1} parent=47 // pred_check
          %p799 = pneg %p235
        $region50: #{gnova_decoder_forward.1} parent=47 // pred_check_branch
          %801 = sbr.rel (%p799) target = $region52
        $region51: #{gnova_decoder_forward.1} parent=47 // pred_region
          %p802 = scmp.lt.s32.totalorder %s47, 1
          %s803 = scalar_select %p802, %s47, 1
          %s804 = smul.addr %s803, 48
          %s805 = smul.addr %s804, 4
          %s806 = scalar_lea.vmem %s8, %s805
        $region52: #{gnova_decoder_forward.1} parent=47 // pred_fallthru
          _
        // Predicated region
        $region53: #{gnova_decoder_forward.1} parent=47 // pred_check
          %p807 = pneg %p261
        $region54: #{gnova_decoder_forward.1} parent=47 // pred_check_branch
          %809 = sbr.rel (%p807) target = $region56
        $region55: #{gnova_decoder_forward.1} parent=47 // pred_region
          %p810 = scmp.lt.s32.totalorder %s47, 1
          %s811 = scalar_select %p810, %s47, 1
          %s812 = smul.addr %s811, 3
          %s813 = scalar_lea.vmem %s9, %s812
        $region56: #{gnova_decoder_forward.1} parent=47 // pred_fallthru
          _
        // Predicated region
        $region57: #{gnova_decoder_forward.1} parent=47 // pred_check
          %p814 = pneg %p287
        $region58: #{gnova_decoder_forward.1} parent=47 // pred_check_branch
          %816 = sbr.rel (%p814) target = $region60
        $region59: #{gnova_decoder_forward.1} parent=47 // pred_region
          %p817 = scmp.lt.s32.totalorder %s47, 1
          %s818 = scalar_select %p817, %s47, 1
          %s819 = smul.addr %s818, 16
          %s820 = smul.addr %s819, 4
          %s821 = scalar_lea.vmem %s10, %s820
        $region60: #{gnova_decoder_forward.1} parent=47 // pred_fallthru
          _
        // Predicated region
        $region61: #{gnova_decoder_forward.1} parent=47 // pred_check
          %p822 = pneg %p313
        $region62: #{gnova_decoder_forward.1} parent=47 // pred_check_branch
          %824 = sbr.rel (%p822) target = $region64
        $region63: #{gnova_decoder_forward.1} parent=47 // pred_region
          %p825 = scmp.lt.s32.totalorder %s47, 1
          %s826 = scalar_select %p825, %s47, 1
          %s827 = scalar_lea.vmem %s11, %s826
        $region64: #{gnova_decoder_forward.1} parent=47 // pred_fallthru
          _
        // Predicated region
        $region65: #{gnova_decoder_forward.1} parent=47 // pred_check
          %p828 = pneg %p339
        $region66: #{gnova_decoder_forward.1} parent=47 // pred_check_branch
          %830 = sbr.rel (%p828) target = $region68
        $region67: #{gnova_decoder_forward.1} parent=47 // pred_region
          %p831 = scmp.lt.s32.totalorder %s47, 1
          %s832 = scalar_select %p831, %s47, 1
          %s833 = scalar_lea.vmem %s12, %s832
        $region68: #{gnova_decoder_forward.1} parent=47 // pred_fallthru
          _
        // Predicated region
        $region69: #{gnova_decoder_forward.1} parent=47 // pred_check
          %p834 = pneg %p365
        $region70: #{gnova_decoder_forward.1} parent=47 // pred_check_branch
          %836 = sbr.rel (%p834) target = $region72
        $region71: #{gnova_decoder_forward.1} parent=47 // pred_region
          %p837 = scmp.lt.s32.totalorder %s47, 1
          %s838 = scalar_select %p837, %s47, 1
          %s839 = scalar_lea.vmem %s13, %s838
        $region72: #{gnova_decoder_forward.1} parent=47 // pred_fallthru
          _
        // Predicated region
        $region73: #{gnova_decoder_forward.1} parent=47 // pred_check
          %p840 = pneg %p391
        $region74: #{gnova_decoder_forward.1} parent=47 // pred_check_branch
          %842 = sbr.rel (%p840) target = $region76
        $region75: #{gnova_decoder_forward.1} parent=47 // pred_region
          %p843 = scmp.lt.s32.totalorder %s47, 1
          %s844 = scalar_select %p843, %s47, 1
          %s845 = smul.addr %s844, 16
          %s846 = smul.addr %s845, 4
          %s847 = scalar_lea.vmem %s14, %s846
        $region76: #{gnova_decoder_forward.1} parent=47 // pred_fallthru
          _
        // Predicated region
        $region77: #{gnova_decoder_forward.1} parent=47 // pred_check
          %p848 = pneg %p417
        $region78: #{gnova_decoder_forward.1} parent=47 // pred_check_branch
          %850 = sbr.rel (%p848) target = $region80
        $region79: #{gnova_decoder_forward.1} parent=47 // pred_region
          %p851 = scmp.lt.s32.totalorder %s47, 1
          %s852 = scalar_select %p851, %s47, 1
          %s853 = scalar_lea.vmem %s15, %s852
        $region80: #{gnova_decoder_forward.1} parent=47 // pred_fallthru
          _
        // Predicated region
        $region81: #{gnova_decoder_forward.1} parent=47 // pred_check
          %p854 = pneg %p443
        $region82: #{gnova_decoder_forward.1} parent=47 // pred_check_branch
          %856 = sbr.rel (%p854) target = $region84
        $region83: #{gnova_decoder_forward.1} parent=47 // pred_region
          %p857 = scmp.lt.s32.totalorder %s47, 1
          %s858 = scalar_select %p857, %s47, 1
          %s859 = smul.addr %s858, 32
          %s860 = smul.addr %s859, 4
          %s861 = scalar_lea.vmem %s16, %s860
        $region84: #{gnova_decoder_forward.1} parent=47 // pred_fallthru
          _
        // Predicated region
        $region85: #{gnova_decoder_forward.1} parent=47 // pred_check
          %p862 = pneg %p469
        $region86: #{gnova_decoder_forward.1} parent=47 // pred_check_branch
          %864 = sbr.rel (%p862) target = $region88
        $region87: #{gnova_decoder_forward.1} parent=47 // pred_region
          %p865 = scmp.lt.s32.totalorder %s47, 1
          %s866 = scalar_select %p865, %s47, 1
          %s867 = smul.addr %s866, 2
          %s868 = scalar_lea.vmem %s17, %s867
        $region88: #{gnova_decoder_forward.1} parent=47 // pred_fallthru
          _
        // Predicated region
        $region89: #{gnova_decoder_forward.1} parent=47 // pred_check
          %p869 = pneg %p495
        $region90: #{gnova_decoder_forward.1} parent=47 // pred_check_branch
          %871 = sbr.rel (%p869) target = $region92
        $region91: #{gnova_decoder_forward.1} parent=47 // pred_region
          %s872 = sand.u32 %s485, 1
          %s873 = scalar_lea.sflag [#allocation4], %s872
          %s874 = sand.u32 %s485, 1
          %s875 = smul.addr %s874, 64
          %s876 = scalar_lea.vmem [#allocation3], %s875
          %s878 = ssub.s32 1024, 1024
          %879 = vsyncadd %s873, %s878
          %s880 = smul.addr %s47, 16
          %s881 = smul.addr %s880, 64
          %s882 = scalar_lea.hbm %s18, %s881
          %s883 = sshll.u32 %s876, 4
          %s884 = int_to_ptr.vmem [resolvable:$true] %s883
          %889 = dma.hbm_to_vmem [thread:$0]  %s882, 1024, %s884, %s873, 64, 64, 4
        $region92: #{gnova_decoder_forward.1} parent=47 // pred_fallthru
          _
        // Predicated region
        $region93: #{gnova_decoder_forward.1} parent=47 // pred_check
          %p890 = pneg %p521
        $region94: #{gnova_decoder_forward.1} parent=47 // pred_check_branch
          %892 = sbr.rel (%p890) target = $region96
        $region95: #{gnova_decoder_forward.1} parent=47 // pred_region
          %p893 = scmp.lt.s32.totalorder %s47, 1
          %s894 = scalar_select %p893, %s47, 1
          %s895 = scalar_lea.vmem %s19, %s894
        $region96: #{gnova_decoder_forward.1} parent=47 // pred_fallthru
          _
        // Predicated region
        $region97: #{gnova_decoder_forward.1} parent=47 // pred_check
          %p896 = pneg %p547
        $region98: #{gnova_decoder_forward.1} parent=47 // pred_check_branch
          %898 = sbr.rel (%p896) target = $region100
        $region99: #{gnova_decoder_forward.1} parent=47 // pred_region
          %s899 = sand.u32 %s47, 1
          %s900 = scalar_lea.sflag [#allocation7], %s899
          %s901 = sand.u32 %s537, 1
          %s902 = scalar_lea.vmem [#allocation6], %s901
          %s904 = ssub.s32 16, 16
          %905 = vsyncadd %s900, %s904
          %s906 = smul.addr %s47, 16
          %s907 = scalar_lea.hbm %s20, %s906
          %s909 = sshll.u32 %s902, 4
          %s910 = int_to_ptr.vmem [resolvable:$true] %s909
          %912 = dma.hbm_to_vmem [thread:$0]  %s907, 16, %s910, %s900
        $region100: #{gnova_decoder_forward.1} parent=47 // pred_fallthru
          _
        // Predicated region
        $region101: #{gnova_decoder_forward.1} parent=47 // pred_check
          %p913 = pneg %p573
        $region102: #{gnova_decoder_forward.1} parent=47 // pred_check_branch
          %915 = sbr.rel (%p913) target = $region104
        $region103: #{gnova_decoder_forward.1} parent=47 // pred_region
          %s916 = sand.u32 %s47, 1
          %s917 = scalar_lea.sflag [#allocation7], %s916
          %s918 = sand.u32 %s563, 1
          %s919 = scalar_lea.vmem [#allocation8], %s918
          %s921 = ssub.s32 16, 16
          %922 = vsyncadd %s917, %s921
          %s923 = smul.addr %s47, 16
          %s924 = scalar_lea.hbm %s21, %s923
          %s926 = sshll.u32 %s919, 4
          %s927 = int_to_ptr.vmem [resolvable:$true] %s926
          %929 = dma.hbm_to_vmem [thread:$0]  %s924, 16, %s927, %s917
        $region104: #{gnova_decoder_forward.1} parent=47 // pred_fallthru
          _
        // Predicated region
        $region105: #{gnova_decoder_forward.1} parent=47 // pred_check
          %p930 = pneg %p599
        $region106: #{gnova_decoder_forward.1} parent=47 // pred_check_branch
          %932 = sbr.rel (%p930) target = $region108
        $region107: #{gnova_decoder_forward.1} parent=47 // pred_region
          %s933 = sand.u32 %s47, 1
          %s934 = scalar_lea.sflag [#allocation10], %s933
          %s935 = sand.u32 %s589, 1
          %s936 = smul.addr %s935, 64
          %s937 = scalar_lea.vmem [#allocation9], %s936
          %s939 = ssub.s32 1024, 1024
          %940 = vsyncadd %s934, %s939
          %s941 = smul.addr %s47, 16
          %s942 = smul.addr %s941, 64
          %s943 = scalar_lea.hbm %s22, %s942
          %s944 = sshll.u32 %s937, 4
          %s945 = int_to_ptr.vmem [resolvable:$true] %s944
          %950 = dma.hbm_to_vmem [thread:$0]  %s943, 1024, %s945, %s934, 64, 64, 4
        $region108: #{gnova_decoder_forward.1} parent=47 // pred_fallthru
          _
        // Predicated region
        $region109: #{gnova_decoder_forward.1} parent=47 // pred_check
          %p951 = pneg %p625
        $region110: #{gnova_decoder_forward.1} parent=47 // pred_check_branch
          %953 = sbr.rel (%p951) target = $region112
        $region111: #{gnova_decoder_forward.1} parent=47 // pred_region
          %p954 = scmp.lt.s32.totalorder %s47, 1
          %s955 = scalar_select %p954, %s47, 1
          %s956 = scalar_lea.vmem %s23, %s955
        $region112: #{gnova_decoder_forward.1} parent=47 // pred_fallthru
          _
        // Predicated region
        $region113: #{gnova_decoder_forward.1} parent=47 // pred_check
          %p957 = pneg %p651
        $region114: #{gnova_decoder_forward.1} parent=47 // pred_check_branch
          %959 = sbr.rel (%p957) target = $region116
        $region115: #{gnova_decoder_forward.1} parent=47 // pred_region
          %s960 = sand.u32 %s47, 1
          %s961 = scalar_lea.sflag [#allocation10], %s960
          %s962 = sand.u32 %s641, 1
          %s963 = smul.addr %s962, 64
          %s964 = scalar_lea.vmem [#allocation11], %s963
          %s966 = ssub.s32 1024, 1024
          %967 = vsyncadd %s961, %s966
          %s968 = smul.addr %s47, 16
          %s969 = smul.addr %s968, 64
          %s970 = scalar_lea.hbm %s24, %s969
          %s971 = sshll.u32 %s964, 4
          %s972 = int_to_ptr.vmem [resolvable:$true] %s971
          %977 = dma.hbm_to_vmem [thread:$0]  %s970, 1024, %s972, %s961, 64, 64, 4
        $region116: #{gnova_decoder_forward.1} parent=47 // pred_fallthru
          _
        // Predicated region
        $region117: #{gnova_decoder_forward.1} parent=47 // pred_check
          %p978 = pneg %p677
        $region118: #{gnova_decoder_forward.1} parent=47 // pred_check_branch
          %980 = sbr.rel (%p978) target = $region120
        $region119: #{gnova_decoder_forward.1} parent=47 // pred_region
          %p981 = scmp.lt.s32.totalorder %s47, 1
          %s982 = scalar_select %p981, %s47, 1
          %s983 = scalar_lea.vmem %s25, %s982
        $region120: #{gnova_decoder_forward.1} parent=47 // pred_fallthru
          _
        // Predicated region
        $region121: #{gnova_decoder_forward.1} parent=47 // pred_check
          %p984 = pneg %p703
        $region122: #{gnova_decoder_forward.1} parent=47 // pred_check_branch
          %986 = sbr.rel (%p984) target = $region124
        $region123: #{gnova_decoder_forward.1} parent=47 // pred_region
          %s987 = sand.u32 %s47, 1
          %s988 = scalar_lea.sflag [#allocation13], %s987
          %s989 = sand.u32 %s693, 1
          %s990 = scalar_lea.vmem [#allocation12], %s989
          %s992 = ssub.s32 16, 16
          %993 = vsyncadd %s988, %s992
          %s994 = smul.addr %s47, 16
          %s995 = scalar_lea.hbm %s26, %s994
          %s997 = sshll.u32 %s990, 4
          %s998 = int_to_ptr.vmem [resolvable:$true] %s997
          %1000 = dma.hbm_to_vmem [thread:$0]  %s995, 16, %s998, %s988
        $region124: #{gnova_decoder_forward.1} parent=47 // pred_fallthru
          _
        // Predicated region
        $region125: #{gnova_decoder_forward.1} parent=47 // pred_check
          %p1001 = pneg %p729
        $region126: #{gnova_decoder_forward.1} parent=47 // pred_check_branch
          %1003 = sbr.rel (%p1001) target = $region128
        $region127: #{gnova_decoder_forward.1} parent=47 // pred_region
          %s1004 = sand.u32 %s47, 1
          %s1005 = scalar_lea.sflag [#allocation13], %s1004
          %s1006 = sand.u32 %s719, 1
          %s1007 = scalar_lea.vmem [#allocation14], %s1006
          %s1009 = ssub.s32 16, 16
          %1010 = vsyncadd %s1005, %s1009
          %s1011 = smul.addr %s47, 16
          %s1012 = scalar_lea.hbm %s27, %s1011
          %s1014 = sshll.u32 %s1007, 4
          %s1015 = int_to_ptr.vmem [resolvable:$true] %s1014
          %1017 = dma.hbm_to_vmem [thread:$0]  %s1012, 16, %s1015, %s1005
        $region128: #{gnova_decoder_forward.1} parent=47 // pred_fallthru
          _
      $region48: #{gnova_decoder_forward.1} parent=5 // pred_fallthru
        _
      %p1018 = scmp.le.s32.totalorder 1, %s47
      %p1019 = scmp.lt.s32.totalorder %s47, 3
      %p1020 = pnand %p1018, %p1019
      %p1021 = pneg %p1020
      // Predicated region
      $region129: #{gnova_decoder_forward.1} parent=5 // pred_check
        _
      $region130: #{gnova_decoder_forward.1} parent=5 // pred_check_branch
        %1023 = sbr.rel (%p1020) target = $region132
      $region131: #{gnova_decoder_forward.1} parent=5 // pred_region
        %s1024 = ssub.s32 %s47, 1
        %s1025 = sand.u32 %s488, 1
        %s1026 = scalar_lea.sflag [#allocation4], %s1025
        %s1027 = sand.u32 %s488, 1
        %s1028 = smul.addr %s1027, 64
        %s1029 = scalar_lea.vmem [#allocation3], %s1028
        // Predicated region
        $region133: #{gnova_decoder_forward.1} parent=131 // pred_check
          %p1030 = pneg %p501
        $region134: #{gnova_decoder_forward.1} parent=131 // pred_check_branch
          %1032 = sbr.rel (%p1030) target = $region136
        $region135: #{gnova_decoder_forward.1} parent=131 // pred_region
          %1033 = dma.done %s1026, 1024
        $region136: #{gnova_decoder_forward.1} parent=131 // pred_fallthru
          _
        %s1034 = sand.u32 %s52, 1
        %s1035 = scalar_lea.sflag [#allocation7], %s1034
        %s1036 = sand.u32 %s540, 1
        %s1037 = scalar_lea.vmem [#allocation6], %s1036
        // Predicated region
        $region137: #{gnova_decoder_forward.1} parent=131 // pred_check
          %p1038 = pneg %p553
        $region138: #{gnova_decoder_forward.1} parent=131 // pred_check_branch
          %1040 = sbr.rel (%p1038) target = $region140
        $region139: #{gnova_decoder_forward.1} parent=131 // pred_region
          %1041 = dma.done %s1035, 16
        $region140: #{gnova_decoder_forward.1} parent=131 // pred_fallthru
          _
        %s1042 = sand.u32 %s52, 1
        %s1043 = scalar_lea.sflag [#allocation7], %s1042
        %s1044 = sand.u32 %s566, 1
        %s1045 = scalar_lea.vmem [#allocation8], %s1044
        // Predicated region
        $region141: #{gnova_decoder_forward.1} parent=131 // pred_check
          %p1046 = pneg %p579
        $region142: #{gnova_decoder_forward.1} parent=131 // pred_check_branch
          %1048 = sbr.rel (%p1046) target = $region144
        $region143: #{gnova_decoder_forward.1} parent=131 // pred_region
          %1049 = dma.done %s1043, 16
        $region144: #{gnova_decoder_forward.1} parent=131 // pred_fallthru
          _
        %s1050 = sand.u32 %s52, 1
        %s1051 = scalar_lea.sflag [#allocation10], %s1050
        %s1052 = sand.u32 %s592, 1
        %s1053 = smul.addr %s1052, 64
        %s1054 = scalar_lea.vmem [#allocation9], %s1053
        // Predicated region
        $region145: #{gnova_decoder_forward.1} parent=131 // pred_check
          %p1055 = pneg %p605
        $region146: #{gnova_decoder_forward.1} parent=131 // pred_check_branch
          %1057 = sbr.rel (%p1055) target = $region148
        $region147: #{gnova_decoder_forward.1} parent=131 // pred_region
          %1058 = dma.done %s1051, 1024
        $region148: #{gnova_decoder_forward.1} parent=131 // pred_fallthru
          _
        %s1059 = sand.u32 %s52, 1
        %s1060 = scalar_lea.sflag [#allocation10], %s1059
        %s1061 = sand.u32 %s644, 1
        %s1062 = smul.addr %s1061, 64
        %s1063 = scalar_lea.vmem [#allocation11], %s1062
        // Predicated region
        $region149: #{gnova_decoder_forward.1} parent=131 // pred_check
          %p1064 = pneg %p657
        $region150: #{gnova_decoder_forward.1} parent=131 // pred_check_branch
          %1066 = sbr.rel (%p1064) target = $region152
        $region151: #{gnova_decoder_forward.1} parent=131 // pred_region
          %1067 = dma.done %s1060, 1024
        $region152: #{gnova_decoder_forward.1} parent=131 // pred_fallthru
          _
        %s1068 = sand.u32 %s52, 1
        %s1069 = scalar_lea.sflag [#allocation13], %s1068
        %s1070 = sand.u32 %s696, 1
        %s1071 = scalar_lea.vmem [#allocation12], %s1070
        // Predicated region
        $region153: #{gnova_decoder_forward.1} parent=131 // pred_check
          %p1072 = pneg %p709
        $region154: #{gnova_decoder_forward.1} parent=131 // pred_check_branch
          %1074 = sbr.rel (%p1072) target = $region156
        $region155: #{gnova_decoder_forward.1} parent=131 // pred_region
          %1075 = dma.done %s1069, 16
        $region156: #{gnova_decoder_forward.1} parent=131 // pred_fallthru
          _
        %s1076 = sand.u32 %s52, 1
        %s1077 = scalar_lea.sflag [#allocation13], %s1076
        %s1078 = sand.u32 %s722, 1
        %s1079 = scalar_lea.vmem [#allocation14], %s1078
        // Predicated region
        $region157: #{gnova_decoder_forward.1} parent=131 // pred_check
          %p1080 = pneg %p735
        $region158: #{gnova_decoder_forward.1} parent=131 // pred_check_branch
          %1082 = sbr.rel (%p1080) target = $region160
        $region159: #{gnova_decoder_forward.1} parent=131 // pred_region
          %1083 = dma.done %s1077, 16
        $region160: #{gnova_decoder_forward.1} parent=131 // pred_fallthru
          _
        %p1084 = pneg %p68
        %p1085 = pneg %p65
        %p1086 = pneg %p89
        %p1087 = pneg %p86
        %p1088 = pneg %p110
        %p1089 = pneg %p107
        %p1090 = pneg %p131
        %p1091 = pneg %p128
        %p1092 = pneg %p152
        %p1093 = pneg %p149
        %p1094 = pneg %p173
        %p1095 = pneg %p170
        %p1096 = pneg %p194
        %p1097 = pneg %p191
        %p1098 = pneg %p215
        %p1099 = pneg %p212
        %p1100 = scmp.lt.s32.totalorder %s52, 1
        %s1101 = scalar_select %p1100, %s52, 1
        %s1102 = smul.addr %s1101, 48
        %s1103 = smul.addr %s1102, 4
        %s1104 = scalar_lea.vmem %s8, %s1103
        %p1105 = pneg %p241
        %p1106 = pneg %p238
        %p1107 = scmp.lt.s32.totalorder %s52, 1
        %s1108 = scalar_select %p1107, %s52, 1
        %s1109 = smul.addr %s1108, 3
        %s1110 = scalar_lea.vmem %s9, %s1109
        %p1111 = pneg %p267
        %p1112 = pneg %p264
        %p1113 = scmp.lt.s32.totalorder %s52, 1
        %s1114 = scalar_select %p1113, %s52, 1
        %s1115 = smul.addr %s1114, 16
        %s1116 = smul.addr %s1115, 4
        %s1117 = scalar_lea.vmem %s10, %s1116
        %p1118 = pneg %p293
        %p1119 = pneg %p290
        %p1120 = scmp.lt.s32.totalorder %s52, 1
        %s1121 = scalar_select %p1120, %s52, 1
        %s1122 = scalar_lea.vmem %s11, %s1121
        %p1123 = pneg %p319
        %p1124 = pneg %p316
        %p1125 = scmp.lt.s32.totalorder %s52, 1
        %s1126 = scalar_select %p1125, %s52, 1
        %s1127 = scalar_lea.vmem %s12, %s1126
        %p1128 = pneg %p345
        %p1129 = pneg %p342
        %p1130 = scmp.lt.s32.totalorder %s52, 1
        %s1131 = scalar_select %p1130, %s52, 1
        %s1132 = scalar_lea.vmem %s13, %s1131
        %p1133 = pneg %p371
        %p1134 = pneg %p368
        %p1135 = scmp.lt.s32.totalorder %s52, 1
        %s1136 = scalar_select %p1135, %s52, 1
        %s1137 = smul.addr %s1136, 16
        %s1138 = smul.addr %s1137, 4
        %s1139 = scalar_lea.vmem %s14, %s1138
        %p1140 = pneg %p397
        %p1141 = pneg %p394
        %p1142 = scmp.lt.s32.totalorder %s52, 1
        %s1143 = scalar_select %p1142, %s52, 1
        %s1144 = scalar_lea.vmem %s15, %s1143
        %p1145 = pneg %p423
        %p1146 = pneg %p420
        %p1147 = scmp.lt.s32.totalorder %s52, 1
        %s1148 = scalar_select %p1147, %s52, 1
        %s1149 = smul.addr %s1148, 32
        %s1150 = smul.addr %s1149, 4
        %s1151 = scalar_lea.vmem %s16, %s1150
        %p1152 = pneg %p449
        %p1153 = pneg %p446
        %p1154 = scmp.lt.s32.totalorder %s52, 1
        %s1155 = scalar_select %p1154, %s52, 1
        %s1156 = smul.addr %s1155, 2
        %s1157 = scalar_lea.vmem %s17, %s1156
        %p1158 = pneg %p475
        %p1159 = pneg %p472
        %s1160 = sand.u32 %s488, 1
        %s1161 = scalar_lea.sflag [#allocation4], %s1160
        %s1162 = sand.u32 %s488, 1
        %s1163 = smul.addr %s1162, 64
        %s1164 = scalar_lea.vmem [#allocation3], %s1163
        %p1165 = pneg %p501
        %p1166 = pneg %p498
        %p1167 = scmp.lt.s32.totalorder %s52, 1
        %s1168 = scalar_select %p1167, %s52, 1
        %s1169 = scalar_lea.vmem %s19, %s1168
        %p1170 = pneg %p527
        %p1171 = pneg %p524
        %s1172 = sand.u32 %s52, 1
        %s1173 = scalar_lea.sflag [#allocation7], %s1172
        %s1174 = sand.u32 %s540, 1
        %s1175 = scalar_lea.vmem [#allocation6], %s1174
        %p1176 = pneg %p553
        %p1177 = pneg %p550
        %s1178 = sand.u32 %s52, 1
        %s1179 = scalar_lea.sflag [#allocation7], %s1178
        %s1180 = sand.u32 %s566, 1
        %s1181 = scalar_lea.vmem [#allocation8], %s1180
        %p1182 = pneg %p579
        %p1183 = pneg %p576
        %s1184 = sand.u32 %s52, 1
        %s1185 = scalar_lea.sflag [#allocation10], %s1184
        %s1186 = sand.u32 %s592, 1
        %s1187 = smul.addr %s1186, 64
        %s1188 = scalar_lea.vmem [#allocation9], %s1187
        %p1189 = pneg %p605
        %p1190 = pneg %p602
        %p1191 = scmp.lt.s32.totalorder %s52, 1
        %s1192 = scalar_select %p1191, %s52, 1
        %s1193 = scalar_lea.vmem %s23, %s1192
        %p1194 = pneg %p631
        %p1195 = pneg %p628
        %s1196 = sand.u32 %s52, 1
        %s1197 = scalar_lea.sflag [#allocation10], %s1196
        %s1198 = sand.u32 %s644, 1
        %s1199 = smul.addr %s1198, 64
        %s1200 = scalar_lea.vmem [#allocation11], %s1199
        %p1201 = pneg %p657
        %p1202 = pneg %p654
        %p1203 = scmp.lt.s32.totalorder %s52, 1
        %s1204 = scalar_select %p1203, %s52, 1
        %s1205 = scalar_lea.vmem %s25, %s1204
        %p1206 = pneg %p683
        %p1207 = pneg %p680
        %s1208 = sand.u32 %s52, 1
        %s1209 = scalar_lea.sflag [#allocation13], %s1208
        %s1210 = sand.u32 %s696, 1
        %s1211 = scalar_lea.vmem [#allocation12], %s1210
        %p1212 = pneg %p709
        %p1213 = pneg %p706
        %s1214 = sand.u32 %s52, 1
        %s1215 = scalar_lea.sflag [#allocation13], %s1214
        %s1216 = sand.u32 %s722, 1
        %s1217 = scalar_lea.vmem [#allocation14], %s1216
        %p1218 = pneg %p735
        %p1219 = pneg %p732
        %p1220 = pneg %p756
        %p1221 = pneg %p753
        %p1222 = scmp.lt.s32.totalorder %s52, 1
        %s1223 = scalar_select %p1222, %s52, 1
        %s1224 = smul.addr %s1223, 48
        %s1225 = smul.addr %s1224, 4
        %s1226 = scalar_lea.vmem %s8, %s1225
        %p1227 = scmp.lt.s32.totalorder %s52, 1
        %s1228 = scalar_select %p1227, %s52, 1
        %s1229 = smul.addr %s1228, 3
        %s1230 = scalar_lea.vmem %s9, %s1229
        %p1231 = scmp.lt.s32.totalorder %s52, 1
        %s1232 = scalar_select %p1231, %s52, 1
        %s1233 = smul.addr %s1232, 16
        %s1234 = smul.addr %s1233, 4
        %s1235 = scalar_lea.vmem %s10, %s1234
        %p1236 = scmp.lt.s32.totalorder %s52, 1
        %s1237 = scalar_select %p1236, %s52, 1
        %s1238 = scalar_lea.vmem %s11, %s1237
        %p1239 = scmp.lt.s32.totalorder %s52, 1
        %s1240 = scalar_select %p1239, %s52, 1
        %s1241 = scalar_lea.vmem %s12, %s1240
        %p1242 = scmp.lt.s32.totalorder %s52, 1
        %s1243 = scalar_select %p1242, %s52, 1
        %s1244 = scalar_lea.vmem %s13, %s1243
        %p1245 = scmp.lt.s32.totalorder %s52, 1
        %s1246 = scalar_select %p1245, %s52, 1
        %s1247 = smul.addr %s1246, 16
        %s1248 = smul.addr %s1247, 4
        %s1249 = scalar_lea.vmem %s14, %s1248
        %p1250 = scmp.lt.s32.totalorder %s52, 1
        %s1251 = scalar_select %p1250, %s52, 1
        %s1252 = scalar_lea.vmem %s15, %s1251
        %p1253 = scmp.lt.s32.totalorder %s52, 1
        %s1254 = scalar_select %p1253, %s52, 1
        %s1255 = smul.addr %s1254, 32
        %s1256 = smul.addr %s1255, 4
        %s1257 = scalar_lea.vmem %s16, %s1256
        %p1258 = scmp.lt.s32.totalorder %s52, 1
        %s1259 = scalar_select %p1258, %s52, 1
        %s1260 = smul.addr %s1259, 2
        %s1261 = scalar_lea.vmem %s17, %s1260
        %p1262 = scmp.lt.s32.totalorder %s52, 1
        %s1263 = scalar_select %p1262, %s52, 1
        %s1264 = scalar_lea.vmem %s19, %s1263
        %p1265 = scmp.lt.s32.totalorder %s52, 1
        %s1266 = scalar_select %p1265, %s52, 1
        %s1267 = scalar_lea.vmem %s23, %s1266
        %p1268 = scmp.lt.s32.totalorder %s52, 1
        %s1269 = scalar_select %p1268, %s52, 1
        %s1270 = scalar_lea.vmem %s25, %s1269
        %p1272 = scmp.eq.s32.totalorder %s52, 0
        // Predicated region
        $region161: #{gnova_decoder_forward.1} parent=131 // pred_check
          %p1273 = pneg %p1272
        $region162: #{gnova_decoder_forward.1} parent=131 // pred_check_branch
          %1275 = sbr.rel (%p1273) target = $region164
        $region163: #{gnova_decoder_forward.1} parent=131 // pred_region
          %v1276 = vld [vmem:[%s0] sm:$0xff]
          %v1277 = vld [vmem:[%s0 + $0x8] sm:$0xff]
          %1278 = vst [vmem:[#allocation2] sm:$0xff] %v1276
          %1279 = vst [vmem:[#allocation2 + $0x8] sm:$0xff] %v1277
        $region164: #{gnova_decoder_forward.1} parent=131 // pred_fallthru
          _
        %v1280 = vld [vmem:[#allocation2] sm:$0xff]
        %v1281 = vld [vmem:[#allocation2 + $0x8] sm:$0xff]
        %v1282 = vld [vmem:[%s1] sm:$0xf]
        %v1283 = vld [vmem:[%s1 + $0x4] sm:$0xf]
        %v1284 = vld [vmem:[%s1 + $0x8] sm:$0xf]
        %v1285 = vld [vmem:[%s1 + $0xc] sm:$0xf]
        %v1286 = vlaneseq
        %v1287 = vand.u32 %v1286, 127
        %vm1288 = vcmp.lt.s32.totalorder %v1287, 32
        %v1289 = vsel %vm1288, 1, 0
        %v1290 = vcvt.s32.f32 %v1289
        %v1291 = vlaneseq
        %v1292 = vshrl.u32 %v1291, 7
        %vm1293 = vcmp.le.s32.totalorder %v1287, %v1292
        %v1294 = vld [vmem:[%s2] sm:$0xff]
        %v1295 = vld [vmem:[%s2 + $0x8] sm:$0xff]
        %1298 = vrot.lane.b32.xlu0 %v1294, 32
        %v1299 = vpop.permute.xlu0 %1298
        %1300 = vrot.lane.b32.xlu0 %v1295, 32
        %v1301 = vpop.permute.xlu0 %1300
        %1304 = vrot.lane.b32.xlu0 %v1294, 64
        %v1305 = vpop.permute.xlu0 %1304
        %1306 = vrot.lane.b32.xlu0 %v1295, 64
        %v1307 = vpop.permute.xlu0 %1306
        %1310 = vrot.lane.b32.xlu0 %v1294, 96
        %v1311 = vpop.permute.xlu0 %1310
        %1312 = vrot.lane.b32.xlu0 %v1295, 96
        %v1313 = vpop.permute.xlu0 %1312
        %vm1316 = vcmask 261120
        %v1317 = vsel %vm1316, %v1294, %v1299
        %v1318 = vsel %vm1316, %v1295, %v1301
        %vm1319 = vcmask 523264
        %v1320 = vsel %vm1319, %v1317, %v1305
        %v1321 = vsel %vm1319, %v1318, %v1307
        %vm1322 = vcmask 785408
        %v1323 = vsel %vm1322, %v1320, %v1311
        %v1324 = vsel %vm1322, %v1321, %v1313
        %v1325 = vld [vmem:[%s3] sm:$0xff]
        %v1326 = vld [vmem:[%s3 + $0x8] sm:$0xff]
        %1329 = vrot.lane.b32.xlu0 %v1325, 32
        %v1330 = vpop.permute.xlu0 %1329
        %1331 = vrot.lane.b32.xlu0 %v1326, 32
        %v1332 = vpop.permute.xlu0 %1331
        %1335 = vrot.lane.b32.xlu0 %v1325, 64
        %v1336 = vpop.permute.xlu0 %1335
        %1337 = vrot.lane.b32.xlu0 %v1326, 64
        %v1338 = vpop.permute.xlu0 %1337
        %1341 = vrot.lane.b32.xlu0 %v1325, 96
        %v1342 = vpop.permute.xlu0 %1341
        %1343 = vrot.lane.b32.xlu0 %v1326, 96
        %v1344 = vpop.permute.xlu0 %1343
        %v1347 = vsel %vm1316, %v1325, %v1330
        %v1348 = vsel %vm1316, %v1326, %v1332
        %v1349 = vsel %vm1319, %v1347, %v1336
        %v1350 = vsel %vm1319, %v1348, %v1338
        %v1351 = vsel %vm1322, %v1349, %v1342
        %v1352 = vsel %vm1322, %v1350, %v1344
        %v1353 = vld [vmem:[%s4] sm:$0xff]
        %v1354 = vld [vmem:[%s4 + $0x8] sm:$0xff]
        %1357 = vrot.lane.b32.xlu0 %v1353, 32
        %v1358 = vpop.permute.xlu0 %1357
        %1359 = vrot.lane.b32.xlu0 %v1354, 32
        %v1360 = vpop.permute.xlu0 %1359
        %1363 = vrot.lane.b32.xlu0 %v1353, 64
        %v1364 = vpop.permute.xlu0 %1363
        %1365 = vrot.lane.b32.xlu0 %v1354, 64
        %v1366 = vpop.permute.xlu0 %1365
        %1369 = vrot.lane.b32.xlu0 %v1353, 96
        %v1370 = vpop.permute.xlu0 %1369
        %1371 = vrot.lane.b32.xlu0 %v1354, 96
        %v1372 = vpop.permute.xlu0 %1371
        %v1375 = vsel %vm1316, %v1353, %v1358
        %v1376 = vsel %vm1316, %v1354, %v1360
        %v1377 = vsel %vm1319, %v1375, %v1364
        %v1378 = vsel %vm1319, %v1376, %v1366
        %v1379 = vsel %vm1322, %v1377, %v1370
        %v1380 = vsel %vm1322, %v1378, %v1372
        %v1381 = vld [vmem:[%s5] sm:$0xff]
        %v1382 = vld [vmem:[%s5 + $0x8] sm:$0xff]
        %v1383 = vld [vmem:[%s5 + $0x10] sm:$0xff]
        %v1384 = vld [vmem:[%s5 + $0x18] sm:$0xff]
        %1389 = vrot.lane.b32.xlu0 %v1381, 32
        %v1390 = vpop.permute.xlu0 %1389
        %1391 = vrot.lane.b32.xlu0 %v1382, 32
        %v1392 = vpop.permute.xlu0 %1391
        %1393 = vrot.lane.b32.xlu0 %v1383, 32
        %v1394 = vpop.permute.xlu0 %1393
        %1395 = vrot.lane.b32.xlu0 %v1384, 32
        %v1396 = vpop.permute.xlu0 %1395
        %1401 = vrot.lane.b32.xlu0 %v1381, 64
        %v1402 = vpop.permute.xlu0 %1401
        %1403 = vrot.lane.b32.xlu0 %v1382, 64
        %v1404 = vpop.permute.xlu0 %1403
        %1405 = vrot.lane.b32.xlu0 %v1383, 64
        %v1406 = vpop.permute.xlu0 %1405
        %1407 = vrot.lane.b32.xlu0 %v1384, 64
        %v1408 = vpop.permute.xlu0 %1407
        %1413 = vrot.lane.b32.xlu0 %v1381, 96
        %v1414 = vpop.permute.xlu0 %1413
        %1415 = vrot.lane.b32.xlu0 %v1382, 96
        %v1416 = vpop.permute.xlu0 %1415
        %1417 = vrot.lane.b32.xlu0 %v1383, 96
        %v1418 = vpop.permute.xlu0 %1417
        %1419 = vrot.lane.b32.xlu0 %v1384, 96
        %v1420 = vpop.permute.xlu0 %1419
        %v1425 = vsel %vm1316, %v1381, %v1390
        %v1426 = vsel %vm1316, %v1382, %v1392
        %v1427 = vsel %vm1316, %v1383, %v1394
        %v1428 = vsel %vm1316, %v1384, %v1396
        %v1429 = vsel %vm1319, %v1425, %v1402
        %v1430 = vsel %vm1319, %v1426, %v1404
        %v1431 = vsel %vm1319, %v1427, %v1406
        %v1432 = vsel %vm1319, %v1428, %v1408
        %v1433 = vsel %vm1322, %v1429, %v1414
        %v1434 = vsel %vm1322, %v1430, %v1416
        %v1435 = vsel %vm1322, %v1431, %v1418
        %v1436 = vsel %vm1322, %v1432, %v1420
        %v1437 = vld [vmem:[%s6] sm:$0xff]
        %v1438 = vld [vmem:[%s6 + $0x8] sm:$0xff]
        %v1439 = vld [vmem:[%s6 + $0x10] sm:$0xff]
        %v1440 = vld [vmem:[%s6 + $0x18] sm:$0xff]
        %v1441 = vld [vmem:[%s7] sm:$0xff]
        %v1442 = vld [vmem:[%s7 + $0x8] sm:$0xff]
        %v1443 = vld [vmem:[%s7 + $0x10] sm:$0xff]
        %v1444 = vld [vmem:[%s7 + $0x18] sm:$0xff]
        %v1445 = vsub.f32 0.0, %v1437
        %v1446 = vsub.f32 0.0, %v1438
        %v1447 = vsub.f32 0.0, %v1439
        %v1448 = vsub.f32 0.0, %v1440
        %1453 = vrot.lane.b32.xlu0 %v1437, 32
        %v1454 = vpop.permute.xlu0 %1453
        %1455 = vrot.lane.b32.xlu0 %v1438, 32
        %v1456 = vpop.permute.xlu0 %1455
        %1457 = vrot.lane.b32.xlu0 %v1439, 32
        %v1458 = vpop.permute.xlu0 %1457
        %1459 = vrot.lane.b32.xlu0 %v1440, 32
        %v1460 = vpop.permute.xlu0 %1459
        %1469 = vrot.lane.b32.xlu0 %v1445, 64
        %v1470 = vpop.permute.xlu0 %1469
        %1471 = vrot.lane.b32.xlu0 %v1446, 64
        %v1472 = vpop.permute.xlu0 %1471
        %1473 = vrot.lane.b32.xlu0 %v1447, 64
        %v1474 = vpop.permute.xlu0 %1473
        %1475 = vrot.lane.b32.xlu0 %v1448, 64
        %v1476 = vpop.permute.xlu0 %1475
        %1481 = vrot.lane.b32.xlu0 %v1445, 96
        %v1482 = vpop.permute.xlu0 %1481
        %1483 = vrot.lane.b32.xlu0 %v1446, 96
        %v1484 = vpop.permute.xlu0 %1483
        %1485 = vrot.lane.b32.xlu0 %v1447, 96
        %v1486 = vpop.permute.xlu0 %1485
        %1487 = vrot.lane.b32.xlu0 %v1448, 96
        %v1488 = vpop.permute.xlu0 %1487
        %v1493 = vsel %vm1316, %v1437, %v1454
        %v1494 = vsel %vm1316, %v1438, %v1456
        %v1495 = vsel %vm1316, %v1439, %v1458
        %v1496 = vsel %vm1316, %v1440, %v1460
        %v1497 = vsel %vm1319, %v1493, %v1470
        %v1498 = vsel %vm1319, %v1494, %v1472
        %v1499 = vsel %vm1319, %v1495, %v1474
        %v1500 = vsel %vm1319, %v1496, %v1476
        %v1501 = vsel %vm1322, %v1497, %v1482
        %v1502 = vsel %vm1322, %v1498, %v1484
        %v1503 = vsel %vm1322, %v1499, %v1486
        %v1504 = vsel %vm1322, %v1500, %v1488
        %v1505 = vsub.f32 0.0, %v1441
        %v1506 = vsub.f32 0.0, %v1442
        %v1507 = vsub.f32 0.0, %v1443
        %v1508 = vsub.f32 0.0, %v1444
        %1513 = vrot.lane.b32.xlu0 %v1441, 32
        %v1514 = vpop.permute.xlu0 %1513
        %1515 = vrot.lane.b32.xlu0 %v1442, 32
        %v1516 = vpop.permute.xlu0 %1515
        %1517 = vrot.lane.b32.xlu0 %v1443, 32
        %v1518 = vpop.permute.xlu0 %1517
        %1519 = vrot.lane.b32.xlu0 %v1444, 32
        %v1520 = vpop.permute.xlu0 %1519
        %1529 = vrot.lane.b32.xlu0 %v1505, 64
        %v1530 = vpop.permute.xlu0 %1529
        %1531 = vrot.lane.b32.xlu0 %v1506, 64
        %v1532 = vpop.permute.xlu0 %1531
        %1533 = vrot.lane.b32.xlu0 %v1507, 64
        %v1534 = vpop.permute.xlu0 %1533
        %1535 = vrot.lane.b32.xlu0 %v1508, 64
        %v1536 = vpop.permute.xlu0 %1535
        %1541 = vrot.lane.b32.xlu0 %v1505, 96
        %v1542 = vpop.permute.xlu0 %1541
        %1543 = vrot.lane.b32.xlu0 %v1506, 96
        %v1544 = vpop.permute.xlu0 %1543
        %1545 = vrot.lane.b32.xlu0 %v1507, 96
        %v1546 = vpop.permute.xlu0 %1545
        %1547 = vrot.lane.b32.xlu0 %v1508, 96
        %v1548 = vpop.permute.xlu0 %1547
        %v1553 = vsel %vm1316, %v1441, %v1514
        %v1554 = vsel %vm1316, %v1442, %v1516
        %v1555 = vsel %vm1316, %v1443, %v1518
        %v1556 = vsel %vm1316, %v1444, %v1520
        %v1557 = vsel %vm1319, %v1553, %v1530
        %v1558 = vsel %vm1319, %v1554, %v1532
        %v1559 = vsel %vm1319, %v1555, %v1534
        %v1560 = vsel %vm1319, %v1556, %v1536
        %v1561 = vsel %vm1322, %v1557, %v1542
        %v1562 = vsel %vm1322, %v1558, %v1544
        %v1563 = vsel %vm1322, %v1559, %v1546
        %v1564 = vsel %vm1322, %v1560, %v1548
        %v1565 = vpack.c.bf16 %v1281, %v1280
        %v1566 = vld [vmem:[%s1226] sm:$0xff]
        %v1567 = vld [vmem:[%s1226 + $0x8] sm:$0xf]
        %v1568 = vld [vmem:[%s1226 + $0xc] sm:$0xff]
        %v1569 = vld [vmem:[%s1226 + $0x14] sm:$0xf]
        %v1570 = vld [vmem:[%s1226 + $0x18] sm:$0xff]
        %v1571 = vld [vmem:[%s1226 + $0x20] sm:$0xf]
        %v1572 = vld [vmem:[%s1226 + $0x24] sm:$0xff]
        %v1573 = vld [vmem:[%s1226 + $0x2c] sm:$0xf]
        %v1574 = vld [vmem:[%s1226 + $0x30] sm:$0xff]
        %v1575 = vld [vmem:[%s1226 + $0x38] sm:$0xf]
        %v1576 = vld [vmem:[%s1226 + $0x3c] sm:$0xff]
        %v1577 = vld [vmem:[%s1226 + $0x44] sm:$0xf]
        %v1578 = vld [vmem:[%s1226 + $0x48] sm:$0xff]
        %v1579 = vld [vmem:[%s1226 + $0x50] sm:$0xf]
        %v1580 = vld [vmem:[%s1226 + $0x54] sm:$0xff]
        %v1581 = vld [vmem:[%s1226 + $0x5c] sm:$0xf]
        %v1582 = vld [vmem:[%s1226 + $0x60] sm:$0xff]
        %v1583 = vld [vmem:[%s1226 + $0x68] sm:$0xf]
        %v1584 = vld [vmem:[%s1226 + $0x6c] sm:$0xff]
        %v1585 = vld [vmem:[%s1226 + $0x74] sm:$0xf]
        %v1586 = vld [vmem:[%s1226 + $0x78] sm:$0xff]
        %v1587 = vld [vmem:[%s1226 + $0x80] sm:$0xf]
        %v1588 = vld [vmem:[%s1226 + $0x84] sm:$0xff]
        %v1589 = vld [vmem:[%s1226 + $0x8c] sm:$0xf]
        %v1590 = vld [vmem:[%s1226 + $0x90] sm:$0xff]
        %v1591 = vld [vmem:[%s1226 + $0x98] sm:$0xf]
        %v1592 = vld [vmem:[%s1226 + $0x9c] sm:$0xff]
        %v1593 = vld [vmem:[%s1226 + $0xa4] sm:$0xf]
        %v1594 = vld [vmem:[%s1226 + $0xa8] sm:$0xff]
        %v1595 = vld [vmem:[%s1226 + $0xb0] sm:$0xf]
        %v1596 = vld [vmem:[%s1226 + $0xb4] sm:$0xff]
        %v1597 = vld [vmem:[%s1226 + $0xbc] sm:$0xf]
        %v1598 = vld [vmem:[%s1230] sm:$0x7]
        %v1600 = vlaneseq
        %v1601 = vshrl.u32 %v1600, 7
        %v1602 = vsub.s32 0, %v1601
        %v1603 = vrot.slane %v1598, %v1602
        %v1604 = vlaneseq
        %v1605 = vshrl.u32 %v1604, 7
        %v1606 = vsub.s32 1, %v1605
        %v1607 = vrot.slane %v1598, %v1606
        %v1608 = vlaneseq
        %v1609 = vshrl.u32 %v1608, 7
        %v1610 = vsub.s32 2, %v1609
        %v1611 = vrot.slane %v1598, %v1610
        %v1647 = vunpack.c.l.b16 %v1566
        %v1648 = vunpack.c.h.b16 %v1566
        %v1649 = vunpack.c.l.b16 %v1567
        %v1650 = vunpack.c.l.b16 %v1568
        %v1651 = vunpack.c.h.b16 %v1568
        %v1652 = vunpack.c.l.b16 %v1569
        %v1653 = vunpack.c.l.b16 %v1570
        %v1654 = vunpack.c.h.b16 %v1570
        %v1655 = vunpack.c.l.b16 %v1571
        %v1656 = vunpack.c.l.b16 %v1572
        %v1657 = vunpack.c.h.b16 %v1572
        %v1658 = vunpack.c.l.b16 %v1573
        %v1659 = vunpack.c.l.b16 %v1574
        %v1660 = vunpack.c.h.b16 %v1574
        %v1661 = vunpack.c.l.b16 %v1575
        %v1662 = vunpack.c.l.b16 %v1576
        %v1663 = vunpack.c.h.b16 %v1576
        %v1664 = vunpack.c.l.b16 %v1577
        %v1665 = vunpack.c.l.b16 %v1578
        %v1666 = vunpack.c.h.b16 %v1578
        %v1667 = vunpack.c.l.b16 %v1579
        %v1668 = vunpack.c.l.b16 %v1580
        %v1669 = vunpack.c.h.b16 %v1580
        %v1670 = vunpack.c.l.b16 %v1581
        %v1671 = vunpack.c.l.b16 %v1582
        %v1672 = vunpack.c.h.b16 %v1582
        %v1673 = vunpack.c.l.b16 %v1583
        %v1674 = vunpack.c.l.b16 %v1584
        %v1675 = vunpack.c.h.b16 %v1584
        %v1676 = vunpack.c.l.b16 %v1585
        %v1677 = vunpack.c.l.b16 %v1586
        %v1678 = vunpack.c.h.b16 %v1586
        %v1679 = vunpack.c.l.b16 %v1587
        %v1680 = vunpack.c.l.b16 %v1588
        %v1681 = vunpack.c.h.b16 %v1588
        %v1682 = vunpack.c.l.b16 %v1589
        %v1683 = vunpack.c.l.b16 %v1590
        %v1684 = vunpack.c.h.b16 %v1590
        %v1685 = vunpack.c.l.b16 %v1591
        %v1686 = vunpack.c.l.b16 %v1592
        %v1687 = vunpack.c.h.b16 %v1592
        %v1688 = vunpack.c.l.b16 %v1593
        %v1689 = vunpack.c.l.b16 %v1594
        %v1690 = vunpack.c.h.b16 %v1594
        %v1691 = vunpack.c.l.b16 %v1595
        %v1692 = vunpack.c.l.b16 %v1596
        %v1693 = vunpack.c.h.b16 %v1596
        %v1694 = vunpack.c.l.b16 %v1597
        %v1695 = vpack.c.b16 %v1650, %v1647
        %v1696 = vpack.c.b16 %v1651, %v1648
        %v1697 = vpack.c.b16 %v1652, %v1649
        %v1698 = vpack.c.b16 %v1656, %v1653
        %v1699 = vpack.c.b16 %v1657, %v1654
        %v1700 = vpack.c.b16 %v1658, %v1655
        %v1701 = vpack.c.b16 %v1662, %v1659
        %v1702 = vpack.c.b16 %v1663, %v1660
        %v1703 = vpack.c.b16 %v1664, %v1661
        %v1704 = vpack.c.b16 %v1668, %v1665
        %v1705 = vpack.c.b16 %v1669, %v1666
        %v1706 = vpack.c.b16 %v1670, %v1667
        %v1707 = vpack.c.b16 %v1674, %v1671
        %v1708 = vpack.c.b16 %v1675, %v1672
        %v1709 = vpack.c.b16 %v1676, %v1673
        %v1710 = vpack.c.b16 %v1680, %v1677
        %v1711 = vpack.c.b16 %v1681, %v1678
        %v1712 = vpack.c.b16 %v1682, %v1679
        %v1713 = vpack.c.b16 %v1686, %v1683
        %v1714 = vpack.c.b16 %v1687, %v1684
        %v1715 = vpack.c.b16 %v1688, %v1685
        %v1716 = vpack.c.b16 %v1692, %v1689
        %v1717 = vpack.c.b16 %v1693, %v1690
        %v1718 = vpack.c.b16 %v1694, %v1691
        %1743 = vmatprep.subr.bf16.mxu0 %v1696
        %1744 = vmatpush1.bf16.msra.mxu0 %v1695
        %1745 = vmatprep.subr.bf16.mxu0 %v1699
        %1746 = vmatpush1.bf16.msra.mxu0 %v1698
        %1747 = vmatprep.subr.bf16.mxu0 %v1702
        %1748 = vmatpush1.bf16.msra.mxu0 %v1701
        %1749 = vmatprep.subr.bf16.mxu0 %v1705
        %1750 = vmatpush1.bf16.msra.mxu0 %v1704
        %1751 = vmatprep.subr.bf16.mxu0 %v1708
        %1752 = vmatpush1.bf16.msra.mxu0 %v1707
        %1753 = vmatprep.subr.bf16.mxu0 %v1711
        %1754 = vmatpush1.bf16.msra.mxu0 %v1710
        %1755 = vmatprep.subr.bf16.mxu0 %v1714
        %1756 = vmatpush1.bf16.msra.mxu0 %v1713
        %1757 = vmatprep.subr.bf16.mxu0 %v1717
        %1758 = vmatpush1.bf16.msra.mxu0 %v1716
        %1759 = vmatprep.subr.bf16.mxu0 0
        %1760 = vmatpush1.bf16.msra.mxu0 0
        %1761 = vmatprep.subr.bf16.mxu0 0
        %1762 = vmatpush1.bf16.msra.mxu0 0
        %1763 = vmatprep.subr.bf16.mxu0 0
        %1764 = vmatpush1.bf16.msra.mxu0 0
        %1765 = vmatprep.subr.bf16.mxu0 0
        %1766 = vmatpush1.bf16.msra.mxu0 0
        %1767 = vmatprep.subr.bf16.mxu0 0
        %1768 = vmatpush1.bf16.msra.mxu0 0
        %1769 = vmatprep.subr.bf16.mxu0 0
        %1770 = vmatpush1.bf16.msra.mxu0 0
        %1771 = vmatprep.subr.bf16.mxu0 0
        %1772 = vmatpush1.bf16.msra.mxu0 0
        %1773 = vmatprep.subr.bf16.mxu0 0
        %1774 = vmatpush1.bf16.msra.mxu0 0
        %1775 = vmatprep.mubr.bf16.mxu0 0
        %1776 = vmatmul.mubr.bf16.gmra.mrb[0].mxu0 %v1565
        %v1777 = vpop.f32.mrb[0].mxu0
        %v1778 = vadd.f32 %v1603, %v1777
        %v1779 = vpop.f32.mrb[0].mxu0
        %v1780 = vadd.f32 %v1607, %v1779
        %v1781 = vpop.f32.mrb[0].mxu0
        %v1782 = vadd.f32 %v1603, %v1781
        %v1783 = vpop.f32.mrb[0].mxu0
        %v1784 = vadd.f32 %v1607, %v1783
        %1785 = vdwg.mxu0
        %1786 = vmatprep.subr.bf16.mxu0 0
        %1787 = vmatpush1.bf16.msra.mxu0 %v1697
        %1788 = vmatprep.subr.bf16.mxu0 0
        %1789 = vmatpush1.bf16.msra.mxu0 %v1700
        %1790 = vmatprep.subr.bf16.mxu0 0
        %1791 = vmatpush1.bf16.msra.mxu0 %v1703
        %1792 = vmatprep.subr.bf16.mxu0 0
        %1793 = vmatpush1.bf16.msra.mxu0 %v1706
        %1794 = vmatprep.subr.bf16.mxu0 0
        %1795 = vmatpush1.bf16.msra.mxu0 %v1709
        %1796 = vmatprep.subr.bf16.mxu0 0
        %1797 = vmatpush1.bf16.msra.mxu0 %v1712
        %1798 = vmatprep.subr.bf16.mxu0 0
        %1799 = vmatpush1.bf16.msra.mxu0 %v1715
        %1800 = vmatprep.subr.bf16.mxu0 0
        %1801 = vmatpush1.bf16.msra.mxu0 %v1718
        %1802 = vmatprep.subr.bf16.mxu0 0
        %1803 = vmatpush1.bf16.msra.mxu0 0
        %1804 = vmatprep.subr.bf16.mxu0 0
        %1805 = vmatpush1.bf16.msra.mxu0 0
        %1806 = vmatprep.subr.bf16.mxu0 0
        %1807 = vmatpush1.bf16.msra.mxu0 0
        %1808 = vmatprep.subr.bf16.mxu0 0
        %1809 = vmatpush1.bf16.msra.mxu0 0
        %1810 = vmatprep.subr.bf16.mxu0 0
        %1811 = vmatpush1.bf16.msra.mxu0 0
        %1812 = vmatprep.subr.bf16.mxu0 0
        %1813 = vmatpush1.bf16.msra.mxu0 0
        %1814 = vmatprep.subr.bf16.mxu0 0
        %1815 = vmatpush1.bf16.msra.mxu0 0
        %1816 = vmatprep.subr.bf16.mxu0 0
        %1817 = vmatpush1.bf16.msra.mxu0 0
        %1818 = vmatprep.mubr.bf16.mxu0 0
        %1819 = vmatmul.mubr.bf16.gmra.mrb[0].mxu0 %v1565
        %v1820 = vpop.f32.mrb[0].mxu0
        %v1821 = vadd.f32 %v1611, %v1820
        %v1822 = vpop.f32.mrb[0].mxu0
        %v1823 = vpop.f32.mrb[0].mxu0
        %v1824 = vadd.f32 %v1611, %v1823
        %v1825 = vpop.f32.mrb[0].mxu0
        %1826 = vdwg.mxu0
        %1827 = vrot.lane.b32.xlu0 %v1778, 124
        %v1828 = vpop.permute.xlu0 %1827
        %1829 = vrot.lane.b32.xlu0 %v1782, 124
        %v1830 = vpop.permute.xlu0 %1829
        %1831 = vrot.lane.b32.xlu0 %v1778, 4
        %v1832 = vpop.permute.xlu0 %1831
        %1833 = vrot.lane.b32.xlu0 %v1782, 4
        %v1834 = vpop.permute.xlu0 %1833
        %v1835 = vmul.f32 %v1778, %v1323
        %v1836 = vmul.f32 %v1782, %v1324
        %v1837 = vmul.f32 %v1828, %v1351
        %v1838 = vmul.f32 %v1830, %v1352
        %v1839 = vadd.f32 %v1835, %v1837
        %v1840 = vadd.f32 %v1836, %v1838
        %v1841 = vmul.f32 %v1832, %v1379
        %v1842 = vmul.f32 %v1834, %v1380
        %v1843 = vadd.f32 %v1839, %v1841
        %v1844 = vadd.f32 %v1840, %v1842
        %1845 = vrot.lane.b32.xlu0 %v1780, 124
        %v1846 = vpop.permute.xlu0 %1845
        %1847 = vrot.lane.b32.xlu0 %v1784, 124
        %v1848 = vpop.permute.xlu0 %1847
        %1849 = vrot.lane.b32.xlu0 %v1780, 4
        %v1850 = vpop.permute.xlu0 %1849
        %1851 = vrot.lane.b32.xlu0 %v1784, 4
        %v1852 = vpop.permute.xlu0 %1851
        %v1853 = vmul.f32 %v1780, %v1323
        %v1854 = vmul.f32 %v1784, %v1324
        %v1855 = vmul.f32 %v1846, %v1351
        %v1856 = vmul.f32 %v1848, %v1352
        %v1857 = vadd.f32 %v1853, %v1855
        %v1858 = vadd.f32 %v1854, %v1856
        %v1859 = vmul.f32 %v1850, %v1379
        %v1860 = vmul.f32 %v1852, %v1380
        %v1861 = vadd.f32 %v1857, %v1859
        %v1862 = vadd.f32 %v1858, %v1860
        %v1863 = vpack.c.bf16 %v1844, %v1843
        %v1865 = vunpack.c.l.b16 %v1863
        %v1866 = vunpack.c.h.b16 %v1863
        %v1867 = vpack.c.b16 %v1865, %v1865
        %v1868 = vpack.c.b16 %v1866, %v1866
        %1869 = vrot.lane.b32.xlu0 %v1867, 96
        %v1870 = vpop.permute.xlu0 %1869
        %1871 = vrot.lane.b32.xlu0 %v1868, 96
        %v1872 = vpop.permute.xlu0 %1871
        %1873 = vrot.lane.b32.xlu0 %v1867, 64
        %v1874 = vpop.permute.xlu0 %1873
        %1875 = vrot.lane.b32.xlu0 %v1868, 64
        %v1876 = vpop.permute.xlu0 %1875
        %1877 = vrot.lane.b32.xlu0 %v1867, 32
        %v1878 = vpop.permute.xlu0 %1877
        %1879 = vrot.lane.b32.xlu0 %v1868, 32
        %v1880 = vpop.permute.xlu0 %1879
        %v1881 = vpack.c.bf16 %v1862, %v1861
        %v1883 = vunpack.c.l.b16 %v1881
        %v1884 = vunpack.c.h.b16 %v1881
        %v1885 = vpack.c.b16 %v1883, %v1883
        %v1886 = vpack.c.b16 %v1884, %v1884
        %1887 = vrot.lane.b32.xlu0 %v1885, 96
        %v1888 = vpop.permute.xlu0 %1887
        %1889 = vrot.lane.b32.xlu0 %v1886, 96
        %v1890 = vpop.permute.xlu0 %1889
        %1891 = vrot.lane.b32.xlu0 %v1885, 64
        %v1892 = vpop.permute.xlu0 %1891
        %1893 = vrot.lane.b32.xlu0 %v1886, 64
        %v1894 = vpop.permute.xlu0 %1893
        %1895 = vrot.lane.b32.xlu0 %v1885, 32
        %v1896 = vpop.permute.xlu0 %1895
        %1897 = vrot.lane.b32.xlu0 %v1886, 32
        %v1898 = vpop.permute.xlu0 %1897
        %v1899 = vpack.c.bf16 %v1824, %v1821
        %v1901 = vunpack.c.l.b16 %v1899
        %v1902 = vunpack.c.h.b16 %v1899
        %v1903 = vpack.c.b16 %v1901, %v1901
        %v1904 = vpack.c.b16 %v1902, %v1902
        %1905 = vrot.lane.b32.xlu0 %v1903, 96
        %v1906 = vpop.permute.xlu0 %1905
        %1907 = vrot.lane.b32.xlu0 %v1904, 96
        %v1908 = vpop.permute.xlu0 %1907
        %1909 = vrot.lane.b32.xlu0 %v1903, 64
        %v1910 = vpop.permute.xlu0 %1909
        %1911 = vrot.lane.b32.xlu0 %v1904, 64
        %v1912 = vpop.permute.xlu0 %1911
        %1913 = vrot.lane.b32.xlu0 %v1903, 32
        %v1914 = vpop.permute.xlu0 %1913
        %1915 = vrot.lane.b32.xlu0 %v1904, 32
        %v1916 = vpop.permute.xlu0 %1915
        %v1918 = vsel %vm1316, %v1867, 0
        %v1921 = vsel %vm1316, %v1885, 0
        %1923 = vmatprep.subr.bf16.mxu0 0
        %1924 = vmatpush1.bf16.xpose.msra.mxu0 %v1921
        %1925 = vmatprep.subr.bf16.mxu0 0
        %1926 = vmatpush1.bf16.xpose.msra.mxu0 0
        %1927 = vmatprep.subr.bf16.mxu0 0
        %1928 = vmatpush1.bf16.xpose.msra.mxu0 0
        %1929 = vmatprep.subr.bf16.mxu0 0
        %1930 = vmatpush1.bf16.xpose.msra.mxu0 0
        %1931 = vmatprep.subr.bf16.mxu0 0
        %1932 = vmatpush1.bf16.xpose.msra.mxu0 0
        %1933 = vmatprep.subr.bf16.mxu0 0
        %1934 = vmatpush1.bf16.xpose.msra.mxu0 0
        %1935 = vmatprep.subr.bf16.mxu0 0
        %1936 = vmatpush1.bf16.xpose.msra.mxu0 0
        %1937 = vmatprep.subr.bf16.mxu0 0
        %1938 = vmatpush1.bf16.xpose.msra.mxu0 0
        %1939 = vmatprep.subr.bf16.mxu0 0
        %1940 = vmatpush1.bf16.xpose.msra.mxu0 0
        %1941 = vmatprep.subr.bf16.mxu0 0
        %1942 = vmatpush1.bf16.xpose.msra.mxu0 0
        %1943 = vmatprep.subr.bf16.mxu0 0
        %1944 = vmatpush1.bf16.xpose.msra.mxu0 0
        %1945 = vmatprep.subr.bf16.mxu0 0
        %1946 = vmatpush1.bf16.xpose.msra.mxu0 0
        %1947 = vmatprep.subr.bf16.mxu0 0
        %1948 = vmatpush1.bf16.xpose.msra.mxu0 0
        %1949 = vmatprep.subr.bf16.mxu0 0
        %1950 = vmatpush1.bf16.xpose.msra.mxu0 0
        %1951 = vmatprep.subr.bf16.mxu0 0
        %1952 = vmatpush1.bf16.xpose.msra.mxu0 0
        %1953 = vmatprep.subr.bf16.mxu0 0
        %1954 = vmatpush1.bf16.xpose.msra.mxu0 0
        %1955 = vmatprep.mubr.bf16.mxu0 0
        %1956 = vmatmul.mubr.bf16.gmra.mrb[0].mxu0 %v1918
        %v1957 = vpop.f32.mrb[0].mxu0
        %v1958 = vadd.f32 0.0, %v1957
        %v1959 = vpop.f32.mrb[0].mxu0
        %v1960 = vpop.f32.mrb[0].mxu0
        %v1961 = vpop.f32.mrb[0].mxu0
        %1962 = vdwg.mxu0
        %v1964 = vsel %vm1316, %v1868, 0
        %v1967 = vsel %vm1316, %v1886, 0
        %1969 = vmatprep.subr.bf16.mxu0 0
        %1970 = vmatpush1.bf16.xpose.msra.mxu0 %v1967
        %1971 = vmatprep.subr.bf16.mxu0 0
        %1972 = vmatpush1.bf16.xpose.msra.mxu0 0
        %1973 = vmatprep.subr.bf16.mxu0 0
        %1974 = vmatpush1.bf16.xpose.msra.mxu0 0
        %1975 = vmatprep.subr.bf16.mxu0 0
        %1976 = vmatpush1.bf16.xpose.msra.mxu0 0
        %1977 = vmatprep.subr.bf16.mxu0 0
        %1978 = vmatpush1.bf16.xpose.msra.mxu0 0
        %1979 = vmatprep.subr.bf16.mxu0 0
        %1980 = vmatpush1.bf16.xpose.msra.mxu0 0
        %1981 = vmatprep.subr.bf16.mxu0 0
        %1982 = vmatpush1.bf16.xpose.msra.mxu0 0
        %1983 = vmatprep.subr.bf16.mxu0 0
        %1984 = vmatpush1.bf16.xpose.msra.mxu0 0
        %1985 = vmatprep.subr.bf16.mxu0 0
        %1986 = vmatpush1.bf16.xpose.msra.mxu0 0
        %1987 = vmatprep.subr.bf16.mxu0 0
        %1988 = vmatpush1.bf16.xpose.msra.mxu0 0
        %1989 = vmatprep.subr.bf16.mxu0 0
        %1990 = vmatpush1.bf16.xpose.msra.mxu0 0
        %1991 = vmatprep.subr.bf16.mxu0 0
        %1992 = vmatpush1.bf16.xpose.msra.mxu0 0
        %1993 = vmatprep.subr.bf16.mxu0 0
        %1994 = vmatpush1.bf16.xpose.msra.mxu0 0
        %1995 = vmatprep.subr.bf16.mxu0 0
        %1996 = vmatpush1.bf16.xpose.msra.mxu0 0
        %1997 = vmatprep.subr.bf16.mxu0 0
        %1998 = vmatpush1.bf16.xpose.msra.mxu0 0
        %1999 = vmatprep.subr.bf16.mxu0 0
        %2000 = vmatpush1.bf16.xpose.msra.mxu0 0
        %2001 = vmatprep.mubr.bf16.mxu0 0
        %2002 = vmatmul.mubr.bf16.gmra.mrb[0].mxu0 %v1964
        %v2003 = vpop.f32.mrb[0].mxu0
        %v2004 = vadd.f32 0.0, %v2003
        %v2005 = vpop.f32.mrb[0].mxu0
        %v2006 = vpop.f32.mrb[0].mxu0
        %v2007 = vpop.f32.mrb[0].mxu0
        %2008 = vdwg.mxu0
        %v2010 = vsel %vm1316, %v1870, 0
        %v2013 = vsel %vm1316, %v1888, 0
        %2015 = vmatprep.subr.bf16.mxu0 0
        %2016 = vmatpush1.bf16.xpose.msra.mxu0 %v2013
        %2017 = vmatprep.subr.bf16.mxu0 0
        %2018 = vmatpush1.bf16.xpose.msra.mxu0 0
        %2019 = vmatprep.subr.bf16.mxu0 0
        %2020 = vmatpush1.bf16.xpose.msra.mxu0 0
        %2021 = vmatprep.subr.bf16.mxu0 0
        %2022 = vmatpush1.bf16.xpose.msra.mxu0 0
        %2023 = vmatprep.subr.bf16.mxu0 0
        %2024 = vmatpush1.bf16.xpose.msra.mxu0 0
        %2025 = vmatprep.subr.bf16.mxu0 0
        %2026 = vmatpush1.bf16.xpose.msra.mxu0 0
        %2027 = vmatprep.subr.bf16.mxu0 0
        %2028 = vmatpush1.bf16.xpose.msra.mxu0 0
        %2029 = vmatprep.subr.bf16.mxu0 0
        %2030 = vmatpush1.bf16.xpose.msra.mxu0 0
        %2031 = vmatprep.subr.bf16.mxu0 0
        %2032 = vmatpush1.bf16.xpose.msra.mxu0 0
        %2033 = vmatprep.subr.bf16.mxu0 0
        %2034 = vmatpush1.bf16.xpose.msra.mxu0 0
        %2035 = vmatprep.subr.bf16.mxu0 0
        %2036 = vmatpush1.bf16.xpose.msra.mxu0 0
        %2037 = vmatprep.subr.bf16.mxu0 0
        %2038 = vmatpush1.bf16.xpose.msra.mxu0 0
        %2039 = vmatprep.subr.bf16.mxu0 0
        %2040 = vmatpush1.bf16.xpose.msra.mxu0 0
        %2041 = vmatprep.subr.bf16.mxu0 0
        %2042 = vmatpush1.bf16.xpose.msra.mxu0 0
        %2043 = vmatprep.subr.bf16.mxu0 0
        %2044 = vmatpush1.bf16.xpose.msra.mxu0 0
        %2045 = vmatprep.subr.bf16.mxu0 0
        %2046 = vmatpush1.bf16.xpose.msra.mxu0 0
        %2047 = vmatprep.mubr.bf16.mxu0 0
        %2048 = vmatmul.mubr.bf16.gmra.mrb[0].mxu0 %v2010
        %v2049 = vpop.f32.mrb[0].mxu0
        %v2050 = vadd.f32 0.0, %v2049
        %v2051 = vpop.f32.mrb[0].mxu0
        %v2052 = vpop.f32.mrb[0].mxu0
        %v2053 = vpop.f32.mrb[0].mxu0
        %2054 = vdwg.mxu0
        %v2056 = vsel %vm1316, %v1872, 0
        %v2059 = vsel %vm1316, %v1890, 0
        %2061 = vmatprep.subr.bf16.mxu0 0
        %2062 = vmatpush1.bf16.xpose.msra.mxu0 %v2059
        %2063 = vmatprep.subr.bf16.mxu0 0
        %2064 = vmatpush1.bf16.xpose.msra.mxu0 0
        %2065 = vmatprep.subr.bf16.mxu0 0
        %2066 = vmatpush1.bf16.xpose.msra.mxu0 0
        %2067 = vmatprep.subr.bf16.mxu0 0
        %2068 = vmatpush1.bf16.xpose.msra.mxu0 0
        %2069 = vmatprep.subr.bf16.mxu0 0
        %2070 = vmatpush1.bf16.xpose.msra.mxu0 0
        %2071 = vmatprep.subr.bf16.mxu0 0
        %2072 = vmatpush1.bf16.xpose.msra.mxu0 0
        %2073 = vmatprep.subr.bf16.mxu0 0
        %2074 = vmatpush1.bf16.xpose.msra.mxu0 0
        %2075 = vmatprep.subr.bf16.mxu0 0
        %2076 = vmatpush1.bf16.xpose.msra.mxu0 0
        %2077 = vmatprep.subr.bf16.mxu0 0
        %2078 = vmatpush1.bf16.xpose.msra.mxu0 0
        %2079 = vmatprep.subr.bf16.mxu0 0
        %2080 = vmatpush1.bf16.xpose.msra.mxu0 0
        %2081 = vmatprep.subr.bf16.mxu0 0
        %2082 = vmatpush1.bf16.xpose.msra.mxu0 0
        %2083 = vmatprep.subr.bf16.mxu0 0
        %2084 = vmatpush1.bf16.xpose.msra.mxu0 0
        %2085 = vmatprep.subr.bf16.mxu0 0
        %2086 = vmatpush1.bf16.xpose.msra.mxu0 0
        %2087 = vmatprep.subr.bf16.mxu0 0
        %2088 = vmatpush1.bf16.xpose.msra.mxu0 0
        %2089 = vmatprep.subr.bf16.mxu0 0
        %2090 = vmatpush1.bf16.xpose.msra.mxu0 0
        %2091 = vmatprep.subr.bf16.mxu0 0
        %2092 = vmatpush1.bf16.xpose.msra.mxu0 0
        %2093 = vmatprep.mubr.bf16.mxu0 0
        %2094 = vmatmul.mubr.bf16.gmra.mrb[0].mxu0 %v2056
        %v2095 = vpop.f32.mrb[0].mxu0
        %v2096 = vadd.f32 0.0, %v2095
        %v2097 = vpop.f32.mrb[0].mxu0
        %v2098 = vpop.f32.mrb[0].mxu0
        %v2099 = vpop.f32.mrb[0].mxu0
        %2100 = vdwg.mxu0
        %v2102 = vsel %vm1316, %v1874, 0
        %v2105 = vsel %vm1316, %v1892, 0
        %2107 = vmatprep.subr.bf16.mxu0 0
        %2108 = vmatpush1.bf16.xpose.msra.mxu0 %v2105
        %2109 = vmatprep.subr.bf16.mxu0 0
        %2110 = vmatpush1.bf16.xpose.msra.mxu0 0
        %2111 = vmatprep.subr.bf16.mxu0 0
        %2112 = vmatpush1.bf16.xpose.msra.mxu0 0
        %2113 = vmatprep.subr.bf16.mxu0 0
        %2114 = vmatpush1.bf16.xpose.msra.mxu0 0
        %2115 = vmatprep.subr.bf16.mxu0 0
        %2116 = vmatpush1.bf16.xpose.msra.mxu0 0
        %2117 = vmatprep.subr.bf16.mxu0 0
        %2118 = vmatpush1.bf16.xpose.msra.mxu0 0
        %2119 = vmatprep.subr.bf16.mxu0 0
        %2120 = vmatpush1.bf16.xpose.msra.mxu0 0
        %2121 = vmatprep.subr.bf16.mxu0 0
        %2122 = vmatpush1.bf16.xpose.msra.mxu0 0
        %2123 = vmatprep.subr.bf16.mxu0 0
        %2124 = vmatpush1.bf16.xpose.msra.mxu0 0
        %2125 = vmatprep.subr.bf16.mxu0 0
        %2126 = vmatpush1.bf16.xpose.msra.mxu0 0
        %2127 = vmatprep.subr.bf16.mxu0 0
        %2128 = vmatpush1.bf16.xpose.msra.mxu0 0
        %2129 = vmatprep.subr.bf16.mxu0 0
        %2130 = vmatpush1.bf16.xpose.msra.mxu0 0
        %2131 = vmatprep.subr.bf16.mxu0 0
        %2132 = vmatpush1.bf16.xpose.msra.mxu0 0
        %2133 = vmatprep.subr.bf16.mxu0 0
        %2134 = vmatpush1.bf16.xpose.msra.mxu0 0
        %2135 = vmatprep.subr.bf16.mxu0 0
        %2136 = vmatpush1.bf16.xpose.msra.mxu0 0
        %2137 = vmatprep.subr.bf16.mxu0 0
        %2138 = vmatpush1.bf16.xpose.msra.mxu0 0
        %2139 = vmatprep.mubr.bf16.mxu0 0
        %2140 = vmatmul.mubr.bf16.gmra.mrb[0].mxu0 %v2102
        %v2141 = vpop.f32.mrb[0].mxu0
        %v2142 = vadd.f32 0.0, %v2141
        %v2143 = vpop.f32.mrb[0].mxu0
        %v2144 = vpop.f32.mrb[0].mxu0
        %v2145 = vpop.f32.mrb[0].mxu0
        %2146 = vdwg.mxu0
        %v2148 = vsel %vm1316, %v1876, 0
        %v2151 = vsel %vm1316, %v1894, 0
        %2153 = vmatprep.subr.bf16.mxu0 0
        %2154 = vmatpush1.bf16.xpose.msra.mxu0 %v2151
        %2155 = vmatprep.subr.bf16.mxu0 0
        %2156 = vmatpush1.bf16.xpose.msra.mxu0 0
        %2157 = vmatprep.subr.bf16.mxu0 0
        %2158 = vmatpush1.bf16.xpose.msra.mxu0 0
        %2159 = vmatprep.subr.bf16.mxu0 0
        %2160 = vmatpush1.bf16.xpose.msra.mxu0 0
        %2161 = vmatprep.subr.bf16.mxu0 0
        %2162 = vmatpush1.bf16.xpose.msra.mxu0 0
        %2163 = vmatprep.subr.bf16.mxu0 0
        %2164 = vmatpush1.bf16.xpose.msra.mxu0 0
        %2165 = vmatprep.subr.bf16.mxu0 0
        %2166 = vmatpush1.bf16.xpose.msra.mxu0 0
        %2167 = vmatprep.subr.bf16.mxu0 0
        %2168 = vmatpush1.bf16.xpose.msra.mxu0 0
        %2169 = vmatprep.subr.bf16.mxu0 0
        %2170 = vmatpush1.bf16.xpose.msra.mxu0 0
        %2171 = vmatprep.subr.bf16.mxu0 0
        %2172 = vmatpush1.bf16.xpose.msra.mxu0 0
        %2173 = vmatprep.subr.bf16.mxu0 0
        %2174 = vmatpush1.bf16.xpose.msra.mxu0 0
        %2175 = vmatprep.subr.bf16.mxu0 0
        %2176 = vmatpush1.bf16.xpose.msra.mxu0 0
        %2177 = vmatprep.subr.bf16.mxu0 0
        %2178 = vmatpush1.bf16.xpose.msra.mxu0 0
        %2179 = vmatprep.subr.bf16.mxu0 0
        %2180 = vmatpush1.bf16.xpose.msra.mxu0 0
        %2181 = vmatprep.subr.bf16.mxu0 0
        %2182 = vmatpush1.bf16.xpose.msra.mxu0 0
        %2183 = vmatprep.subr.bf16.mxu0 0
        %2184 = vmatpush1.bf16.xpose.msra.mxu0 0
        %2185 = vmatprep.mubr.bf16.mxu0 0
        %2186 = vmatmul.mubr.bf16.gmra.mrb[0].mxu0 %v2148
        %v2187 = vpop.f32.mrb[0].mxu0
        %v2188 = vadd.f32 0.0, %v2187
        %v2189 = vpop.f32.mrb[0].mxu0
        %v2190 = vpop.f32.mrb[0].mxu0
        %v2191 = vpop.f32.mrb[0].mxu0
        %2192 = vdwg.mxu0
        %v2194 = vsel %vm1316, %v1878, 0
        %v2197 = vsel %vm1316, %v1896, 0
        %2199 = vmatprep.subr.bf16.mxu0 0
        %2200 = vmatpush1.bf16.xpose.msra.mxu0 %v2197
        %2201 = vmatprep.subr.bf16.mxu0 0
        %2202 = vmatpush1.bf16.xpose.msra.mxu0 0
        %2203 = vmatprep.subr.bf16.mxu0 0
        %2204 = vmatpush1.bf16.xpose.msra.mxu0 0
        %2205 = vmatprep.subr.bf16.mxu0 0
        %2206 = vmatpush1.bf16.xpose.msra.mxu0 0
        %2207 = vmatprep.subr.bf16.mxu0 0
        %2208 = vmatpush1.bf16.xpose.msra.mxu0 0
        %2209 = vmatprep.subr.bf16.mxu0 0
        %2210 = vmatpush1.bf16.xpose.msra.mxu0 0
        %2211 = vmatprep.subr.bf16.mxu0 0
        %2212 = vmatpush1.bf16.xpose.msra.mxu0 0
        %2213 = vmatprep.subr.bf16.mxu0 0
        %2214 = vmatpush1.bf16.xpose.msra.mxu0 0
        %2215 = vmatprep.subr.bf16.mxu0 0
        %2216 = vmatpush1.bf16.xpose.msra.mxu0 0
        %2217 = vmatprep.subr.bf16.mxu0 0
        %2218 = vmatpush1.bf16.xpose.msra.mxu0 0
        %2219 = vmatprep.subr.bf16.mxu0 0
        %2220 = vmatpush1.bf16.xpose.msra.mxu0 0
        %2221 = vmatprep.subr.bf16.mxu0 0
        %2222 = vmatpush1.bf16.xpose.msra.mxu0 0
        %2223 = vmatprep.subr.bf16.mxu0 0
        %2224 = vmatpush1.bf16.xpose.msra.mxu0 0
        %2225 = vmatprep.subr.bf16.mxu0 0
        %2226 = vmatpush1.bf16.xpose.msra.mxu0 0
        %2227 = vmatprep.subr.bf16.mxu0 0
        %2228 = vmatpush1.bf16.xpose.msra.mxu0 0
        %2229 = vmatprep.subr.bf16.mxu0 0
        %2230 = vmatpush1.bf16.xpose.msra.mxu0 0
        %2231 = vmatprep.mubr.bf16.mxu0 0
        %2232 = vmatmul.mubr.bf16.gmra.mrb[0].mxu0 %v2194
        %v2233 = vpop.f32.mrb[0].mxu0
        %v2234 = vadd.f32 0.0, %v2233
        %v2235 = vpop.f32.mrb[0].mxu0
        %v2236 = vpop.f32.mrb[0].mxu0
        %v2237 = vpop.f32.mrb[0].mxu0
        %2238 = vdwg.mxu0
        %v2240 = vsel %vm1316, %v1880, 0
        %v2243 = vsel %vm1316, %v1898, 0
        %2245 = vmatprep.subr.bf16.mxu0 0
        %2246 = vmatpush1.bf16.xpose.msra.mxu0 %v2243
        %2247 = vmatprep.subr.bf16.mxu0 0
        %2248 = vmatpush1.bf16.xpose.msra.mxu0 0
        %2249 = vmatprep.subr.bf16.mxu0 0
        %2250 = vmatpush1.bf16.xpose.msra.mxu0 0
        %2251 = vmatprep.subr.bf16.mxu0 0
        %2252 = vmatpush1.bf16.xpose.msra.mxu0 0
        %2253 = vmatprep.subr.bf16.mxu0 0
        %2254 = vmatpush1.bf16.xpose.msra.mxu0 0
        %2255 = vmatprep.subr.bf16.mxu0 0
        %2256 = vmatpush1.bf16.xpose.msra.mxu0 0
        %2257 = vmatprep.subr.bf16.mxu0 0
        %2258 = vmatpush1.bf16.xpose.msra.mxu0 0
        %2259 = vmatprep.subr.bf16.mxu0 0
        %2260 = vmatpush1.bf16.xpose.msra.mxu0 0
        %2261 = vmatprep.subr.bf16.mxu0 0
        %2262 = vmatpush1.bf16.xpose.msra.mxu0 0
        %2263 = vmatprep.subr.bf16.mxu0 0
        %2264 = vmatpush1.bf16.xpose.msra.mxu0 0
        %2265 = vmatprep.subr.bf16.mxu0 0
        %2266 = vmatpush1.bf16.xpose.msra.mxu0 0
        %2267 = vmatprep.subr.bf16.mxu0 0
        %2268 = vmatpush1.bf16.xpose.msra.mxu0 0
        %2269 = vmatprep.subr.bf16.mxu0 0
        %2270 = vmatpush1.bf16.xpose.msra.mxu0 0
        %2271 = vmatprep.subr.bf16.mxu0 0
        %2272 = vmatpush1.bf16.xpose.msra.mxu0 0
        %2273 = vmatprep.subr.bf16.mxu0 0
        %2274 = vmatpush1.bf16.xpose.msra.mxu0 0
        %2275 = vmatprep.subr.bf16.mxu0 0
        %2276 = vmatpush1.bf16.xpose.msra.mxu0 0
        %2277 = vmatprep.mubr.bf16.mxu0 0
        %2278 = vmatmul.mubr.bf16.gmra.mrb[0].mxu0 %v2240
        %v2279 = vpop.f32.mrb[0].mxu0
        %v2280 = vadd.f32 0.0, %v2279
        %v2281 = vpop.f32.mrb[0].mxu0
        %v2282 = vpop.f32.mrb[0].mxu0
        %v2283 = vpop.f32.mrb[0].mxu0
        %2284 = vdwg.mxu0
        %v2285 = vmul.f32 %v1958, 0.35355338
        %v2286 = vmul.f32 %v2004, 0.35355338
        %v2287 = vmul.f32 %v2050, 0.35355338
        %v2288 = vmul.f32 %v2096, 0.35355338
        %v2289 = vmul.f32 %v2142, 0.35355338
        %v2290 = vmul.f32 %v2188, 0.35355338
        %v2291 = vmul.f32 %v2234, 0.35355338
        %v2292 = vmul.f32 %v2280, 0.35355338
        %v2293 = vsel %vm1293, 1, 0
        %vm2294 = vcmp.eq.s32.totalorder %v2293, 1
        %v2295 = vsel %vm2294, %v2285, -1e+30
        %v2296 = vsel %vm2294, %v2286, -1e+30
        %v2297 = vsel %vm2294, %v2287, -1e+30
        %v2298 = vsel %vm2294, %v2288, -1e+30
        %v2299 = vsel %vm2294, %v2289, -1e+30
        %v2300 = vsel %vm2294, %v2290, -1e+30
        %v2301 = vsel %vm2294, %v2291, -1e+30
        %v2302 = vsel %vm2294, %v2292, -1e+30
        %vm2303 = vcmask 64512
        %v2304 = vsel %vm2303, %v2295, -inf
        %2305 = vmax.xlane.f32.xlu0 %v2304
        %v2306 = vpop.xlane.xlu0 %2305
        %v2307 = vsel %vm2303, %v2296, -inf
        %2308 = vmax.xlane.f32.xlu0 %v2307
        %v2309 = vpop.xlane.xlu0 %2308
        %v2310 = vsel %vm2303, %v2297, -inf
        %2311 = vmax.xlane.f32.xlu0 %v2310
        %v2312 = vpop.xlane.xlu0 %2311
        %v2313 = vsel %vm2303, %v2298, -inf
        %2314 = vmax.xlane.f32.xlu0 %v2313
        %v2315 = vpop.xlane.xlu0 %2314
        %v2316 = vsel %vm2303, %v2299, -inf
        %2317 = vmax.xlane.f32.xlu0 %v2316
        %v2318 = vpop.xlane.xlu0 %2317
        %v2319 = vsel %vm2303, %v2300, -inf
        %2320 = vmax.xlane.f32.xlu0 %v2319
        %v2321 = vpop.xlane.xlu0 %2320
        %v2322 = vsel %vm2303, %v2301, -inf
        %2323 = vmax.xlane.f32.xlu0 %v2322
        %v2324 = vpop.xlane.xlu0 %2323
        %v2325 = vsel %vm2303, %v2302, -inf
        %2326 = vmax.xlane.f32.xlu0 %v2325
        %v2327 = vpop.xlane.xlu0 %2326
        %v2328 = vsub.f32 %v2295, %v2306
        %v2329 = vsub.f32 %v2296, %v2309
        %v2330 = vsub.f32 %v2297, %v2312
        %v2331 = vsub.f32 %v2298, %v2315
        %v2332 = vsub.f32 %v2299, %v2318
        %v2333 = vsub.f32 %v2300, %v2321
        %v2334 = vsub.f32 %v2301, %v2324
        %v2335 = vsub.f32 %v2302, %v2327
        %v2336 = vmul.f32 %v2328, 1.442695
        %v2337 = vpow.pop %v2336
        %v2338 = vmul.f32 %v2329, 1.442695
        %v2339 = vpow.pop %v2338
        %v2340 = vmul.f32 %v2330, 1.442695
        %v2341 = vpow.pop %v2340
        %v2342 = vmul.f32 %v2331, 1.442695
        %v2343 = vpow.pop %v2342
        %v2344 = vmul.f32 %v2332, 1.442695
        %v2345 = vpow.pop %v2344
        %v2346 = vmul.f32 %v2333, 1.442695
        %v2347 = vpow.pop %v2346
        %v2348 = vmul.f32 %v2334, 1.442695
        %v2349 = vpow.pop %v2348
        %v2350 = vmul.f32 %v2335, 1.442695
        %v2351 = vpow.pop %v2350
        %v2352 = vsel %vm2303, %v2337, 0.0
        %2353 = vadd.xlane.f32.xlu0 %v2352
        %v2354 = vpop.xlane.xlu0 %2353
        %v2355 = vsel %vm2303, %v2339, 0.0
        %2356 = vadd.xlane.f32.xlu0 %v2355
        %v2357 = vpop.xlane.xlu0 %2356
        %v2358 = vsel %vm2303, %v2341, 0.0
        %2359 = vadd.xlane.f32.xlu0 %v2358
        %v2360 = vpop.xlane.xlu0 %2359
        %v2361 = vsel %vm2303, %v2343, 0.0
        %2362 = vadd.xlane.f32.xlu0 %v2361
        %v2363 = vpop.xlane.xlu0 %2362
        %v2364 = vsel %vm2303, %v2345, 0.0
        %2365 = vadd.xlane.f32.xlu0 %v2364
        %v2366 = vpop.xlane.xlu0 %2365
        %v2367 = vsel %vm2303, %v2347, 0.0
        %2368 = vadd.xlane.f32.xlu0 %v2367
        %v2369 = vpop.xlane.xlu0 %2368
        %v2370 = vsel %vm2303, %v2349, 0.0
        %2371 = vadd.xlane.f32.xlu0 %v2370
        %v2372 = vpop.xlane.xlu0 %2371
        %v2373 = vsel %vm2303, %v2351, 0.0
        %2374 = vadd.xlane.f32.xlu0 %v2373
        %v2375 = vpop.xlane.xlu0 %2374
        %v2376 = vrcp.pop %v2354
        %v2377 = vrcp.pop %v2357
        %v2378 = vrcp.pop %v2360
        %v2379 = vrcp.pop %v2363
        %v2380 = vrcp.pop %v2366
        %v2381 = vrcp.pop %v2369
        %v2382 = vrcp.pop %v2372
        %v2383 = vrcp.pop %v2375
        %v2384 = vmul.f32 %v2337, %v2376
        %v2385 = vmul.f32 %v2339, %v2377
        %v2386 = vmul.f32 %v2341, %v2378
        %v2387 = vmul.f32 %v2343, %v2379
        %v2388 = vmul.f32 %v2345, %v2380
        %v2389 = vmul.f32 %v2347, %v2381
        %v2390 = vmul.f32 %v2349, %v2382
        %v2391 = vmul.f32 %v2351, %v2383
        %v2392 = vpack.c.bf16 %v2384, %v2384
        %v2393 = vpack.c.bf16 %v2385, %v2385
        %v2394 = vpack.c.bf16 %v2386, %v2386
        %v2395 = vpack.c.bf16 %v2387, %v2387
        %v2396 = vpack.c.bf16 %v2388, %v2388
        %v2397 = vpack.c.bf16 %v2389, %v2389
        %v2398 = vpack.c.bf16 %v2390, %v2390
        %v2399 = vpack.c.bf16 %v2391, %v2391
        %v2401 = vsel %vm2303, %v2392, 0
        %vm2403 = vcmask 1043456
        %v2405 = vsel %vm2403, %v1903, 0
        %2407 = vmatprep.subr.bf16.mxu0 0
        %2408 = vmatpush1.bf16.msra.mxu0 %v2405
        %2409 = vmatprep.subr.bf16.mxu0 0
        %2410 = vmatpush1.bf16.msra.mxu0 0
        %2411 = vmatprep.subr.bf16.mxu0 0
        %2412 = vmatpush1.bf16.msra.mxu0 0
        %2413 = vmatprep.subr.bf16.mxu0 0
        %2414 = vmatpush1.bf16.msra.mxu0 0
        %2415 = vmatprep.subr.bf16.mxu0 0
        %2416 = vmatpush1.bf16.msra.mxu0 0
        %2417 = vmatprep.subr.bf16.mxu0 0
        %2418 = vmatpush1.bf16.msra.mxu0 0
        %2419 = vmatprep.subr.bf16.mxu0 0
        %2420 = vmatpush1.bf16.msra.mxu0 0
        %2421 = vmatprep.subr.bf16.mxu0 0
        %2422 = vmatpush1.bf16.msra.mxu0 0
        %2423 = vmatprep.subr.bf16.mxu0 0
        %2424 = vmatpush1.bf16.msra.mxu0 0
        %2425 = vmatprep.subr.bf16.mxu0 0
        %2426 = vmatpush1.bf16.msra.mxu0 0
        %2427 = vmatprep.subr.bf16.mxu0 0
        %2428 = vmatpush1.bf16.msra.mxu0 0
        %2429 = vmatprep.subr.bf16.mxu0 0
        %2430 = vmatpush1.bf16.msra.mxu0 0
        %2431 = vmatprep.subr.bf16.mxu0 0
        %2432 = vmatpush1.bf16.msra.mxu0 0
        %2433 = vmatprep.subr.bf16.mxu0 0
        %2434 = vmatpush1.bf16.msra.mxu0 0
        %2435 = vmatprep.subr.bf16.mxu0 0
        %2436 = vmatpush1.bf16.msra.mxu0 0
        %2437 = vmatprep.subr.bf16.mxu0 0
        %2438 = vmatpush1.bf16.msra.mxu0 0
        %2439 = vmatprep.mubr.bf16.mxu0 0
        %2440 = vmatmul.mubr.bf16.gmra.mrb[0].mxu0 %v2401
        %v2441 = vpop.f32.mrb[0].mxu0
        %v2442 = vadd.f32 0.0, %v2441
        %v2443 = vpop.f32.mrb[0].mxu0
        %v2444 = vpop.f32.mrb[0].mxu0
        %v2445 = vpop.f32.mrb[0].mxu0
        %2446 = vdwg.mxu0
        %v2448 = vsel %vm2303, %v2393, 0
        %v2451 = vsel %vm2403, %v1904, 0
        %2453 = vmatprep.subr.bf16.mxu0 0
        %2454 = vmatpush1.bf16.msra.mxu0 %v2451
        %2455 = vmatprep.subr.bf16.mxu0 0
        %2456 = vmatpush1.bf16.msra.mxu0 0
        %2457 = vmatprep.subr.bf16.mxu0 0
        %2458 = vmatpush1.bf16.msra.mxu0 0
        %2459 = vmatprep.subr.bf16.mxu0 0
        %2460 = vmatpush1.bf16.msra.mxu0 0
        %2461 = vmatprep.subr.bf16.mxu0 0
        %2462 = vmatpush1.bf16.msra.mxu0 0
        %2463 = vmatprep.subr.bf16.mxu0 0
        %2464 = vmatpush1.bf16.msra.mxu0 0
        %2465 = vmatprep.subr.bf16.mxu0 0
        %2466 = vmatpush1.bf16.msra.mxu0 0
        %2467 = vmatprep.subr.bf16.mxu0 0
        %2468 = vmatpush1.bf16.msra.mxu0 0
        %2469 = vmatprep.subr.bf16.mxu0 0
        %2470 = vmatpush1.bf16.msra.mxu0 0
        %2471 = vmatprep.subr.bf16.mxu0 0
        %2472 = vmatpush1.bf16.msra.mxu0 0
        %2473 = vmatprep.subr.bf16.mxu0 0
        %2474 = vmatpush1.bf16.msra.mxu0 0
        %2475 = vmatprep.subr.bf16.mxu0 0
        %2476 = vmatpush1.bf16.msra.mxu0 0
        %2477 = vmatprep.subr.bf16.mxu0 0
        %2478 = vmatpush1.bf16.msra.mxu0 0
        %2479 = vmatprep.subr.bf16.mxu0 0
        %2480 = vmatpush1.bf16.msra.mxu0 0
        %2481 = vmatprep.subr.bf16.mxu0 0
        %2482 = vmatpush1.bf16.msra.mxu0 0
        %2483 = vmatprep.subr.bf16.mxu0 0
        %2484 = vmatpush1.bf16.msra.mxu0 0
        %2485 = vmatprep.mubr.bf16.mxu0 0
        %2486 = vmatmul.mubr.bf16.gmra.mrb[0].mxu0 %v2448
        %v2487 = vpop.f32.mrb[0].mxu0
        %v2488 = vadd.f32 0.0, %v2487
        %v2489 = vpop.f32.mrb[0].mxu0
        %v2490 = vpop.f32.mrb[0].mxu0
        %v2491 = vpop.f32.mrb[0].mxu0
        %2492 = vdwg.mxu0
        %v2494 = vsel %vm2303, %v2394, 0
        %v2497 = vsel %vm2403, %v1906, 0
        %2499 = vmatprep.subr.bf16.mxu0 0
        %2500 = vmatpush1.bf16.msra.mxu0 %v2497
        %2501 = vmatprep.subr.bf16.mxu0 0
        %2502 = vmatpush1.bf16.msra.mxu0 0
        %2503 = vmatprep.subr.bf16.mxu0 0
        %2504 = vmatpush1.bf16.msra.mxu0 0
        %2505 = vmatprep.subr.bf16.mxu0 0
        %2506 = vmatpush1.bf16.msra.mxu0 0
        %2507 = vmatprep.subr.bf16.mxu0 0
        %2508 = vmatpush1.bf16.msra.mxu0 0
        %2509 = vmatprep.subr.bf16.mxu0 0
        %2510 = vmatpush1.bf16.msra.mxu0 0
        %2511 = vmatprep.subr.bf16.mxu0 0
        %2512 = vmatpush1.bf16.msra.mxu0 0
        %2513 = vmatprep.subr.bf16.mxu0 0
        %2514 = vmatpush1.bf16.msra.mxu0 0
        %2515 = vmatprep.subr.bf16.mxu0 0
        %2516 = vmatpush1.bf16.msra.mxu0 0
        %2517 = vmatprep.subr.bf16.mxu0 0
        %2518 = vmatpush1.bf16.msra.mxu0 0
        %2519 = vmatprep.subr.bf16.mxu0 0
        %2520 = vmatpush1.bf16.msra.mxu0 0
        %2521 = vmatprep.subr.bf16.mxu0 0
        %2522 = vmatpush1.bf16.msra.mxu0 0
        %2523 = vmatprep.subr.bf16.mxu0 0
        %2524 = vmatpush1.bf16.msra.mxu0 0
        %2525 = vmatprep.subr.bf16.mxu0 0
        %2526 = vmatpush1.bf16.msra.mxu0 0
        %2527 = vmatprep.subr.bf16.mxu0 0
        %2528 = vmatpush1.bf16.msra.mxu0 0
        %2529 = vmatprep.subr.bf16.mxu0 0
        %2530 = vmatpush1.bf16.msra.mxu0 0
        %2531 = vmatprep.mubr.bf16.mxu0 0
        %2532 = vmatmul.mubr.bf16.gmra.mrb[0].mxu0 %v2494
        %v2533 = vpop.f32.mrb[0].mxu0
        %v2534 = vadd.f32 0.0, %v2533
        %v2535 = vpop.f32.mrb[0].mxu0
        %v2536 = vpop.f32.mrb[0].mxu0
        %v2537 = vpop.f32.mrb[0].mxu0
        %2538 = vdwg.mxu0
        %v2540 = vsel %vm2303, %v2395, 0
        %v2543 = vsel %vm2403, %v1908, 0
        %2545 = vmatprep.subr.bf16.mxu0 0
        %2546 = vmatpush1.bf16.msra.mxu0 %v2543
        %2547 = vmatprep.subr.bf16.mxu0 0
        %2548 = vmatpush1.bf16.msra.mxu0 0
        %2549 = vmatprep.subr.bf16.mxu0 0
        %2550 = vmatpush1.bf16.msra.mxu0 0
        %2551 = vmatprep.subr.bf16.mxu0 0
        %2552 = vmatpush1.bf16.msra.mxu0 0
        %2553 = vmatprep.subr.bf16.mxu0 0
        %2554 = vmatpush1.bf16.msra.mxu0 0
        %2555 = vmatprep.subr.bf16.mxu0 0
        %2556 = vmatpush1.bf16.msra.mxu0 0
        %2557 = vmatprep.subr.bf16.mxu0 0
        %2558 = vmatpush1.bf16.msra.mxu0 0
        %2559 = vmatprep.subr.bf16.mxu0 0
        %2560 = vmatpush1.bf16.msra.mxu0 0
        %2561 = vmatprep.subr.bf16.mxu0 0
        %2562 = vmatpush1.bf16.msra.mxu0 0
        %2563 = vmatprep.subr.bf16.mxu0 0
        %2564 = vmatpush1.bf16.msra.mxu0 0
        %2565 = vmatprep.subr.bf16.mxu0 0
        %2566 = vmatpush1.bf16.msra.mxu0 0
        %2567 = vmatprep.subr.bf16.mxu0 0
        %2568 = vmatpush1.bf16.msra.mxu0 0
        %2569 = vmatprep.subr.bf16.mxu0 0
        %2570 = vmatpush1.bf16.msra.mxu0 0
        %2571 = vmatprep.subr.bf16.mxu0 0
        %2572 = vmatpush1.bf16.msra.mxu0 0
        %2573 = vmatprep.subr.bf16.mxu0 0
        %2574 = vmatpush1.bf16.msra.mxu0 0
        %2575 = vmatprep.subr.bf16.mxu0 0
        %2576 = vmatpush1.bf16.msra.mxu0 0
        %2577 = vmatprep.mubr.bf16.mxu0 0
        %2578 = vmatmul.mubr.bf16.gmra.mrb[0].mxu0 %v2540
        %v2579 = vpop.f32.mrb[0].mxu0
        %v2580 = vadd.f32 0.0, %v2579
        %v2581 = vpop.f32.mrb[0].mxu0
        %v2582 = vpop.f32.mrb[0].mxu0
        %v2583 = vpop.f32.mrb[0].mxu0
        %2584 = vdwg.mxu0
        %v2586 = vsel %vm2303, %v2396, 0
        %v2589 = vsel %vm2403, %v1910, 0
        %2591 = vmatprep.subr.bf16.mxu0 0
        %2592 = vmatpush1.bf16.msra.mxu0 %v2589
        %2593 = vmatprep.subr.bf16.mxu0 0
        %2594 = vmatpush1.bf16.msra.mxu0 0
        %2595 = vmatprep.subr.bf16.mxu0 0
        %2596 = vmatpush1.bf16.msra.mxu0 0
        %2597 = vmatprep.subr.bf16.mxu0 0
        %2598 = vmatpush1.bf16.msra.mxu0 0
        %2599 = vmatprep.subr.bf16.mxu0 0
        %2600 = vmatpush1.bf16.msra.mxu0 0
        %2601 = vmatprep.subr.bf16.mxu0 0
        %2602 = vmatpush1.bf16.msra.mxu0 0
        %2603 = vmatprep.subr.bf16.mxu0 0
        %2604 = vmatpush1.bf16.msra.mxu0 0
        %2605 = vmatprep.subr.bf16.mxu0 0
        %2606 = vmatpush1.bf16.msra.mxu0 0
        %2607 = vmatprep.subr.bf16.mxu0 0
        %2608 = vmatpush1.bf16.msra.mxu0 0
        %2609 = vmatprep.subr.bf16.mxu0 0
        %2610 = vmatpush1.bf16.msra.mxu0 0
        %2611 = vmatprep.subr.bf16.mxu0 0
        %2612 = vmatpush1.bf16.msra.mxu0 0
        %2613 = vmatprep.subr.bf16.mxu0 0
        %2614 = vmatpush1.bf16.msra.mxu0 0
        %2615 = vmatprep.subr.bf16.mxu0 0
        %2616 = vmatpush1.bf16.msra.mxu0 0
        %2617 = vmatprep.subr.bf16.mxu0 0
        %2618 = vmatpush1.bf16.msra.mxu0 0
        %2619 = vmatprep.subr.bf16.mxu0 0
        %2620 = vmatpush1.bf16.msra.mxu0 0
        %2621 = vmatprep.subr.bf16.mxu0 0
        %2622 = vmatpush1.bf16.msra.mxu0 0
        %2623 = vmatprep.mubr.bf16.mxu0 0
        %2624 = vmatmul.mubr.bf16.gmra.mrb[0].mxu0 %v2586
        %v2625 = vpop.f32.mrb[0].mxu0
        %v2626 = vadd.f32 0.0, %v2625
        %v2627 = vpop.f32.mrb[0].mxu0
        %v2628 = vpop.f32.mrb[0].mxu0
        %v2629 = vpop.f32.mrb[0].mxu0
        %2630 = vdwg.mxu0
        %v2632 = vsel %vm2303, %v2397, 0
        %v2635 = vsel %vm2403, %v1912, 0
        %2637 = vmatprep.subr.bf16.mxu0 0
        %2638 = vmatpush1.bf16.msra.mxu0 %v2635
        %2639 = vmatprep.subr.bf16.mxu0 0
        %2640 = vmatpush1.bf16.msra.mxu0 0
        %2641 = vmatprep.subr.bf16.mxu0 0
        %2642 = vmatpush1.bf16.msra.mxu0 0
        %2643 = vmatprep.subr.bf16.mxu0 0
        %2644 = vmatpush1.bf16.msra.mxu0 0
        %2645 = vmatprep.subr.bf16.mxu0 0
        %2646 = vmatpush1.bf16.msra.mxu0 0
        %2647 = vmatprep.subr.bf16.mxu0 0
        %2648 = vmatpush1.bf16.msra.mxu0 0
        %2649 = vmatprep.subr.bf16.mxu0 0
        %2650 = vmatpush1.bf16.msra.mxu0 0
        %2651 = vmatprep.subr.bf16.mxu0 0
        %2652 = vmatpush1.bf16.msra.mxu0 0
        %2653 = vmatprep.subr.bf16.mxu0 0
        %2654 = vmatpush1.bf16.msra.mxu0 0
        %2655 = vmatprep.subr.bf16.mxu0 0
        %2656 = vmatpush1.bf16.msra.mxu0 0
        %2657 = vmatprep.subr.bf16.mxu0 0
        %2658 = vmatpush1.bf16.msra.mxu0 0
        %2659 = vmatprep.subr.bf16.mxu0 0
        %2660 = vmatpush1.bf16.msra.mxu0 0
        %2661 = vmatprep.subr.bf16.mxu0 0
        %2662 = vmatpush1.bf16.msra.mxu0 0
        %2663 = vmatprep.subr.bf16.mxu0 0
        %2664 = vmatpush1.bf16.msra.mxu0 0
        %2665 = vmatprep.subr.bf16.mxu0 0
        %2666 = vmatpush1.bf16.msra.mxu0 0
        %2667 = vmatprep.subr.bf16.mxu0 0
        %2668 = vmatpush1.bf16.msra.mxu0 0
        %2669 = vmatprep.mubr.bf16.mxu0 0
        %2670 = vmatmul.mubr.bf16.gmra.mrb[0].mxu0 %v2632
        %v2671 = vpop.f32.mrb[0].mxu0
        %v2672 = vadd.f32 0.0, %v2671
        %v2673 = vpop.f32.mrb[0].mxu0
        %v2674 = vpop.f32.mrb[0].mxu0
        %v2675 = vpop.f32.mrb[0].mxu0
        %2676 = vdwg.mxu0
        %v2678 = vsel %vm2303, %v2398, 0
        %v2681 = vsel %vm2403, %v1914, 0
        %2683 = vmatprep.subr.bf16.mxu0 0
        %2684 = vmatpush1.bf16.msra.mxu0 %v2681
        %2685 = vmatprep.subr.bf16.mxu0 0
        %2686 = vmatpush1.bf16.msra.mxu0 0
        %2687 = vmatprep.subr.bf16.mxu0 0
        %2688 = vmatpush1.bf16.msra.mxu0 0
        %2689 = vmatprep.subr.bf16.mxu0 0
        %2690 = vmatpush1.bf16.msra.mxu0 0
        %2691 = vmatprep.subr.bf16.mxu0 0
        %2692 = vmatpush1.bf16.msra.mxu0 0
        %2693 = vmatprep.subr.bf16.mxu0 0
        %2694 = vmatpush1.bf16.msra.mxu0 0
        %2695 = vmatprep.subr.bf16.mxu0 0
        %2696 = vmatpush1.bf16.msra.mxu0 0
        %2697 = vmatprep.subr.bf16.mxu0 0
        %2698 = vmatpush1.bf16.msra.mxu0 0
        %2699 = vmatprep.subr.bf16.mxu0 0
        %2700 = vmatpush1.bf16.msra.mxu0 0
        %2701 = vmatprep.subr.bf16.mxu0 0
        %2702 = vmatpush1.bf16.msra.mxu0 0
        %2703 = vmatprep.subr.bf16.mxu0 0
        %2704 = vmatpush1.bf16.msra.mxu0 0
        %2705 = vmatprep.subr.bf16.mxu0 0
        %2706 = vmatpush1.bf16.msra.mxu0 0
        %2707 = vmatprep.subr.bf16.mxu0 0
        %2708 = vmatpush1.bf16.msra.mxu0 0
        %2709 = vmatprep.subr.bf16.mxu0 0
        %2710 = vmatpush1.bf16.msra.mxu0 0
        %2711 = vmatprep.subr.bf16.mxu0 0
        %2712 = vmatpush1.bf16.msra.mxu0 0
        %2713 = vmatprep.subr.bf16.mxu0 0
        %2714 = vmatpush1.bf16.msra.mxu0 0
        %2715 = vmatprep.mubr.bf16.mxu0 0
        %2716 = vmatmul.mubr.bf16.gmra.mrb[0].mxu0 %v2678
        %v2717 = vpop.f32.mrb[0].mxu0
        %v2718 = vadd.f32 0.0, %v2717
        %v2719 = vpop.f32.mrb[0].mxu0
        %v2720 = vpop.f32.mrb[0].mxu0
        %v2721 = vpop.f32.mrb[0].mxu0
        %2722 = vdwg.mxu0
        %v2724 = vsel %vm2303, %v2399, 0
        %v2727 = vsel %vm2403, %v1916, 0
        %2729 = vmatprep.subr.bf16.mxu0 0
        %2730 = vmatpush1.bf16.msra.mxu0 %v2727
        %2731 = vmatprep.subr.bf16.mxu0 0
        %2732 = vmatpush1.bf16.msra.mxu0 0
        %2733 = vmatprep.subr.bf16.mxu0 0
        %2734 = vmatpush1.bf16.msra.mxu0 0
        %2735 = vmatprep.subr.bf16.mxu0 0
        %2736 = vmatpush1.bf16.msra.mxu0 0
        %2737 = vmatprep.subr.bf16.mxu0 0
        %2738 = vmatpush1.bf16.msra.mxu0 0
        %2739 = vmatprep.subr.bf16.mxu0 0
        %2740 = vmatpush1.bf16.msra.mxu0 0
        %2741 = vmatprep.subr.bf16.mxu0 0
        %2742 = vmatpush1.bf16.msra.mxu0 0
        %2743 = vmatprep.subr.bf16.mxu0 0
        %2744 = vmatpush1.bf16.msra.mxu0 0
        %2745 = vmatprep.subr.bf16.mxu0 0
        %2746 = vmatpush1.bf16.msra.mxu0 0
        %2747 = vmatprep.subr.bf16.mxu0 0
        %2748 = vmatpush1.bf16.msra.mxu0 0
        %2749 = vmatprep.subr.bf16.mxu0 0
        %2750 = vmatpush1.bf16.msra.mxu0 0
        %2751 = vmatprep.subr.bf16.mxu0 0
        %2752 = vmatpush1.bf16.msra.mxu0 0
        %2753 = vmatprep.subr.bf16.mxu0 0
        %2754 = vmatpush1.bf16.msra.mxu0 0
        %2755 = vmatprep.subr.bf16.mxu0 0
        %2756 = vmatpush1.bf16.msra.mxu0 0
        %2757 = vmatprep.subr.bf16.mxu0 0
        %2758 = vmatpush1.bf16.msra.mxu0 0
        %2759 = vmatprep.subr.bf16.mxu0 0
        %2760 = vmatpush1.bf16.msra.mxu0 0
        %2761 = vmatprep.mubr.bf16.mxu0 0
        %2762 = vmatmul.mubr.bf16.gmra.mrb[0].mxu0 %v2724
        %v2763 = vpop.f32.mrb[0].mxu0
        %v2764 = vadd.f32 0.0, %v2763
        %v2765 = vpop.f32.mrb[0].mxu0
        %v2766 = vpop.f32.mrb[0].mxu0
        %v2767 = vpop.f32.mrb[0].mxu0
        %2768 = vdwg.mxu0
        %2771 = vrot.lane.b32.xlu0 %v2534, 32
        %v2772 = vpop.permute.xlu0 %2771
        %2773 = vrot.lane.b32.xlu0 %v2580, 32
        %v2774 = vpop.permute.xlu0 %2773
        %2779 = vrot.lane.b32.xlu0 %v2626, 64
        %v2780 = vpop.permute.xlu0 %2779
        %2781 = vrot.lane.b32.xlu0 %v2672, 64
        %v2782 = vpop.permute.xlu0 %2781
        %2787 = vrot.lane.b32.xlu0 %v2718, 96
        %v2788 = vpop.permute.xlu0 %2787
        %2789 = vrot.lane.b32.xlu0 %v2764, 96
        %v2790 = vpop.permute.xlu0 %2789
        %v2793 = vsel %vm1316, %v2442, %v2772
        %v2794 = vsel %vm1316, %v2488, %v2774
        %v2795 = vsel %vm1319, %v2793, %v2780
        %v2796 = vsel %vm1319, %v2794, %v2782
        %v2797 = vsel %vm1322, %v2795, %v2788
        %v2798 = vsel %vm1322, %v2796, %v2790
        %v2799 = vpack.c.bf16 %v2798, %v2797
        %v2800 = vld [vmem:[%s1235] sm:$0xf]
        %v2801 = vld [vmem:[%s1235 + $0x4] sm:$0xf]
        %v2802 = vld [vmem:[%s1235 + $0x8] sm:$0xf]
        %v2803 = vld [vmem:[%s1235 + $0xc] sm:$0xf]
        %v2804 = vld [vmem:[%s1235 + $0x10] sm:$0xf]
        %v2805 = vld [vmem:[%s1235 + $0x14] sm:$0xf]
        %v2806 = vld [vmem:[%s1235 + $0x18] sm:$0xf]
        %v2807 = vld [vmem:[%s1235 + $0x1c] sm:$0xf]
        %v2808 = vld [vmem:[%s1235 + $0x20] sm:$0xf]
        %v2809 = vld [vmem:[%s1235 + $0x24] sm:$0xf]
        %v2810 = vld [vmem:[%s1235 + $0x28] sm:$0xf]
        %v2811 = vld [vmem:[%s1235 + $0x2c] sm:$0xf]
        %v2812 = vld [vmem:[%s1235 + $0x30] sm:$0xf]
        %v2813 = vld [vmem:[%s1235 + $0x34] sm:$0xf]
        %v2814 = vld [vmem:[%s1235 + $0x38] sm:$0xf]
        %v2815 = vld [vmem:[%s1235 + $0x3c] sm:$0xf]
        %v2816 = vld [vmem:[%s1238] sm:$0x1]
        %v2818 = vlaneseq
        %v2819 = vshrl.u32 %v2818, 7
        %v2820 = vsub.s32 0, %v2819
        %v2821 = vrot.slane %v2816, %v2820
        %v2839 = vunpack.c.l.b16 %v2800
        %v2840 = vunpack.c.l.b16 %v2801
        %v2841 = vunpack.c.l.b16 %v2802
        %v2842 = vunpack.c.l.b16 %v2803
        %v2843 = vunpack.c.l.b16 %v2804
        %v2844 = vunpack.c.l.b16 %v2805
        %v2845 = vunpack.c.l.b16 %v2806
        %v2846 = vunpack.c.l.b16 %v2807
        %v2847 = vunpack.c.l.b16 %v2808
        %v2848 = vunpack.c.l.b16 %v2809
        %v2849 = vunpack.c.l.b16 %v2810
        %v2850 = vunpack.c.l.b16 %v2811
        %v2851 = vunpack.c.l.b16 %v2812
        %v2852 = vunpack.c.l.b16 %v2813
        %v2853 = vunpack.c.l.b16 %v2814
        %v2854 = vunpack.c.l.b16 %v2815
        %v2855 = vpack.c.b16 %v2840, %v2839
        %v2856 = vpack.c.b16 %v2842, %v2841
        %v2857 = vpack.c.b16 %v2844, %v2843
        %v2858 = vpack.c.b16 %v2846, %v2845
        %v2859 = vpack.c.b16 %v2848, %v2847
        %v2860 = vpack.c.b16 %v2850, %v2849
        %v2861 = vpack.c.b16 %v2852, %v2851
        %v2862 = vpack.c.b16 %v2854, %v2853
        %2871 = vmatprep.subr.bf16.mxu0 0
        %2872 = vmatpush1.bf16.msra.mxu0 %v2855
        %2873 = vmatprep.subr.bf16.mxu0 0
        %2874 = vmatpush1.bf16.msra.mxu0 %v2856
        %2875 = vmatprep.subr.bf16.mxu0 0
        %2876 = vmatpush1.bf16.msra.mxu0 %v2857
        %2877 = vmatprep.subr.bf16.mxu0 0
        %2878 = vmatpush1.bf16.msra.mxu0 %v2858
        %2879 = vmatprep.subr.bf16.mxu0 0
        %2880 = vmatpush1.bf16.msra.mxu0 %v2859
        %2881 = vmatprep.subr.bf16.mxu0 0
        %2882 = vmatpush1.bf16.msra.mxu0 %v2860
        %2883 = vmatprep.subr.bf16.mxu0 0
        %2884 = vmatpush1.bf16.msra.mxu0 %v2861
        %2885 = vmatprep.subr.bf16.mxu0 0
        %2886 = vmatpush1.bf16.msra.mxu0 %v2862
        %2887 = vmatprep.subr.bf16.mxu0 0
        %2888 = vmatpush1.bf16.msra.mxu0 0
        %2889 = vmatprep.subr.bf16.mxu0 0
        %2890 = vmatpush1.bf16.msra.mxu0 0
        %2891 = vmatprep.subr.bf16.mxu0 0
        %2892 = vmatpush1.bf16.msra.mxu0 0
        %2893 = vmatprep.subr.bf16.mxu0 0
        %2894 = vmatpush1.bf16.msra.mxu0 0
        %2895 = vmatprep.subr.bf16.mxu0 0
        %2896 = vmatpush1.bf16.msra.mxu0 0
        %2897 = vmatprep.subr.bf16.mxu0 0
        %2898 = vmatpush1.bf16.msra.mxu0 0
        %2899 = vmatprep.subr.bf16.mxu0 0
        %2900 = vmatpush1.bf16.msra.mxu0 0
        %2901 = vmatprep.subr.bf16.mxu0 0
        %2902 = vmatpush1.bf16.msra.mxu0 0
        %2903 = vmatprep.mubr.bf16.mxu0 0
        %2904 = vmatmul.mubr.bf16.gmra.mrb[0].mxu0 %v2799
        %v2905 = vpop.f32.mrb[0].mxu0
        %v2906 = vadd.f32 %v2821, %v2905
        %v2907 = vpop.f32.mrb[0].mxu0
        %v2908 = vpop.f32.mrb[0].mxu0
        %v2909 = vadd.f32 %v2821, %v2908
        %v2910 = vpop.f32.mrb[0].mxu0
        %2911 = vdwg.mxu0
        %v2912 = vld [vmem:[%s1241] sm:$0x1]
        %v2913 = vld [vmem:[%s1244] sm:$0x1]
        %v2914 = vmul.f32 %v1280, 1.4142135
        %v2915 = vmul.f32 %v1281, 1.4142135
        %v2916 = vadd.f32 %v2914, %v2906
        %v2917 = vadd.f32 %v2915, %v2909
        %2918 = vadd.xlane.f32.xlu0 %v2916
        %v2919 = vpop.xlane.xlu0 %2918
        %2920 = vadd.xlane.f32.xlu0 %v2917
        %v2921 = vpop.xlane.xlu0 %2920
        %v2922 = vmul.f32 %v2919, 0.03125
        %v2923 = vmul.f32 %v2921, 0.03125
        %v2924 = vsub.f32 %v2916, %v2922
        %v2925 = vsub.f32 %v2917, %v2923
        %v2926 = vmul.f32 %v2924, %v1290
        %v2927 = vmul.f32 %v2925, %v1290
        %v2928 = vmul.f32 %v2926, %v2926
        %v2929 = vmul.f32 %v2927, %v2927
        %2930 = vadd.xlane.f32.xlu0 %v2928
        %v2931 = vpop.xlane.xlu0 %2930
        %2932 = vadd.xlane.f32.xlu0 %v2929
        %v2933 = vpop.xlane.xlu0 %2932
        %v2934 = vmul.f32 %v2931, 0.03125
        %v2935 = vmul.f32 %v2933, 0.03125
        %v2936 = vadd.f32 %v2934, 1e-05
        %v2937 = vadd.f32 %v2935, 1e-05
        %v2938 = vrsqrt.pop %v2936
        %v2939 = vrsqrt.pop %v2937
        %v2940 = vmul.f32 %v2926, %v2938
        %v2941 = vmul.f32 %v2927, %v2939
        %v2943 = vlaneseq
        %v2944 = vshrl.u32 %v2943, 7
        %v2945 = vsub.s32 0, %v2944
        %v2946 = vrot.slane %v2912, %v2945
        %v2948 = vmul.f32 %v2940, %v2946
        %v2949 = vmul.f32 %v2941, %v2946
        %v2951 = vlaneseq
        %v2952 = vshrl.u32 %v2951, 7
        %v2953 = vsub.s32 0, %v2952
        %v2954 = vrot.slane %v2913, %v2953
        %v2956 = vadd.f32 %v2948, %v2954
        %v2957 = vadd.f32 %v2949, %v2954
        %v2958 = vpack.c.bf16 %v2957, %v2956
        %v2959 = vld [vmem:[%s1249] sm:$0xf]
        %v2960 = vld [vmem:[%s1249 + $0x4] sm:$0xf]
        %v2961 = vld [vmem:[%s1249 + $0x8] sm:$0xf]
        %v2962 = vld [vmem:[%s1249 + $0xc] sm:$0xf]
        %v2963 = vld [vmem:[%s1249 + $0x10] sm:$0xf]
        %v2964 = vld [vmem:[%s1249 + $0x14] sm:$0xf]
        %v2965 = vld [vmem:[%s1249 + $0x18] sm:$0xf]
        %v2966 = vld [vmem:[%s1249 + $0x1c] sm:$0xf]
        %v2967 = vld [vmem:[%s1249 + $0x20] sm:$0xf]
        %v2968 = vld [vmem:[%s1249 + $0x24] sm:$0xf]
        %v2969 = vld [vmem:[%s1249 + $0x28] sm:$0xf]
        %v2970 = vld [vmem:[%s1249 + $0x2c] sm:$0xf]
        %v2971 = vld [vmem:[%s1249 + $0x30] sm:$0xf]
        %v2972 = vld [vmem:[%s1249 + $0x34] sm:$0xf]
        %v2973 = vld [vmem:[%s1249 + $0x38] sm:$0xf]
        %v2974 = vld [vmem:[%s1249 + $0x3c] sm:$0xf]
        %v2975 = vld [vmem:[%s1252] sm:$0x1]
        %v2977 = vlaneseq
        %v2978 = vshrl.u32 %v2977, 7
        %v2979 = vsub.s32 0, %v2978
        %v2980 = vrot.slane %v2975, %v2979
        %v2998 = vunpack.c.l.b16 %v2959
        %v2999 = vunpack.c.l.b16 %v2960
        %v3000 = vunpack.c.l.b16 %v2961
        %v3001 = vunpack.c.l.b16 %v2962
        %v3002 = vunpack.c.l.b16 %v2963
        %v3003 = vunpack.c.l.b16 %v2964
        %v3004 = vunpack.c.l.b16 %v2965
        %v3005 = vunpack.c.l.b16 %v2966
        %v3006 = vunpack.c.l.b16 %v2967
        %v3007 = vunpack.c.l.b16 %v2968
        %v3008 = vunpack.c.l.b16 %v2969
        %v3009 = vunpack.c.l.b16 %v2970
        %v3010 = vunpack.c.l.b16 %v2971
        %v3011 = vunpack.c.l.b16 %v2972
        %v3012 = vunpack.c.l.b16 %v2973
        %v3013 = vunpack.c.l.b16 %v2974
        %v3014 = vpack.c.b16 %v2999, %v2998
        %v3015 = vpack.c.b16 %v3001, %v3000
        %v3016 = vpack.c.b16 %v3003, %v3002
        %v3017 = vpack.c.b16 %v3005, %v3004
        %v3018 = vpack.c.b16 %v3007, %v3006
        %v3019 = vpack.c.b16 %v3009, %v3008
        %v3020 = vpack.c.b16 %v3011, %v3010
        %v3021 = vpack.c.b16 %v3013, %v3012
        %3030 = vmatprep.subr.bf16.mxu0 0
        %3031 = vmatpush1.bf16.msra.mxu0 %v3014
        %3032 = vmatprep.subr.bf16.mxu0 0
        %3033 = vmatpush1.bf16.msra.mxu0 %v3015
        %3034 = vmatprep.subr.bf16.mxu0 0
        %3035 = vmatpush1.bf16.msra.mxu0 %v3016
        %3036 = vmatprep.subr.bf16.mxu0 0
        %3037 = vmatpush1.bf16.msra.mxu0 %v3017
        %3038 = vmatprep.subr.bf16.mxu0 0
        %3039 = vmatpush1.bf16.msra.mxu0 %v3018
        %3040 = vmatprep.subr.bf16.mxu0 0
        %3041 = vmatpush1.bf16.msra.mxu0 %v3019
        %3042 = vmatprep.subr.bf16.mxu0 0
        %3043 = vmatpush1.bf16.msra.mxu0 %v3020
        %3044 = vmatprep.subr.bf16.mxu0 0
        %3045 = vmatpush1.bf16.msra.mxu0 %v3021
        %3046 = vmatprep.subr.bf16.mxu0 0
        %3047 = vmatpush1.bf16.msra.mxu0 0
        %3048 = vmatprep.subr.bf16.mxu0 0
        %3049 = vmatpush1.bf16.msra.mxu0 0
        %3050 = vmatprep.subr.bf16.mxu0 0
        %3051 = vmatpush1.bf16.msra.mxu0 0
        %3052 = vmatprep.subr.bf16.mxu0 0
        %3053 = vmatpush1.bf16.msra.mxu0 0
        %3054 = vmatprep.subr.bf16.mxu0 0
        %3055 = vmatpush1.bf16.msra.mxu0 0
        %3056 = vmatprep.subr.bf16.mxu0 0
        %3057 = vmatpush1.bf16.msra.mxu0 0
        %3058 = vmatprep.subr.bf16.mxu0 0
        %3059 = vmatpush1.bf16.msra.mxu0 0
        %3060 = vmatprep.subr.bf16.mxu0 0
        %3061 = vmatpush1.bf16.msra.mxu0 0
        %3062 = vmatprep.mubr.bf16.mxu0 0
        %3063 = vmatmul.mubr.bf16.gmra.mrb[0].mxu0 %v2958
        %v3064 = vpop.f32.mrb[0].mxu0
        %v3065 = vadd.f32 %v2980, %v3064
        %v3066 = vpop.f32.mrb[0].mxu0
        %v3067 = vpop.f32.mrb[0].mxu0
        %v3068 = vadd.f32 %v2980, %v3067
        %v3069 = vpop.f32.mrb[0].mxu0
        %3070 = vdwg.mxu0
        %v3071 = vld [vmem:[%s1257] sm:$0xff]
        %v3072 = vld [vmem:[%s1257 + $0x8] sm:$0xff]
        %v3073 = vld [vmem:[%s1257 + $0x10] sm:$0xff]
        %v3074 = vld [vmem:[%s1257 + $0x18] sm:$0xff]
        %v3075 = vld [vmem:[%s1257 + $0x20] sm:$0xff]
        %v3076 = vld [vmem:[%s1257 + $0x28] sm:$0xff]
        %v3077 = vld [vmem:[%s1257 + $0x30] sm:$0xff]
        %v3078 = vld [vmem:[%s1257 + $0x38] sm:$0xff]
        %v3079 = vld [vmem:[%s1257 + $0x40] sm:$0xff]
        %v3080 = vld [vmem:[%s1257 + $0x48] sm:$0xff]
        %v3081 = vld [vmem:[%s1257 + $0x50] sm:$0xff]
        %v3082 = vld [vmem:[%s1257 + $0x58] sm:$0xff]
        %v3083 = vld [vmem:[%s1257 + $0x60] sm:$0xff]
        %v3084 = vld [vmem:[%s1257 + $0x68] sm:$0xff]
        %v3085 = vld [vmem:[%s1257 + $0x70] sm:$0xff]
        %v3086 = vld [vmem:[%s1257 + $0x78] sm:$0xff]
        %v3087 = vld [vmem:[%s1261] sm:$0x3]
        %v3089 = vlaneseq
        %v3090 = vshrl.u32 %v3089, 7
        %v3091 = vsub.s32 0, %v3090
        %v3092 = vrot.slane %v3087, %v3091
        %v3093 = vlaneseq
        %v3094 = vshrl.u32 %v3093, 7
        %v3095 = vsub.s32 1, %v3094
        %v3096 = vrot.slane %v3087, %v3095
        %v3103 = vunpack.c.l.b16 %v1282
        %v3104 = vunpack.c.l.b16 %v1283
        %v3105 = vunpack.c.l.b16 %v1284
        %v3106 = vunpack.c.l.b16 %v1285
        %v3107 = vpack.c.b16 %v3104, %v3103
        %v3108 = vpack.c.b16 %v3106, %v3105
        %v3127 = vunpack.c.l.b16 %v3071
        %v3128 = vunpack.c.h.b16 %v3071
        %v3129 = vunpack.c.l.b16 %v3072
        %v3130 = vunpack.c.h.b16 %v3072
        %v3131 = vunpack.c.l.b16 %v3073
        %v3132 = vunpack.c.h.b16 %v3073
        %v3133 = vunpack.c.l.b16 %v3074
        %v3134 = vunpack.c.h.b16 %v3074
        %v3135 = vunpack.c.l.b16 %v3075
        %v3136 = vunpack.c.h.b16 %v3075
        %v3137 = vunpack.c.l.b16 %v3076
        %v3138 = vunpack.c.h.b16 %v3076
        %v3139 = vunpack.c.l.b16 %v3077
        %v3140 = vunpack.c.h.b16 %v3077
        %v3141 = vunpack.c.l.b16 %v3078
        %v3142 = vunpack.c.h.b16 %v3078
        %v3143 = vunpack.c.l.b16 %v3079
        %v3144 = vunpack.c.h.b16 %v3079
        %v3145 = vunpack.c.l.b16 %v3080
        %v3146 = vunpack.c.h.b16 %v3080
        %v3147 = vunpack.c.l.b16 %v3081
        %v3148 = vunpack.c.h.b16 %v3081
        %v3149 = vunpack.c.l.b16 %v3082
        %v3150 = vunpack.c.h.b16 %v3082
        %v3151 = vunpack.c.l.b16 %v3083
        %v3152 = vunpack.c.h.b16 %v3083
        %v3153 = vunpack.c.l.b16 %v3084
        %v3154 = vunpack.c.h.b16 %v3084
        %v3155 = vunpack.c.l.b16 %v3085
        %v3156 = vunpack.c.h.b16 %v3085
        %v3157 = vunpack.c.l.b16 %v3086
        %v3158 = vunpack.c.h.b16 %v3086
        %v3159 = vpack.c.b16 %v3129, %v3127
        %v3160 = vpack.c.b16 %v3130, %v3128
        %v3161 = vpack.c.b16 %v3133, %v3131
        %v3162 = vpack.c.b16 %v3134, %v3132
        %v3163 = vpack.c.b16 %v3137, %v3135
        %v3164 = vpack.c.b16 %v3138, %v3136
        %v3165 = vpack.c.b16 %v3141, %v3139
        %v3166 = vpack.c.b16 %v3142, %v3140
        %v3167 = vpack.c.b16 %v3145, %v3143
        %v3168 = vpack.c.b16 %v3146, %v3144
        %v3169 = vpack.c.b16 %v3149, %v3147
        %v3170 = vpack.c.b16 %v3150, %v3148
        %v3171 = vpack.c.b16 %v3153, %v3151
        %v3172 = vpack.c.b16 %v3154, %v3152
        %v3173 = vpack.c.b16 %v3157, %v3155
        %v3174 = vpack.c.b16 %v3158, %v3156
        %3191 = vmatprep.subr.bf16.mxu0 %v3160
        %3192 = vmatpush1.bf16.msra.mxu0 %v3159
        %3193 = vmatprep.subr.bf16.mxu0 %v3162
        %3194 = vmatpush1.bf16.msra.mxu0 %v3161
        %3195 = vmatprep.subr.bf16.mxu0 %v3164
        %3196 = vmatpush1.bf16.msra.mxu0 %v3163
        %3197 = vmatprep.subr.bf16.mxu0 %v3166
        %3198 = vmatpush1.bf16.msra.mxu0 %v3165
        %3199 = vmatprep.subr.bf16.mxu0 %v3168
        %3200 = vmatpush1.bf16.msra.mxu0 %v3167
        %3201 = vmatprep.subr.bf16.mxu0 %v3170
        %3202 = vmatpush1.bf16.msra.mxu0 %v3169
        %3203 = vmatprep.subr.bf16.mxu0 %v3172
        %3204 = vmatpush1.bf16.msra.mxu0 %v3171
        %3205 = vmatprep.subr.bf16.mxu0 %v3174
        %3206 = vmatpush1.bf16.msra.mxu0 %v3173
        %3207 = vmatprep.subr.bf16.mxu0 0
        %3208 = vmatpush1.bf16.msra.mxu0 0
        %3209 = vmatprep.subr.bf16.mxu0 0
        %3210 = vmatpush1.bf16.msra.mxu0 0
        %3211 = vmatprep.subr.bf16.mxu0 0
        %3212 = vmatpush1.bf16.msra.mxu0 0
        %3213 = vmatprep.subr.bf16.mxu0 0
        %3214 = vmatpush1.bf16.msra.mxu0 0
        %3215 = vmatprep.subr.bf16.mxu0 0
        %3216 = vmatpush1.bf16.msra.mxu0 0
        %3217 = vmatprep.subr.bf16.mxu0 0
        %3218 = vmatpush1.bf16.msra.mxu0 0
        %3219 = vmatprep.subr.bf16.mxu0 0
        %3220 = vmatpush1.bf16.msra.mxu0 0
        %3221 = vmatprep.subr.bf16.mxu0 0
        %3222 = vmatpush1.bf16.msra.mxu0 0
        %3223 = vmatprep.mubr.bf16.mxu0 0
        %3224 = vmatmul.mubr.bf16.gmra.mrb[0].mxu0 %v3107
        %v3225 = vpop.f32.mrb[0].mxu0
        %v3226 = vadd.f32 %v3092, %v3225
        %v3227 = vpop.f32.mrb[0].mxu0
        %v3228 = vadd.f32 %v3096, %v3227
        %v3229 = vpop.f32.mrb[0].mxu0
        %v3230 = vadd.f32 %v3092, %v3229
        %v3231 = vpop.f32.mrb[0].mxu0
        %v3232 = vadd.f32 %v3096, %v3231
        %3233 = vmatprep.mubr.bf16.mxu0 0
        %3234 = vmatmul.mubr.bf16.gmra.mrb[0].mxu0 %v3108
        %v3235 = vpop.f32.mrb[0].mxu0
        %v3236 = vadd.f32 %v3092, %v3235
        %v3237 = vpop.f32.mrb[0].mxu0
        %v3238 = vadd.f32 %v3096, %v3237
        %v3239 = vpop.f32.mrb[0].mxu0
        %v3240 = vadd.f32 %v3092, %v3239
        %v3241 = vpop.f32.mrb[0].mxu0
        %v3242 = vadd.f32 %v3096, %v3241
        %3243 = vdwg.mxu0
        %3244 = vrot.lane.b32.xlu0 %v3065, 124
        %v3245 = vpop.permute.xlu0 %3244
        %3246 = vrot.lane.b32.xlu0 %v3068, 124
        %v3247 = vpop.permute.xlu0 %3246
        %3248 = vrot.lane.b32.xlu0 %v3065, 4
        %v3249 = vpop.permute.xlu0 %3248
        %3250 = vrot.lane.b32.xlu0 %v3068, 4
        %v3251 = vpop.permute.xlu0 %3250
        %v3252 = vmul.f32 %v3065, %v1323
        %v3253 = vmul.f32 %v3068, %v1324
        %v3254 = vmul.f32 %v3245, %v1351
        %v3255 = vmul.f32 %v3247, %v1352
        %v3256 = vadd.f32 %v3252, %v3254
        %v3257 = vadd.f32 %v3253, %v3255
        %v3258 = vmul.f32 %v3249, %v1379
        %v3259 = vmul.f32 %v3251, %v1380
        %v3260 = vadd.f32 %v3256, %v3258
        %v3261 = vadd.f32 %v3257, %v3259
        %3262 = vrot.lane.b32.xlu0 %v3226, 124
        %v3263 = vpop.permute.xlu0 %3262
        %3264 = vrot.lane.b32.xlu0 %v3230, 124
        %v3265 = vpop.permute.xlu0 %3264
        %3266 = vrot.lane.b32.xlu0 %v3236, 124
        %v3267 = vpop.permute.xlu0 %3266
        %3268 = vrot.lane.b32.xlu0 %v3240, 124
        %v3269 = vpop.permute.xlu0 %3268
        %3270 = vrot.lane.b32.xlu0 %v3226, 4
        %v3271 = vpop.permute.xlu0 %3270
        %3272 = vrot.lane.b32.xlu0 %v3230, 4
        %v3273 = vpop.permute.xlu0 %3272
        %3274 = vrot.lane.b32.xlu0 %v3236, 4
        %v3275 = vpop.permute.xlu0 %3274
        %3276 = vrot.lane.b32.xlu0 %v3240, 4
        %v3277 = vpop.permute.xlu0 %3276
        %v3278 = vmul.f32 %v3226, %v1433
        %v3279 = vmul.f32 %v3230, %v1434
        %v3280 = vmul.f32 %v3236, %v1435
        %v3281 = vmul.f32 %v3240, %v1436
        %v3282 = vmul.f32 %v3263, %v1501
        %v3283 = vmul.f32 %v3265, %v1502
        %v3284 = vmul.f32 %v3267, %v1503
        %v3285 = vmul.f32 %v3269, %v1504
        %v3286 = vadd.f32 %v3278, %v3282
        %v3287 = vadd.f32 %v3279, %v3283
        %v3288 = vadd.f32 %v3280, %v3284
        %v3289 = vadd.f32 %v3281, %v3285
        %v3290 = vmul.f32 %v3271, %v1561
        %v3291 = vmul.f32 %v3273, %v1562
        %v3292 = vmul.f32 %v3275, %v1563
        %v3293 = vmul.f32 %v3277, %v1564
        %v3294 = vadd.f32 %v3286, %v3290
        %v3295 = vadd.f32 %v3287, %v3291
        %v3296 = vadd.f32 %v3288, %v3292
        %v3297 = vadd.f32 %v3289, %v3293
        %v3298 = vpack.c.bf16 %v3261, %v3260
        %v3300 = vunpack.c.l.b16 %v3298
        %v3301 = vunpack.c.h.b16 %v3298
        %v3302 = vpack.c.b16 %v3300, %v3300
        %v3303 = vpack.c.b16 %v3301, %v3301
        %3304 = vrot.lane.b32.xlu0 %v3302, 96
        %v3305 = vpop.permute.xlu0 %3304
        %3306 = vrot.lane.b32.xlu0 %v3303, 96
        %v3307 = vpop.permute.xlu0 %3306
        %3308 = vrot.lane.b32.xlu0 %v3302, 64
        %v3309 = vpop.permute.xlu0 %3308
        %3310 = vrot.lane.b32.xlu0 %v3303, 64
        %v3311 = vpop.permute.xlu0 %3310
        %3312 = vrot.lane.b32.xlu0 %v3302, 32
        %v3313 = vpop.permute.xlu0 %3312
        %3314 = vrot.lane.b32.xlu0 %v3303, 32
        %v3315 = vpop.permute.xlu0 %3314
        %v3316 = vpack.c.bf16 %v3295, %v3294
        %v3317 = vpack.c.bf16 %v3297, %v3296
        %3320 = vrot.lane.b32.xlu0 %v3316, 96
        %v3321 = vpop.permute.xlu0 %3320
        %3322 = vrot.lane.b32.xlu0 %v3317, 96
        %v3323 = vpop.permute.xlu0 %3322
        %3324 = vrot.lane.b32.xlu0 %v3316, 64
        %v3325 = vpop.permute.xlu0 %3324
        %3326 = vrot.lane.b32.xlu0 %v3317, 64
        %v3327 = vpop.permute.xlu0 %3326
        %3328 = vrot.lane.b32.xlu0 %v3316, 32
        %v3329 = vpop.permute.xlu0 %3328
        %3330 = vrot.lane.b32.xlu0 %v3317, 32
        %v3331 = vpop.permute.xlu0 %3330
        %v3332 = vpack.c.bf16 %v3232, %v3228
        %v3333 = vpack.c.bf16 %v3242, %v3238
        %3336 = vrot.lane.b32.xlu0 %v3332, 96
        %v3337 = vpop.permute.xlu0 %3336
        %3338 = vrot.lane.b32.xlu0 %v3333, 96
        %v3339 = vpop.permute.xlu0 %3338
        %3342 = vrot.lane.b32.xlu0 %v3332, 64
        %v3343 = vpop.permute.xlu0 %3342
        %3344 = vrot.lane.b32.xlu0 %v3333, 64
        %v3345 = vpop.permute.xlu0 %3344
        %3348 = vrot.lane.b32.xlu0 %v3332, 32
        %v3349 = vpop.permute.xlu0 %3348
        %3350 = vrot.lane.b32.xlu0 %v3333, 32
        %v3351 = vpop.permute.xlu0 %3350
        %v3355 = vsel %vm1316, %v3302, 0
        %v3358 = vsel %vm1316, %v3316, 0
        %3360 = vmatprep.subr.bf16.mxu0 0
        %3361 = vmatpush1.bf16.xpose.msra.mxu0 %v3358
        %3362 = vmatprep.subr.bf16.mxu0 0
        %3363 = vmatpush1.bf16.xpose.msra.mxu0 0
        %3364 = vmatprep.subr.bf16.mxu0 0
        %3365 = vmatpush1.bf16.xpose.msra.mxu0 0
        %3366 = vmatprep.subr.bf16.mxu0 0
        %3367 = vmatpush1.bf16.xpose.msra.mxu0 0
        %3368 = vmatprep.subr.bf16.mxu0 0
        %3369 = vmatpush1.bf16.xpose.msra.mxu0 0
        %3370 = vmatprep.subr.bf16.mxu0 0
        %3371 = vmatpush1.bf16.xpose.msra.mxu0 0
        %3372 = vmatprep.subr.bf16.mxu0 0
        %3373 = vmatpush1.bf16.xpose.msra.mxu0 0
        %3374 = vmatprep.subr.bf16.mxu0 0
        %3375 = vmatpush1.bf16.xpose.msra.mxu0 0
        %3376 = vmatprep.subr.bf16.mxu0 0
        %3377 = vmatpush1.bf16.xpose.msra.mxu0 0
        %3378 = vmatprep.subr.bf16.mxu0 0
        %3379 = vmatpush1.bf16.xpose.msra.mxu0 0
        %3380 = vmatprep.subr.bf16.mxu0 0
        %3381 = vmatpush1.bf16.xpose.msra.mxu0 0
        %3382 = vmatprep.subr.bf16.mxu0 0
        %3383 = vmatpush1.bf16.xpose.msra.mxu0 0
        %3384 = vmatprep.subr.bf16.mxu0 0
        %3385 = vmatpush1.bf16.xpose.msra.mxu0 0
        %3386 = vmatprep.subr.bf16.mxu0 0
        %3387 = vmatpush1.bf16.xpose.msra.mxu0 0
        %3388 = vmatprep.subr.bf16.mxu0 0
        %3389 = vmatpush1.bf16.xpose.msra.mxu0 0
        %3390 = vmatprep.subr.bf16.mxu0 0
        %3391 = vmatpush1.bf16.xpose.msra.mxu0 0
        %3392 = vmatprep.mubr.bf16.mxu0 0
        %3393 = vmatmul.mubr.bf16.gmra.mrb[0].mxu0 %v3355
        %v3394 = vpop.f32.mrb[0].mxu0
        %v3395 = vadd.f32 0.0, %v3394
        %v3396 = vpop.f32.mrb[0].mxu0
        %v3397 = vpop.f32.mrb[0].mxu0
        %v3398 = vpop.f32.mrb[0].mxu0
        %3399 = vdwg.mxu0
        %v3401 = vsel %vm1316, %v3303, 0
        %v3404 = vsel %vm1316, %v3317, 0
        %3406 = vmatprep.subr.bf16.mxu0 0
        %3407 = vmatpush1.bf16.xpose.msra.mxu0 %v3404
        %3408 = vmatprep.subr.bf16.mxu0 0
        %3409 = vmatpush1.bf16.xpose.msra.mxu0 0
        %3410 = vmatprep.subr.bf16.mxu0 0
        %3411 = vmatpush1.bf16.xpose.msra.mxu0 0
        %3412 = vmatprep.subr.bf16.mxu0 0
        %3413 = vmatpush1.bf16.xpose.msra.mxu0 0
        %3414 = vmatprep.subr.bf16.mxu0 0
        %3415 = vmatpush1.bf16.xpose.msra.mxu0 0
        %3416 = vmatprep.subr.bf16.mxu0 0
        %3417 = vmatpush1.bf16.xpose.msra.mxu0 0
        %3418 = vmatprep.subr.bf16.mxu0 0
        %3419 = vmatpush1.bf16.xpose.msra.mxu0 0
        %3420 = vmatprep.subr.bf16.mxu0 0
        %3421 = vmatpush1.bf16.xpose.msra.mxu0 0
        %3422 = vmatprep.subr.bf16.mxu0 0
        %3423 = vmatpush1.bf16.xpose.msra.mxu0 0
        %3424 = vmatprep.subr.bf16.mxu0 0
        %3425 = vmatpush1.bf16.xpose.msra.mxu0 0
        %3426 = vmatprep.subr.bf16.mxu0 0
        %3427 = vmatpush1.bf16.xpose.msra.mxu0 0
        %3428 = vmatprep.subr.bf16.mxu0 0
        %3429 = vmatpush1.bf16.xpose.msra.mxu0 0
        %3430 = vmatprep.subr.bf16.mxu0 0
        %3431 = vmatpush1.bf16.xpose.msra.mxu0 0
        %3432 = vmatprep.subr.bf16.mxu0 0
        %3433 = vmatpush1.bf16.xpose.msra.mxu0 0
        %3434 = vmatprep.subr.bf16.mxu0 0
        %3435 = vmatpush1.bf16.xpose.msra.mxu0 0
        %3436 = vmatprep.subr.bf16.mxu0 0
        %3437 = vmatpush1.bf16.xpose.msra.mxu0 0
        %3438 = vmatprep.mubr.bf16.mxu0 0
        %3439 = vmatmul.mubr.bf16.gmra.mrb[0].mxu0 %v3401
        %v3440 = vpop.f32.mrb[0].mxu0
        %v3441 = vadd.f32 0.0, %v3440
        %v3442 = vpop.f32.mrb[0].mxu0
        %v3443 = vpop.f32.mrb[0].mxu0
        %v3444 = vpop.f32.mrb[0].mxu0
        %3445 = vdwg.mxu0
        %v3447 = vsel %vm1316, %v3305, 0
        %v3450 = vsel %vm1316, %v3321, 0
        %3452 = vmatprep.subr.bf16.mxu0 0
        %3453 = vmatpush1.bf16.xpose.msra.mxu0 %v3450
        %3454 = vmatprep.subr.bf16.mxu0 0
        %3455 = vmatpush1.bf16.xpose.msra.mxu0 0
        %3456 = vmatprep.subr.bf16.mxu0 0
        %3457 = vmatpush1.bf16.xpose.msra.mxu0 0
        %3458 = vmatprep.subr.bf16.mxu0 0
        %3459 = vmatpush1.bf16.xpose.msra.mxu0 0
        %3460 = vmatprep.subr.bf16.mxu0 0
        %3461 = vmatpush1.bf16.xpose.msra.mxu0 0
        %3462 = vmatprep.subr.bf16.mxu0 0
        %3463 = vmatpush1.bf16.xpose.msra.mxu0 0
        %3464 = vmatprep.subr.bf16.mxu0 0
        %3465 = vmatpush1.bf16.xpose.msra.mxu0 0
        %3466 = vmatprep.subr.bf16.mxu0 0
        %3467 = vmatpush1.bf16.xpose.msra.mxu0 0
        %3468 = vmatprep.subr.bf16.mxu0 0
        %3469 = vmatpush1.bf16.xpose.msra.mxu0 0
        %3470 = vmatprep.subr.bf16.mxu0 0
        %3471 = vmatpush1.bf16.xpose.msra.mxu0 0
        %3472 = vmatprep.subr.bf16.mxu0 0
        %3473 = vmatpush1.bf16.xpose.msra.mxu0 0
        %3474 = vmatprep.subr.bf16.mxu0 0
        %3475 = vmatpush1.bf16.xpose.msra.mxu0 0
        %3476 = vmatprep.subr.bf16.mxu0 0
        %3477 = vmatpush1.bf16.xpose.msra.mxu0 0
        %3478 = vmatprep.subr.bf16.mxu0 0
        %3479 = vmatpush1.bf16.xpose.msra.mxu0 0
        %3480 = vmatprep.subr.bf16.mxu0 0
        %3481 = vmatpush1.bf16.xpose.msra.mxu0 0
        %3482 = vmatprep.subr.bf16.mxu0 0
        %3483 = vmatpush1.bf16.xpose.msra.mxu0 0
        %3484 = vmatprep.mubr.bf16.mxu0 0
        %3485 = vmatmul.mubr.bf16.gmra.mrb[0].mxu0 %v3447
        %v3486 = vpop.f32.mrb[0].mxu0
        %v3487 = vadd.f32 0.0, %v3486
        %v3488 = vpop.f32.mrb[0].mxu0
        %v3489 = vpop.f32.mrb[0].mxu0
        %v3490 = vpop.f32.mrb[0].mxu0
        %3491 = vdwg.mxu0
        %v3493 = vsel %vm1316, %v3307, 0
        %v3496 = vsel %vm1316, %v3323, 0
        %3498 = vmatprep.subr.bf16.mxu0 0
        %3499 = vmatpush1.bf16.xpose.msra.mxu0 %v3496
        %3500 = vmatprep.subr.bf16.mxu0 0
        %3501 = vmatpush1.bf16.xpose.msra.mxu0 0
        %3502 = vmatprep.subr.bf16.mxu0 0
        %3503 = vmatpush1.bf16.xpose.msra.mxu0 0
        %3504 = vmatprep.subr.bf16.mxu0 0
        %3505 = vmatpush1.bf16.xpose.msra.mxu0 0
        %3506 = vmatprep.subr.bf16.mxu0 0
        %3507 = vmatpush1.bf16.xpose.msra.mxu0 0
        %3508 = vmatprep.subr.bf16.mxu0 0
        %3509 = vmatpush1.bf16.xpose.msra.mxu0 0
        %3510 = vmatprep.subr.bf16.mxu0 0
        %3511 = vmatpush1.bf16.xpose.msra.mxu0 0
        %3512 = vmatprep.subr.bf16.mxu0 0
        %3513 = vmatpush1.bf16.xpose.msra.mxu0 0
        %3514 = vmatprep.subr.bf16.mxu0 0
        %3515 = vmatpush1.bf16.xpose.msra.mxu0 0
        %3516 = vmatprep.subr.bf16.mxu0 0
        %3517 = vmatpush1.bf16.xpose.msra.mxu0 0
        %3518 = vmatprep.subr.bf16.mxu0 0
        %3519 = vmatpush1.bf16.xpose.msra.mxu0 0
        %3520 = vmatprep.subr.bf16.mxu0 0
        %3521 = vmatpush1.bf16.xpose.msra.mxu0 0
        %3522 = vmatprep.subr.bf16.mxu0 0
        %3523 = vmatpush1.bf16.xpose.msra.mxu0 0
        %3524 = vmatprep.subr.bf16.mxu0 0
        %3525 = vmatpush1.bf16.xpose.msra.mxu0 0
        %3526 = vmatprep.subr.bf16.mxu0 0
        %3527 = vmatpush1.bf16.xpose.msra.mxu0 0
        %3528 = vmatprep.subr.bf16.mxu0 0
        %3529 = vmatpush1.bf16.xpose.msra.mxu0 0
        %3530 = vmatprep.mubr.bf16.mxu0 0
        %3531 = vmatmul.mubr.bf16.gmra.mrb[0].mxu0 %v3493
        %v3532 = vpop.f32.mrb[0].mxu0
        %v3533 = vadd.f32 0.0, %v3532
        %v3534 = vpop.f32.mrb[0].mxu0
        %v3535 = vpop.f32.mrb[0].mxu0
        %v3536 = vpop.f32.mrb[0].mxu0
        %3537 = vdwg.mxu0
        %v3539 = vsel %vm1316, %v3309, 0
        %v3542 = vsel %vm1316, %v3325, 0
        %3544 = vmatprep.subr.bf16.mxu0 0
        %3545 = vmatpush1.bf16.xpose.msra.mxu0 %v3542
        %3546 = vmatprep.subr.bf16.mxu0 0
        %3547 = vmatpush1.bf16.xpose.msra.mxu0 0
        %3548 = vmatprep.subr.bf16.mxu0 0
        %3549 = vmatpush1.bf16.xpose.msra.mxu0 0
        %3550 = vmatprep.subr.bf16.mxu0 0
        %3551 = vmatpush1.bf16.xpose.msra.mxu0 0
        %3552 = vmatprep.subr.bf16.mxu0 0
        %3553 = vmatpush1.bf16.xpose.msra.mxu0 0
        %3554 = vmatprep.subr.bf16.mxu0 0
        %3555 = vmatpush1.bf16.xpose.msra.mxu0 0
        %3556 = vmatprep.subr.bf16.mxu0 0
        %3557 = vmatpush1.bf16.xpose.msra.mxu0 0
        %3558 = vmatprep.subr.bf16.mxu0 0
        %3559 = vmatpush1.bf16.xpose.msra.mxu0 0
        %3560 = vmatprep.subr.bf16.mxu0 0
        %3561 = vmatpush1.bf16.xpose.msra.mxu0 0
        %3562 = vmatprep.subr.bf16.mxu0 0
        %3563 = vmatpush1.bf16.xpose.msra.mxu0 0
        %3564 = vmatprep.subr.bf16.mxu0 0
        %3565 = vmatpush1.bf16.xpose.msra.mxu0 0
        %3566 = vmatprep.subr.bf16.mxu0 0
        %3567 = vmatpush1.bf16.xpose.msra.mxu0 0
        %3568 = vmatprep.subr.bf16.mxu0 0
        %3569 = vmatpush1.bf16.xpose.msra.mxu0 0
        %3570 = vmatprep.subr.bf16.mxu0 0
        %3571 = vmatpush1.bf16.xpose.msra.mxu0 0
        %3572 = vmatprep.subr.bf16.mxu0 0
        %3573 = vmatpush1.bf16.xpose.msra.mxu0 0
        %3574 = vmatprep.subr.bf16.mxu0 0
        %3575 = vmatpush1.bf16.xpose.msra.mxu0 0
        %3576 = vmatprep.mubr.bf16.mxu0 0
        %3577 = vmatmul.mubr.bf16.gmra.mrb[0].mxu0 %v3539
        %v3578 = vpop.f32.mrb[0].mxu0
        %v3579 = vadd.f32 0.0, %v3578
        %v3580 = vpop.f32.mrb[0].mxu0
        %v3581 = vpop.f32.mrb[0].mxu0
        %v3582 = vpop.f32.mrb[0].mxu0
        %3583 = vdwg.mxu0
        %v3585 = vsel %vm1316, %v3311, 0
        %v3588 = vsel %vm1316, %v3327, 0
        %3590 = vmatprep.subr.bf16.mxu0 0
        %3591 = vmatpush1.bf16.xpose.msra.mxu0 %v3588
        %3592 = vmatprep.subr.bf16.mxu0 0
        %3593 = vmatpush1.bf16.xpose.msra.mxu0 0
        %3594 = vmatprep.subr.bf16.mxu0 0
        %3595 = vmatpush1.bf16.xpose.msra.mxu0 0
        %3596 = vmatprep.subr.bf16.mxu0 0
        %3597 = vmatpush1.bf16.xpose.msra.mxu0 0
        %3598 = vmatprep.subr.bf16.mxu0 0
        %3599 = vmatpush1.bf16.xpose.msra.mxu0 0
        %3600 = vmatprep.subr.bf16.mxu0 0
        %3601 = vmatpush1.bf16.xpose.msra.mxu0 0
        %3602 = vmatprep.subr.bf16.mxu0 0
        %3603 = vmatpush1.bf16.xpose.msra.mxu0 0
        %3604 = vmatprep.subr.bf16.mxu0 0
        %3605 = vmatpush1.bf16.xpose.msra.mxu0 0
        %3606 = vmatprep.subr.bf16.mxu0 0
        %3607 = vmatpush1.bf16.xpose.msra.mxu0 0
        %3608 = vmatprep.subr.bf16.mxu0 0
        %3609 = vmatpush1.bf16.xpose.msra.mxu0 0
        %3610 = vmatprep.subr.bf16.mxu0 0
        %3611 = vmatpush1.bf16.xpose.msra.mxu0 0
        %3612 = vmatprep.subr.bf16.mxu0 0
        %3613 = vmatpush1.bf16.xpose.msra.mxu0 0
        %3614 = vmatprep.subr.bf16.mxu0 0
        %3615 = vmatpush1.bf16.xpose.msra.mxu0 0
        %3616 = vmatprep.subr.bf16.mxu0 0
        %3617 = vmatpush1.bf16.xpose.msra.mxu0 0
        %3618 = vmatprep.subr.bf16.mxu0 0
        %3619 = vmatpush1.bf16.xpose.msra.mxu0 0
        %3620 = vmatprep.subr.bf16.mxu0 0
        %3621 = vmatpush1.bf16.xpose.msra.mxu0 0
        %3622 = vmatprep.mubr.bf16.mxu0 0
        %3623 = vmatmul.mubr.bf16.gmra.mrb[0].mxu0 %v3585
        %v3624 = vpop.f32.mrb[0].mxu0
        %v3625 = vadd.f32 0.0, %v3624
        %v3626 = vpop.f32.mrb[0].mxu0
        %v3627 = vpop.f32.mrb[0].mxu0
        %v3628 = vpop.f32.mrb[0].mxu0
        %3629 = vdwg.mxu0
        %v3631 = vsel %vm1316, %v3313, 0
        %v3634 = vsel %vm1316, %v3329, 0
        %3636 = vmatprep.subr.bf16.mxu0 0
        %3637 = vmatpush1.bf16.xpose.msra.mxu0 %v3634
        %3638 = vmatprep.subr.bf16.mxu0 0
        %3639 = vmatpush1.bf16.xpose.msra.mxu0 0
        %3640 = vmatprep.subr.bf16.mxu0 0
        %3641 = vmatpush1.bf16.xpose.msra.mxu0 0
        %3642 = vmatprep.subr.bf16.mxu0 0
        %3643 = vmatpush1.bf16.xpose.msra.mxu0 0
        %3644 = vmatprep.subr.bf16.mxu0 0
        %3645 = vmatpush1.bf16.xpose.msra.mxu0 0
        %3646 = vmatprep.subr.bf16.mxu0 0
        %3647 = vmatpush1.bf16.xpose.msra.mxu0 0
        %3648 = vmatprep.subr.bf16.mxu0 0
        %3649 = vmatpush1.bf16.xpose.msra.mxu0 0
        %3650 = vmatprep.subr.bf16.mxu0 0
        %3651 = vmatpush1.bf16.xpose.msra.mxu0 0
        %3652 = vmatprep.subr.bf16.mxu0 0
        %3653 = vmatpush1.bf16.xpose.msra.mxu0 0
        %3654 = vmatprep.subr.bf16.mxu0 0
        %3655 = vmatpush1.bf16.xpose.msra.mxu0 0
        %3656 = vmatprep.subr.bf16.mxu0 0
        %3657 = vmatpush1.bf16.xpose.msra.mxu0 0
        %3658 = vmatprep.subr.bf16.mxu0 0
        %3659 = vmatpush1.bf16.xpose.msra.mxu0 0
        %3660 = vmatprep.subr.bf16.mxu0 0
        %3661 = vmatpush1.bf16.xpose.msra.mxu0 0
        %3662 = vmatprep.subr.bf16.mxu0 0
        %3663 = vmatpush1.bf16.xpose.msra.mxu0 0
        %3664 = vmatprep.subr.bf16.mxu0 0
        %3665 = vmatpush1.bf16.xpose.msra.mxu0 0
        %3666 = vmatprep.subr.bf16.mxu0 0
        %3667 = vmatpush1.bf16.xpose.msra.mxu0 0
        %3668 = vmatprep.mubr.bf16.mxu0 0
        %3669 = vmatmul.mubr.bf16.gmra.mrb[0].mxu0 %v3631
        %v3670 = vpop.f32.mrb[0].mxu0
        %v3671 = vadd.f32 0.0, %v3670
        %v3672 = vpop.f32.mrb[0].mxu0
        %v3673 = vpop.f32.mrb[0].mxu0
        %v3674 = vpop.f32.mrb[0].mxu0
        %3675 = vdwg.mxu0
        %v3677 = vsel %vm1316, %v3315, 0
        %v3680 = vsel %vm1316, %v3331, 0
        %3682 = vmatprep.subr.bf16.mxu0 0
        %3683 = vmatpush1.bf16.xpose.msra.mxu0 %v3680
        %3684 = vmatprep.subr.bf16.mxu0 0
        %3685 = vmatpush1.bf16.xpose.msra.mxu0 0
        %3686 = vmatprep.subr.bf16.mxu0 0
        %3687 = vmatpush1.bf16.xpose.msra.mxu0 0
        %3688 = vmatprep.subr.bf16.mxu0 0
        %3689 = vmatpush1.bf16.xpose.msra.mxu0 0
        %3690 = vmatprep.subr.bf16.mxu0 0
        %3691 = vmatpush1.bf16.xpose.msra.mxu0 0
        %3692 = vmatprep.subr.bf16.mxu0 0
        %3693 = vmatpush1.bf16.xpose.msra.mxu0 0
        %3694 = vmatprep.subr.bf16.mxu0 0
        %3695 = vmatpush1.bf16.xpose.msra.mxu0 0
        %3696 = vmatprep.subr.bf16.mxu0 0
        %3697 = vmatpush1.bf16.xpose.msra.mxu0 0
        %3698 = vmatprep.subr.bf16.mxu0 0
        %3699 = vmatpush1.bf16.xpose.msra.mxu0 0
        %3700 = vmatprep.subr.bf16.mxu0 0
        %3701 = vmatpush1.bf16.xpose.msra.mxu0 0
        %3702 = vmatprep.subr.bf16.mxu0 0
        %3703 = vmatpush1.bf16.xpose.msra.mxu0 0
        %3704 = vmatprep.subr.bf16.mxu0 0
        %3705 = vmatpush1.bf16.xpose.msra.mxu0 0
        %3706 = vmatprep.subr.bf16.mxu0 0
        %3707 = vmatpush1.bf16.xpose.msra.mxu0 0
        %3708 = vmatprep.subr.bf16.mxu0 0
        %3709 = vmatpush1.bf16.xpose.msra.mxu0 0
        %3710 = vmatprep.subr.bf16.mxu0 0
        %3711 = vmatpush1.bf16.xpose.msra.mxu0 0
        %3712 = vmatprep.subr.bf16.mxu0 0
        %3713 = vmatpush1.bf16.xpose.msra.mxu0 0
        %3714 = vmatprep.mubr.bf16.mxu0 0
        %3715 = vmatmul.mubr.bf16.gmra.mrb[0].mxu0 %v3677
        %v3716 = vpop.f32.mrb[0].mxu0
        %v3717 = vadd.f32 0.0, %v3716
        %v3718 = vpop.f32.mrb[0].mxu0
        %v3719 = vpop.f32.mrb[0].mxu0
        %v3720 = vpop.f32.mrb[0].mxu0
        %3721 = vdwg.mxu0
        %v3722 = vmul.f32 %v3395, 0.35355338
        %v3723 = vmul.f32 %v3441, 0.35355338
        %v3724 = vmul.f32 %v3487, 0.35355338
        %v3725 = vmul.f32 %v3533, 0.35355338
        %v3726 = vmul.f32 %v3579, 0.35355338
        %v3727 = vmul.f32 %v3625, 0.35355338
        %v3728 = vmul.f32 %v3671, 0.35355338
        %v3729 = vmul.f32 %v3717, 0.35355338
        %vm3730 = vcmask 130048
        %v3731 = vsel %vm3730, %v3722, -inf
        %3732 = vmax.xlane.f32.xlu0 %v3731
        %v3733 = vpop.xlane.xlu0 %3732
        %v3734 = vsel %vm3730, %v3723, -inf
        %3735 = vmax.xlane.f32.xlu0 %v3734
        %v3736 = vpop.xlane.xlu0 %3735
        %v3737 = vsel %vm3730, %v3724, -inf
        %3738 = vmax.xlane.f32.xlu0 %v3737
        %v3739 = vpop.xlane.xlu0 %3738
        %v3740 = vsel %vm3730, %v3725, -inf
        %3741 = vmax.xlane.f32.xlu0 %v3740
        %v3742 = vpop.xlane.xlu0 %3741
        %v3743 = vsel %vm3730, %v3726, -inf
        %3744 = vmax.xlane.f32.xlu0 %v3743
        %v3745 = vpop.xlane.xlu0 %3744
        %v3746 = vsel %vm3730, %v3727, -inf
        %3747 = vmax.xlane.f32.xlu0 %v3746
        %v3748 = vpop.xlane.xlu0 %3747
        %v3749 = vsel %vm3730, %v3728, -inf
        %3750 = vmax.xlane.f32.xlu0 %v3749
        %v3751 = vpop.xlane.xlu0 %3750
        %v3752 = vsel %vm3730, %v3729, -inf
        %3753 = vmax.xlane.f32.xlu0 %v3752
        %v3754 = vpop.xlane.xlu0 %3753
        %v3755 = vsub.f32 %v3722, %v3733
        %v3756 = vsub.f32 %v3723, %v3736
        %v3757 = vsub.f32 %v3724, %v3739
        %v3758 = vsub.f32 %v3725, %v3742
        %v3759 = vsub.f32 %v3726, %v3745
        %v3760 = vsub.f32 %v3727, %v3748
        %v3761 = vsub.f32 %v3728, %v3751
        %v3762 = vsub.f32 %v3729, %v3754
        %v3763 = vmul.f32 %v3755, 1.442695
        %v3764 = vpow.pop %v3763
        %v3765 = vmul.f32 %v3756, 1.442695
        %v3766 = vpow.pop %v3765
        %v3767 = vmul.f32 %v3757, 1.442695
        %v3768 = vpow.pop %v3767
        %v3769 = vmul.f32 %v3758, 1.442695
        %v3770 = vpow.pop %v3769
        %v3771 = vmul.f32 %v3759, 1.442695
        %v3772 = vpow.pop %v3771
        %v3773 = vmul.f32 %v3760, 1.442695
        %v3774 = vpow.pop %v3773
        %v3775 = vmul.f32 %v3761, 1.442695
        %v3776 = vpow.pop %v3775
        %v3777 = vmul.f32 %v3762, 1.442695
        %v3778 = vpow.pop %v3777
        %v3779 = vsel %vm3730, %v3764, 0.0
        %3780 = vadd.xlane.f32.xlu0 %v3779
        %v3781 = vpop.xlane.xlu0 %3780
        %v3782 = vsel %vm3730, %v3766, 0.0
        %3783 = vadd.xlane.f32.xlu0 %v3782
        %v3784 = vpop.xlane.xlu0 %3783
        %v3785 = vsel %vm3730, %v3768, 0.0
        %3786 = vadd.xlane.f32.xlu0 %v3785
        %v3787 = vpop.xlane.xlu0 %3786
        %v3788 = vsel %vm3730, %v3770, 0.0
        %3789 = vadd.xlane.f32.xlu0 %v3788
        %v3790 = vpop.xlane.xlu0 %3789
        %v3791 = vsel %vm3730, %v3772, 0.0
        %3792 = vadd.xlane.f32.xlu0 %v3791
        %v3793 = vpop.xlane.xlu0 %3792
        %v3794 = vsel %vm3730, %v3774, 0.0
        %3795 = vadd.xlane.f32.xlu0 %v3794
        %v3796 = vpop.xlane.xlu0 %3795
        %v3797 = vsel %vm3730, %v3776, 0.0
        %3798 = vadd.xlane.f32.xlu0 %v3797
        %v3799 = vpop.xlane.xlu0 %3798
        %v3800 = vsel %vm3730, %v3778, 0.0
        %3801 = vadd.xlane.f32.xlu0 %v3800
        %v3802 = vpop.xlane.xlu0 %3801
        %v3803 = vrcp.pop %v3781
        %v3804 = vrcp.pop %v3784
        %v3805 = vrcp.pop %v3787
        %v3806 = vrcp.pop %v3790
        %v3807 = vrcp.pop %v3793
        %v3808 = vrcp.pop %v3796
        %v3809 = vrcp.pop %v3799
        %v3810 = vrcp.pop %v3802
        %v3811 = vmul.f32 %v3764, %v3803
        %v3812 = vmul.f32 %v3766, %v3804
        %v3813 = vmul.f32 %v3768, %v3805
        %v3814 = vmul.f32 %v3770, %v3806
        %v3815 = vmul.f32 %v3772, %v3807
        %v3816 = vmul.f32 %v3774, %v3808
        %v3817 = vmul.f32 %v3776, %v3809
        %v3818 = vmul.f32 %v3778, %v3810
        %v3819 = vpack.c.bf16 %v3811, %v3811
        %v3820 = vpack.c.bf16 %v3812, %v3812
        %v3821 = vpack.c.bf16 %v3813, %v3813
        %v3822 = vpack.c.bf16 %v3814, %v3814
        %v3823 = vpack.c.bf16 %v3815, %v3815
        %v3824 = vpack.c.bf16 %v3816, %v3816
        %v3825 = vpack.c.bf16 %v3817, %v3817
        %v3826 = vpack.c.bf16 %v3818, %v3818
        %v3828 = vsel %vm3730, %v3819, 0
        %3830 = vmatprep.subr.bf16.mxu0 0
        %3831 = vmatpush1.bf16.msra.mxu0 %v3332
        %3832 = vmatprep.subr.bf16.mxu0 0
        %3833 = vmatpush1.bf16.msra.mxu0 0
        %3834 = vmatprep.subr.bf16.mxu0 0
        %3835 = vmatpush1.bf16.msra.mxu0 0
        %3836 = vmatprep.subr.bf16.mxu0 0
        %3837 = vmatpush1.bf16.msra.mxu0 0
        %3838 = vmatprep.subr.bf16.mxu0 0
        %3839 = vmatpush1.bf16.msra.mxu0 0
        %3840 = vmatprep.subr.bf16.mxu0 0
        %3841 = vmatpush1.bf16.msra.mxu0 0
        %3842 = vmatprep.subr.bf16.mxu0 0
        %3843 = vmatpush1.bf16.msra.mxu0 0
        %3844 = vmatprep.subr.bf16.mxu0 0
        %3845 = vmatpush1.bf16.msra.mxu0 0
        %3846 = vmatprep.subr.bf16.mxu0 0
        %3847 = vmatpush1.bf16.msra.mxu0 0
        %3848 = vmatprep.subr.bf16.mxu0 0
        %3849 = vmatpush1.bf16.msra.mxu0 0
        %3850 = vmatprep.subr.bf16.mxu0 0
        %3851 = vmatpush1.bf16.msra.mxu0 0
        %3852 = vmatprep.subr.bf16.mxu0 0
        %3853 = vmatpush1.bf16.msra.mxu0 0
        %3854 = vmatprep.subr.bf16.mxu0 0
        %3855 = vmatpush1.bf16.msra.mxu0 0
        %3856 = vmatprep.subr.bf16.mxu0 0
        %3857 = vmatpush1.bf16.msra.mxu0 0
        %3858 = vmatprep.subr.bf16.mxu0 0
        %3859 = vmatpush1.bf16.msra.mxu0 0
        %3860 = vmatprep.subr.bf16.mxu0 0
        %3861 = vmatpush1.bf16.msra.mxu0 0
        %3862 = vmatprep.mubr.bf16.mxu0 0
        %3863 = vmatmul.mubr.bf16.gmra.mrb[0].mxu0 %v3828
        %v3864 = vpop.f32.mrb[0].mxu0
        %v3865 = vadd.f32 0.0, %v3864
        %v3866 = vpop.f32.mrb[0].mxu0
        %v3867 = vpop.f32.mrb[0].mxu0
        %v3868 = vpop.f32.mrb[0].mxu0
        %3869 = vdwg.mxu0
        %v3871 = vsel %vm3730, %v3820, 0
        %3873 = vmatprep.subr.bf16.mxu0 0
        %3874 = vmatpush1.bf16.msra.mxu0 %v3333
        %3875 = vmatprep.subr.bf16.mxu0 0
        %3876 = vmatpush1.bf16.msra.mxu0 0
        %3877 = vmatprep.subr.bf16.mxu0 0
        %3878 = vmatpush1.bf16.msra.mxu0 0
        %3879 = vmatprep.subr.bf16.mxu0 0
        %3880 = vmatpush1.bf16.msra.mxu0 0
        %3881 = vmatprep.subr.bf16.mxu0 0
        %3882 = vmatpush1.bf16.msra.mxu0 0
        %3883 = vmatprep.subr.bf16.mxu0 0
        %3884 = vmatpush1.bf16.msra.mxu0 0
        %3885 = vmatprep.subr.bf16.mxu0 0
        %3886 = vmatpush1.bf16.msra.mxu0 0
        %3887 = vmatprep.subr.bf16.mxu0 0
        %3888 = vmatpush1.bf16.msra.mxu0 0
        %3889 = vmatprep.subr.bf16.mxu0 0
        %3890 = vmatpush1.bf16.msra.mxu0 0
        %3891 = vmatprep.subr.bf16.mxu0 0
        %3892 = vmatpush1.bf16.msra.mxu0 0
        %3893 = vmatprep.subr.bf16.mxu0 0
        %3894 = vmatpush1.bf16.msra.mxu0 0
        %3895 = vmatprep.subr.bf16.mxu0 0
        %3896 = vmatpush1.bf16.msra.mxu0 0
        %3897 = vmatprep.subr.bf16.mxu0 0
        %3898 = vmatpush1.bf16.msra.mxu0 0
        %3899 = vmatprep.subr.bf16.mxu0 0
        %3900 = vmatpush1.bf16.msra.mxu0 0
        %3901 = vmatprep.subr.bf16.mxu0 0
        %3902 = vmatpush1.bf16.msra.mxu0 0
        %3903 = vmatprep.subr.bf16.mxu0 0
        %3904 = vmatpush1.bf16.msra.mxu0 0
        %3905 = vmatprep.mubr.bf16.mxu0 0
        %3906 = vmatmul.mubr.bf16.gmra.mrb[0].mxu0 %v3871
        %v3907 = vpop.f32.mrb[0].mxu0
        %v3908 = vadd.f32 0.0, %v3907
        %v3909 = vpop.f32.mrb[0].mxu0
        %v3910 = vpop.f32.mrb[0].mxu0
        %v3911 = vpop.f32.mrb[0].mxu0
        %3912 = vdwg.mxu0
        %v3914 = vsel %vm3730, %v3821, 0
        %3916 = vmatprep.subr.bf16.mxu0 0
        %3917 = vmatpush1.bf16.msra.mxu0 %v3337
        %3918 = vmatprep.subr.bf16.mxu0 0
        %3919 = vmatpush1.bf16.msra.mxu0 0
        %3920 = vmatprep.subr.bf16.mxu0 0
        %3921 = vmatpush1.bf16.msra.mxu0 0
        %3922 = vmatprep.subr.bf16.mxu0 0
        %3923 = vmatpush1.bf16.msra.mxu0 0
        %3924 = vmatprep.subr.bf16.mxu0 0
        %3925 = vmatpush1.bf16.msra.mxu0 0
        %3926 = vmatprep.subr.bf16.mxu0 0
        %3927 = vmatpush1.bf16.msra.mxu0 0
        %3928 = vmatprep.subr.bf16.mxu0 0
        %3929 = vmatpush1.bf16.msra.mxu0 0
        %3930 = vmatprep.subr.bf16.mxu0 0
        %3931 = vmatpush1.bf16.msra.mxu0 0
        %3932 = vmatprep.subr.bf16.mxu0 0
        %3933 = vmatpush1.bf16.msra.mxu0 0
        %3934 = vmatprep.subr.bf16.mxu0 0
        %3935 = vmatpush1.bf16.msra.mxu0 0
        %3936 = vmatprep.subr.bf16.mxu0 0
        %3937 = vmatpush1.bf16.msra.mxu0 0
        %3938 = vmatprep.subr.bf16.mxu0 0
        %3939 = vmatpush1.bf16.msra.mxu0 0
        %3940 = vmatprep.subr.bf16.mxu0 0
        %3941 = vmatpush1.bf16.msra.mxu0 0
        %3942 = vmatprep.subr.bf16.mxu0 0
        %3943 = vmatpush1.bf16.msra.mxu0 0
        %3944 = vmatprep.subr.bf16.mxu0 0
        %3945 = vmatpush1.bf16.msra.mxu0 0
        %3946 = vmatprep.subr.bf16.mxu0 0
        %3947 = vmatpush1.bf16.msra.mxu0 0
        %3948 = vmatprep.mubr.bf16.mxu0 0
        %3949 = vmatmul.mubr.bf16.gmra.mrb[0].mxu0 %v3914
        %v3950 = vpop.f32.mrb[0].mxu0
        %v3951 = vadd.f32 0.0, %v3950
        %v3952 = vpop.f32.mrb[0].mxu0
        %v3953 = vpop.f32.mrb[0].mxu0
        %v3954 = vpop.f32.mrb[0].mxu0
        %3955 = vdwg.mxu0
        %v3957 = vsel %vm3730, %v3822, 0
        %3959 = vmatprep.subr.bf16.mxu0 0
        %3960 = vmatpush1.bf16.msra.mxu0 %v3339
        %3961 = vmatprep.subr.bf16.mxu0 0
        %3962 = vmatpush1.bf16.msra.mxu0 0
        %3963 = vmatprep.subr.bf16.mxu0 0
        %3964 = vmatpush1.bf16.msra.mxu0 0
        %3965 = vmatprep.subr.bf16.mxu0 0
        %3966 = vmatpush1.bf16.msra.mxu0 0
        %3967 = vmatprep.subr.bf16.mxu0 0
        %3968 = vmatpush1.bf16.msra.mxu0 0
        %3969 = vmatprep.subr.bf16.mxu0 0
        %3970 = vmatpush1.bf16.msra.mxu0 0
        %3971 = vmatprep.subr.bf16.mxu0 0
        %3972 = vmatpush1.bf16.msra.mxu0 0
        %3973 = vmatprep.subr.bf16.mxu0 0
        %3974 = vmatpush1.bf16.msra.mxu0 0
        %3975 = vmatprep.subr.bf16.mxu0 0
        %3976 = vmatpush1.bf16.msra.mxu0 0
        %3977 = vmatprep.subr.bf16.mxu0 0
        %3978 = vmatpush1.bf16.msra.mxu0 0
        %3979 = vmatprep.subr.bf16.mxu0 0
        %3980 = vmatpush1.bf16.msra.mxu0 0
        %3981 = vmatprep.subr.bf16.mxu0 0
        %3982 = vmatpush1.bf16.msra.mxu0 0
        %3983 = vmatprep.subr.bf16.mxu0 0
        %3984 = vmatpush1.bf16.msra.mxu0 0
        %3985 = vmatprep.subr.bf16.mxu0 0
        %3986 = vmatpush1.bf16.msra.mxu0 0
        %3987 = vmatprep.subr.bf16.mxu0 0
        %3988 = vmatpush1.bf16.msra.mxu0 0
        %3989 = vmatprep.subr.bf16.mxu0 0
        %3990 = vmatpush1.bf16.msra.mxu0 0
        %3991 = vmatprep.mubr.bf16.mxu0 0
        %3992 = vmatmul.mubr.bf16.gmra.mrb[0].mxu0 %v3957
        %v3993 = vpop.f32.mrb[0].mxu0
        %v3994 = vadd.f32 0.0, %v3993
        %v3995 = vpop.f32.mrb[0].mxu0
        %v3996 = vpop.f32.mrb[0].mxu0
        %v3997 = vpop.f32.mrb[0].mxu0
        %3998 = vdwg.mxu0
        %v4000 = vsel %vm3730, %v3823, 0
        %4002 = vmatprep.subr.bf16.mxu0 0
        %4003 = vmatpush1.bf16.msra.mxu0 %v3343
        %4004 = vmatprep.subr.bf16.mxu0 0
        %4005 = vmatpush1.bf16.msra.mxu0 0
        %4006 = vmatprep.subr.bf16.mxu0 0
        %4007 = vmatpush1.bf16.msra.mxu0 0
        %4008 = vmatprep.subr.bf16.mxu0 0
        %4009 = vmatpush1.bf16.msra.mxu0 0
        %4010 = vmatprep.subr.bf16.mxu0 0
        %4011 = vmatpush1.bf16.msra.mxu0 0
        %4012 = vmatprep.subr.bf16.mxu0 0
        %4013 = vmatpush1.bf16.msra.mxu0 0
        %4014 = vmatprep.subr.bf16.mxu0 0
        %4015 = vmatpush1.bf16.msra.mxu0 0
        %4016 = vmatprep.subr.bf16.mxu0 0
        %4017 = vmatpush1.bf16.msra.mxu0 0
        %4018 = vmatprep.subr.bf16.mxu0 0
        %4019 = vmatpush1.bf16.msra.mxu0 0
        %4020 = vmatprep.subr.bf16.mxu0 0
        %4021 = vmatpush1.bf16.msra.mxu0 0
        %4022 = vmatprep.subr.bf16.mxu0 0
        %4023 = vmatpush1.bf16.msra.mxu0 0
        %4024 = vmatprep.subr.bf16.mxu0 0
        %4025 = vmatpush1.bf16.msra.mxu0 0
        %4026 = vmatprep.subr.bf16.mxu0 0
        %4027 = vmatpush1.bf16.msra.mxu0 0
        %4028 = vmatprep.subr.bf16.mxu0 0
        %4029 = vmatpush1.bf16.msra.mxu0 0
        %4030 = vmatprep.subr.bf16.mxu0 0
        %4031 = vmatpush1.bf16.msra.mxu0 0
        %4032 = vmatprep.subr.bf16.mxu0 0
        %4033 = vmatpush1.bf16.msra.mxu0 0
        %4034 = vmatprep.mubr.bf16.mxu0 0
        %4035 = vmatmul.mubr.bf16.gmra.mrb[0].mxu0 %v4000
        %v4036 = vpop.f32.mrb[0].mxu0
        %v4037 = vadd.f32 0.0, %v4036
        %v4038 = vpop.f32.mrb[0].mxu0
        %v4039 = vpop.f32.mrb[0].mxu0
        %v4040 = vpop.f32.mrb[0].mxu0
        %4041 = vdwg.mxu0
        %v4043 = vsel %vm3730, %v3824, 0
        %4045 = vmatprep.subr.bf16.mxu0 0
        %4046 = vmatpush1.bf16.msra.mxu0 %v3345
        %4047 = vmatprep.subr.bf16.mxu0 0
        %4048 = vmatpush1.bf16.msra.mxu0 0
        %4049 = vmatprep.subr.bf16.mxu0 0
        %4050 = vmatpush1.bf16.msra.mxu0 0
        %4051 = vmatprep.subr.bf16.mxu0 0
        %4052 = vmatpush1.bf16.msra.mxu0 0
        %4053 = vmatprep.subr.bf16.mxu0 0
        %4054 = vmatpush1.bf16.msra.mxu0 0
        %4055 = vmatprep.subr.bf16.mxu0 0
        %4056 = vmatpush1.bf16.msra.mxu0 0
        %4057 = vmatprep.subr.bf16.mxu0 0
        %4058 = vmatpush1.bf16.msra.mxu0 0
        %4059 = vmatprep.subr.bf16.mxu0 0
        %4060 = vmatpush1.bf16.msra.mxu0 0
        %4061 = vmatprep.subr.bf16.mxu0 0
        %4062 = vmatpush1.bf16.msra.mxu0 0
        %4063 = vmatprep.subr.bf16.mxu0 0
        %4064 = vmatpush1.bf16.msra.mxu0 0
        %4065 = vmatprep.subr.bf16.mxu0 0
        %4066 = vmatpush1.bf16.msra.mxu0 0
        %4067 = vmatprep.subr.bf16.mxu0 0
        %4068 = vmatpush1.bf16.msra.mxu0 0
        %4069 = vmatprep.subr.bf16.mxu0 0
        %4070 = vmatpush1.bf16.msra.mxu0 0
        %4071 = vmatprep.subr.bf16.mxu0 0
        %4072 = vmatpush1.bf16.msra.mxu0 0
        %4073 = vmatprep.subr.bf16.mxu0 0
        %4074 = vmatpush1.bf16.msra.mxu0 0
        %4075 = vmatprep.subr.bf16.mxu0 0
        %4076 = vmatpush1.bf16.msra.mxu0 0
        %4077 = vmatprep.mubr.bf16.mxu0 0
        %4078 = vmatmul.mubr.bf16.gmra.mrb[0].mxu0 %v4043
        %v4079 = vpop.f32.mrb[0].mxu0
        %v4080 = vadd.f32 0.0, %v4079
        %v4081 = vpop.f32.mrb[0].mxu0
        %v4082 = vpop.f32.mrb[0].mxu0
        %v4083 = vpop.f32.mrb[0].mxu0
        %4084 = vdwg.mxu0
        %v4086 = vsel %vm3730, %v3825, 0
        %4088 = vmatprep.subr.bf16.mxu0 0
        %4089 = vmatpush1.bf16.msra.mxu0 %v3349
        %4090 = vmatprep.subr.bf16.mxu0 0
        %4091 = vmatpush1.bf16.msra.mxu0 0
        %4092 = vmatprep.subr.bf16.mxu0 0
        %4093 = vmatpush1.bf16.msra.mxu0 0
        %4094 = vmatprep.subr.bf16.mxu0 0
        %4095 = vmatpush1.bf16.msra.mxu0 0
        %4096 = vmatprep.subr.bf16.mxu0 0
        %4097 = vmatpush1.bf16.msra.mxu0 0
        %4098 = vmatprep.subr.bf16.mxu0 0
        %4099 = vmatpush1.bf16.msra.mxu0 0
        %4100 = vmatprep.subr.bf16.mxu0 0
        %4101 = vmatpush1.bf16.msra.mxu0 0
        %4102 = vmatprep.subr.bf16.mxu0 0
        %4103 = vmatpush1.bf16.msra.mxu0 0
        %4104 = vmatprep.subr.bf16.mxu0 0
        %4105 = vmatpush1.bf16.msra.mxu0 0
        %4106 = vmatprep.subr.bf16.mxu0 0
        %4107 = vmatpush1.bf16.msra.mxu0 0
        %4108 = vmatprep.subr.bf16.mxu0 0
        %4109 = vmatpush1.bf16.msra.mxu0 0
        %4110 = vmatprep.subr.bf16.mxu0 0
        %4111 = vmatpush1.bf16.msra.mxu0 0
        %4112 = vmatprep.subr.bf16.mxu0 0
        %4113 = vmatpush1.bf16.msra.mxu0 0
        %4114 = vmatprep.subr.bf16.mxu0 0
        %4115 = vmatpush1.bf16.msra.mxu0 0
        %4116 = vmatprep.subr.bf16.mxu0 0
        %4117 = vmatpush1.bf16.msra.mxu0 0
        %4118 = vmatprep.subr.bf16.mxu0 0
        %4119 = vmatpush1.bf16.msra.mxu0 0
        %4120 = vmatprep.mubr.bf16.mxu0 0
        %4121 = vmatmul.mubr.bf16.gmra.mrb[0].mxu0 %v4086
        %v4122 = vpop.f32.mrb[0].mxu0
        %v4123 = vadd.f32 0.0, %v4122
        %v4124 = vpop.f32.mrb[0].mxu0
        %v4125 = vpop.f32.mrb[0].mxu0
        %v4126 = vpop.f32.mrb[0].mxu0
        %4127 = vdwg.mxu0
        %v4129 = vsel %vm3730, %v3826, 0
        %4131 = vmatprep.subr.bf16.mxu0 0
        %4132 = vmatpush1.bf16.msra.mxu0 %v3351
        %4133 = vmatprep.subr.bf16.mxu0 0
        %4134 = vmatpush1.bf16.msra.mxu0 0
        %4135 = vmatprep.subr.bf16.mxu0 0
        %4136 = vmatpush1.bf16.msra.mxu0 0
        %4137 = vmatprep.subr.bf16.mxu0 0
        %4138 = vmatpush1.bf16.msra.mxu0 0
        %4139 = vmatprep.subr.bf16.mxu0 0
        %4140 = vmatpush1.bf16.msra.mxu0 0
        %4141 = vmatprep.subr.bf16.mxu0 0
        %4142 = vmatpush1.bf16.msra.mxu0 0
        %4143 = vmatprep.subr.bf16.mxu0 0
        %4144 = vmatpush1.bf16.msra.mxu0 0
        %4145 = vmatprep.subr.bf16.mxu0 0
        %4146 = vmatpush1.bf16.msra.mxu0 0
        %4147 = vmatprep.subr.bf16.mxu0 0
        %4148 = vmatpush1.bf16.msra.mxu0 0
        %4149 = vmatprep.subr.bf16.mxu0 0
        %4150 = vmatpush1.bf16.msra.mxu0 0
        %4151 = vmatprep.subr.bf16.mxu0 0
        %4152 = vmatpush1.bf16.msra.mxu0 0
        %4153 = vmatprep.subr.bf16.mxu0 0
        %4154 = vmatpush1.bf16.msra.mxu0 0
        %4155 = vmatprep.subr.bf16.mxu0 0
        %4156 = vmatpush1.bf16.msra.mxu0 0
        %4157 = vmatprep.subr.bf16.mxu0 0
        %4158 = vmatpush1.bf16.msra.mxu0 0
        %4159 = vmatprep.subr.bf16.mxu0 0
        %4160 = vmatpush1.bf16.msra.mxu0 0
        %4161 = vmatprep.subr.bf16.mxu0 0
        %4162 = vmatpush1.bf16.msra.mxu0 0
        %4163 = vmatprep.mubr.bf16.mxu0 0
        %4164 = vmatmul.mubr.bf16.gmra.mrb[0].mxu0 %v4129
        %v4165 = vpop.f32.mrb[0].mxu0
        %v4166 = vadd.f32 0.0, %v4165
        %v4167 = vpop.f32.mrb[0].mxu0
        %v4168 = vpop.f32.mrb[0].mxu0
        %v4169 = vpop.f32.mrb[0].mxu0
        %4170 = vdwg.mxu0
        %4173 = vrot.lane.b32.xlu0 %v3951, 32
        %v4174 = vpop.permute.xlu0 %4173
        %4175 = vrot.lane.b32.xlu0 %v3994, 32
        %v4176 = vpop.permute.xlu0 %4175
        %4181 = vrot.lane.b32.xlu0 %v4037, 64
        %v4182 = vpop.permute.xlu0 %4181
        %4183 = vrot.lane.b32.xlu0 %v4080, 64
        %v4184 = vpop.permute.xlu0 %4183
        %4189 = vrot.lane.b32.xlu0 %v4123, 96
        %v4190 = vpop.permute.xlu0 %4189
        %4191 = vrot.lane.b32.xlu0 %v4166, 96
        %v4192 = vpop.permute.xlu0 %4191
        %v4195 = vsel %vm1316, %v3865, %v4174
        %v4196 = vsel %vm1316, %v3908, %v4176
        %v4197 = vsel %vm1319, %v4195, %v4182
        %v4198 = vsel %vm1319, %v4196, %v4184
        %v4199 = vsel %vm1322, %v4197, %v4190
        %v4200 = vsel %vm1322, %v4198, %v4192
        %v4201 = vpack.c.bf16 %v4200, %v4199
        %v4202 = vld [vmem:[%s1029] sm:$0xf]
        %v4203 = vld [vmem:[%s1029 + $0x4] sm:$0xf]
        %v4204 = vld [vmem:[%s1029 + $0x8] sm:$0xf]
        %v4205 = vld [vmem:[%s1029 + $0xc] sm:$0xf]
        %v4206 = vld [vmem:[%s1029 + $0x10] sm:$0xf]
        %v4207 = vld [vmem:[%s1029 + $0x14] sm:$0xf]
        %v4208 = vld [vmem:[%s1029 + $0x18] sm:$0xf]
        %v4209 = vld [vmem:[%s1029 + $0x1c] sm:$0xf]
        %v4210 = vld [vmem:[%s1029 + $0x20] sm:$0xf]
        %v4211 = vld [vmem:[%s1029 + $0x24] sm:$0xf]
        %v4212 = vld [vmem:[%s1029 + $0x28] sm:$0xf]
        %v4213 = vld [vmem:[%s1029 + $0x2c] sm:$0xf]
        %v4214 = vld [vmem:[%s1029 + $0x30] sm:$0xf]
        %v4215 = vld [vmem:[%s1029 + $0x34] sm:$0xf]
        %v4216 = vld [vmem:[%s1029 + $0x38] sm:$0xf]
        %v4217 = vld [vmem:[%s1029 + $0x3c] sm:$0xf]
        %v4218 = vld [vmem:[%s1264] sm:$0x1]
        %v4220 = vlaneseq
        %v4221 = vshrl.u32 %v4220, 7
        %v4222 = vsub.s32 0, %v4221
        %v4223 = vrot.slane %v4218, %v4222
        %v4241 = vunpack.c.l.b16 %v4202
        %v4242 = vunpack.c.l.b16 %v4203
        %v4243 = vunpack.c.l.b16 %v4204
        %v4244 = vunpack.c.l.b16 %v4205
        %v4245 = vunpack.c.l.b16 %v4206
        %v4246 = vunpack.c.l.b16 %v4207
        %v4247 = vunpack.c.l.b16 %v4208
        %v4248 = vunpack.c.l.b16 %v4209
        %v4249 = vunpack.c.l.b16 %v4210
        %v4250 = vunpack.c.l.b16 %v4211
        %v4251 = vunpack.c.l.b16 %v4212
        %v4252 = vunpack.c.l.b16 %v4213
        %v4253 = vunpack.c.l.b16 %v4214
        %v4254 = vunpack.c.l.b16 %v4215
        %v4255 = vunpack.c.l.b16 %v4216
        %v4256 = vunpack.c.l.b16 %v4217
        %v4257 = vpack.c.b16 %v4242, %v4241
        %v4258 = vpack.c.b16 %v4244, %v4243
        %v4259 = vpack.c.b16 %v4246, %v4245
        %v4260 = vpack.c.b16 %v4248, %v4247
        %v4261 = vpack.c.b16 %v4250, %v4249
        %v4262 = vpack.c.b16 %v4252, %v4251
        %v4263 = vpack.c.b16 %v4254, %v4253
        %v4264 = vpack.c.b16 %v4256, %v4255
        %4273 = vmatprep.subr.bf16.mxu0 0
        %4274 = vmatpush1.bf16.msra.mxu0 %v4257
        %4275 = vmatprep.subr.bf16.mxu0 0
        %4276 = vmatpush1.bf16.msra.mxu0 %v4258
        %4277 = vmatprep.subr.bf16.mxu0 0
        %4278 = vmatpush1.bf16.msra.mxu0 %v4259
        %4279 = vmatprep.subr.bf16.mxu0 0
        %4280 = vmatpush1.bf16.msra.mxu0 %v4260
        %4281 = vmatprep.subr.bf16.mxu0 0
        %4282 = vmatpush1.bf16.msra.mxu0 %v4261
        %4283 = vmatprep.subr.bf16.mxu0 0
        %4284 = vmatpush1.bf16.msra.mxu0 %v4262
        %4285 = vmatprep.subr.bf16.mxu0 0
        %4286 = vmatpush1.bf16.msra.mxu0 %v4263
        %4287 = vmatprep.subr.bf16.mxu0 0
        %4288 = vmatpush1.bf16.msra.mxu0 %v4264
        %4289 = vmatprep.subr.bf16.mxu0 0
        %4290 = vmatpush1.bf16.msra.mxu0 0
        %4291 = vmatprep.subr.bf16.mxu0 0
        %4292 = vmatpush1.bf16.msra.mxu0 0
        %4293 = vmatprep.subr.bf16.mxu0 0
        %4294 = vmatpush1.bf16.msra.mxu0 0
        %4295 = vmatprep.subr.bf16.mxu0 0
        %4296 = vmatpush1.bf16.msra.mxu0 0
        %4297 = vmatprep.subr.bf16.mxu0 0
        %4298 = vmatpush1.bf16.msra.mxu0 0
        %4299 = vmatprep.subr.bf16.mxu0 0
        %4300 = vmatpush1.bf16.msra.mxu0 0
        %4301 = vmatprep.subr.bf16.mxu0 0
        %4302 = vmatpush1.bf16.msra.mxu0 0
        %4303 = vmatprep.subr.bf16.mxu0 0
        %4304 = vmatpush1.bf16.msra.mxu0 0
        %4305 = vmatprep.mubr.bf16.mxu0 0
        %4306 = vmatmul.mubr.bf16.gmra.mrb[0].mxu0 %v4201
        %v4307 = vpop.f32.mrb[0].mxu0
        %v4308 = vadd.f32 %v4223, %v4307
        %v4309 = vpop.f32.mrb[0].mxu0
        %v4310 = vpop.f32.mrb[0].mxu0
        %v4311 = vadd.f32 %v4223, %v4310
        %v4312 = vpop.f32.mrb[0].mxu0
        %4313 = vdwg.mxu0
        %v4314 = vld [vmem:[%s1037] sm:$0x1]
        %v4315 = vld [vmem:[%s1045] sm:$0x1]
        %v4316 = vmul.f32 %v2956, 1.4142135
        %v4317 = vmul.f32 %v2957, 1.4142135
        %v4318 = vadd.f32 %v4316, %v4308
        %v4319 = vadd.f32 %v4317, %v4311
        %4320 = vadd.xlane.f32.xlu0 %v4318
        %v4321 = vpop.xlane.xlu0 %4320
        %4322 = vadd.xlane.f32.xlu0 %v4319
        %v4323 = vpop.xlane.xlu0 %4322
        %v4324 = vmul.f32 %v4321, 0.03125
        %v4325 = vmul.f32 %v4323, 0.03125
        %v4326 = vsub.f32 %v4318, %v4324
        %v4327 = vsub.f32 %v4319, %v4325
        %v4328 = vmul.f32 %v4326, %v1290
        %v4329 = vmul.f32 %v4327, %v1290
        %v4330 = vmul.f32 %v4328, %v4328
        %v4331 = vmul.f32 %v4329, %v4329
        %4332 = vadd.xlane.f32.xlu0 %v4330
        %v4333 = vpop.xlane.xlu0 %4332
        %4334 = vadd.xlane.f32.xlu0 %v4331
        %v4335 = vpop.xlane.xlu0 %4334
        %v4336 = vmul.f32 %v4333, 0.03125
        %v4337 = vmul.f32 %v4335, 0.03125
        %v4338 = vadd.f32 %v4336, 1e-05
        %v4339 = vadd.f32 %v4337, 1e-05
        %v4340 = vrsqrt.pop %v4338
        %v4341 = vrsqrt.pop %v4339
        %v4342 = vmul.f32 %v4328, %v4340
        %v4343 = vmul.f32 %v4329, %v4341
        %v4345 = vlaneseq
        %v4346 = vshrl.u32 %v4345, 7
        %v4347 = vsub.s32 0, %v4346
        %v4348 = vrot.slane %v4314, %v4347
        %v4350 = vmul.f32 %v4342, %v4348
        %v4351 = vmul.f32 %v4343, %v4348
        %v4353 = vlaneseq
        %v4354 = vshrl.u32 %v4353, 7
        %v4355 = vsub.s32 0, %v4354
        %v4356 = vrot.slane %v4315, %v4355
        %v4358 = vadd.f32 %v4350, %v4356
        %v4359 = vadd.f32 %v4351, %v4356
        %v4360 = vpack.c.bf16 %v4359, %v4358
        %v4361 = vld [vmem:[%s1054] sm:$0xf]
        %v4362 = vld [vmem:[%s1054 + $0x4] sm:$0xf]
        %v4363 = vld [vmem:[%s1054 + $0x8] sm:$0xf]
        %v4364 = vld [vmem:[%s1054 + $0xc] sm:$0xf]
        %v4365 = vld [vmem:[%s1054 + $0x10] sm:$0xf]
        %v4366 = vld [vmem:[%s1054 + $0x14] sm:$0xf]
        %v4367 = vld [vmem:[%s1054 + $0x18] sm:$0xf]
        %v4368 = vld [vmem:[%s1054 + $0x1c] sm:$0xf]
        %v4369 = vld [vmem:[%s1054 + $0x20] sm:$0xf]
        %v4370 = vld [vmem:[%s1054 + $0x24] sm:$0xf]
        %v4371 = vld [vmem:[%s1054 + $0x28] sm:$0xf]
        %v4372 = vld [vmem:[%s1054 + $0x2c] sm:$0xf]
        %v4373 = vld [vmem:[%s1054 + $0x30] sm:$0xf]
        %v4374 = vld [vmem:[%s1054 + $0x34] sm:$0xf]
        %v4375 = vld [vmem:[%s1054 + $0x38] sm:$0xf]
        %v4376 = vld [vmem:[%s1054 + $0x3c] sm:$0xf]
        %v4377 = vld [vmem:[%s1267] sm:$0x1]
        %v4379 = vlaneseq
        %v4380 = vshrl.u32 %v4379, 7
        %v4381 = vsub.s32 0, %v4380
        %v4382 = vrot.slane %v4377, %v4381
        %v4400 = vunpack.c.l.b16 %v4361
        %v4401 = vunpack.c.l.b16 %v4362
        %v4402 = vunpack.c.l.b16 %v4363
        %v4403 = vunpack.c.l.b16 %v4364
        %v4404 = vunpack.c.l.b16 %v4365
        %v4405 = vunpack.c.l.b16 %v4366
        %v4406 = vunpack.c.l.b16 %v4367
        %v4407 = vunpack.c.l.b16 %v4368
        %v4408 = vunpack.c.l.b16 %v4369
        %v4409 = vunpack.c.l.b16 %v4370
        %v4410 = vunpack.c.l.b16 %v4371
        %v4411 = vunpack.c.l.b16 %v4372
        %v4412 = vunpack.c.l.b16 %v4373
        %v4413 = vunpack.c.l.b16 %v4374
        %v4414 = vunpack.c.l.b16 %v4375
        %v4415 = vunpack.c.l.b16 %v4376
        %v4416 = vpack.c.b16 %v4401, %v4400
        %v4417 = vpack.c.b16 %v4403, %v4402
        %v4418 = vpack.c.b16 %v4405, %v4404
        %v4419 = vpack.c.b16 %v4407, %v4406
        %v4420 = vpack.c.b16 %v4409, %v4408
        %v4421 = vpack.c.b16 %v4411, %v4410
        %v4422 = vpack.c.b16 %v4413, %v4412
        %v4423 = vpack.c.b16 %v4415, %v4414
        %4432 = vmatprep.subr.bf16.mxu0 0
        %4433 = vmatpush1.bf16.msra.mxu0 %v4416
        %4434 = vmatprep.subr.bf16.mxu0 0
        %4435 = vmatpush1.bf16.msra.mxu0 %v4417
        %4436 = vmatprep.subr.bf16.mxu0 0
        %4437 = vmatpush1.bf16.msra.mxu0 %v4418
        %4438 = vmatprep.subr.bf16.mxu0 0
        %4439 = vmatpush1.bf16.msra.mxu0 %v4419
        %4440 = vmatprep.subr.bf16.mxu0 0
        %4441 = vmatpush1.bf16.msra.mxu0 %v4420
        %4442 = vmatprep.subr.bf16.mxu0 0
        %4443 = vmatpush1.bf16.msra.mxu0 %v4421
        %4444 = vmatprep.subr.bf16.mxu0 0
        %4445 = vmatpush1.bf16.msra.mxu0 %v4422
        %4446 = vmatprep.subr.bf16.mxu0 0
        %4447 = vmatpush1.bf16.msra.mxu0 %v4423
        %4448 = vmatprep.subr.bf16.mxu0 0
        %4449 = vmatpush1.bf16.msra.mxu0 0
        %4450 = vmatprep.subr.bf16.mxu0 0
        %4451 = vmatpush1.bf16.msra.mxu0 0
        %4452 = vmatprep.subr.bf16.mxu0 0
        %4453 = vmatpush1.bf16.msra.mxu0 0
        %4454 = vmatprep.subr.bf16.mxu0 0
        %4455 = vmatpush1.bf16.msra.mxu0 0
        %4456 = vmatprep.subr.bf16.mxu0 0
        %4457 = vmatpush1.bf16.msra.mxu0 0
        %4458 = vmatprep.subr.bf16.mxu0 0
        %4459 = vmatpush1.bf16.msra.mxu0 0
        %4460 = vmatprep.subr.bf16.mxu0 0
        %4461 = vmatpush1.bf16.msra.mxu0 0
        %4462 = vmatprep.subr.bf16.mxu0 0
        %4463 = vmatpush1.bf16.msra.mxu0 0
        %4464 = vmatprep.mubr.bf16.mxu0 0
        %4465 = vmatmul.mubr.bf16.gmra.mrb[0].mxu0 %v4360
        %v4466 = vpop.f32.mrb[0].mxu0
        %v4467 = vadd.f32 %v4382, %v4466
        %v4468 = vpop.f32.mrb[0].mxu0
        %v4469 = vpop.f32.mrb[0].mxu0
        %v4470 = vadd.f32 %v4382, %v4469
        %v4471 = vpop.f32.mrb[0].mxu0
        %4472 = vdwg.mxu0
        %v4473 = vmax.f32 %v4467, 0.0
        %v4474 = vmax.f32 %v4470, 0.0
        %v4475 = vpack.c.bf16 %v4474, %v4473
        %v4476 = vld [vmem:[%s1063] sm:$0xf]
        %v4477 = vld [vmem:[%s1063 + $0x4] sm:$0xf]
        %v4478 = vld [vmem:[%s1063 + $0x8] sm:$0xf]
        %v4479 = vld [vmem:[%s1063 + $0xc] sm:$0xf]
        %v4480 = vld [vmem:[%s1063 + $0x10] sm:$0xf]
        %v4481 = vld [vmem:[%s1063 + $0x14] sm:$0xf]
        %v4482 = vld [vmem:[%s1063 + $0x18] sm:$0xf]
        %v4483 = vld [vmem:[%s1063 + $0x1c] sm:$0xf]
        %v4484 = vld [vmem:[%s1063 + $0x20] sm:$0xf]
        %v4485 = vld [vmem:[%s1063 + $0x24] sm:$0xf]
        %v4486 = vld [vmem:[%s1063 + $0x28] sm:$0xf]
        %v4487 = vld [vmem:[%s1063 + $0x2c] sm:$0xf]
        %v4488 = vld [vmem:[%s1063 + $0x30] sm:$0xf]
        %v4489 = vld [vmem:[%s1063 + $0x34] sm:$0xf]
        %v4490 = vld [vmem:[%s1063 + $0x38] sm:$0xf]
        %v4491 = vld [vmem:[%s1063 + $0x3c] sm:$0xf]
        %v4492 = vld [vmem:[%s1270] sm:$0x1]
        %v4494 = vlaneseq
        %v4495 = vshrl.u32 %v4494, 7
        %v4496 = vsub.s32 0, %v4495
        %v4497 = vrot.slane %v4492, %v4496
        %v4515 = vunpack.c.l.b16 %v4476
        %v4516 = vunpack.c.l.b16 %v4477
        %v4517 = vunpack.c.l.b16 %v4478
        %v4518 = vunpack.c.l.b16 %v4479
        %v4519 = vunpack.c.l.b16 %v4480
        %v4520 = vunpack.c.l.b16 %v4481
        %v4521 = vunpack.c.l.b16 %v4482
        %v4522 = vunpack.c.l.b16 %v4483
        %v4523 = vunpack.c.l.b16 %v4484
        %v4524 = vunpack.c.l.b16 %v4485
        %v4525 = vunpack.c.l.b16 %v4486
        %v4526 = vunpack.c.l.b16 %v4487
        %v4527 = vunpack.c.l.b16 %v4488
        %v4528 = vunpack.c.l.b16 %v4489
        %v4529 = vunpack.c.l.b16 %v4490
        %v4530 = vunpack.c.l.b16 %v4491
        %v4531 = vpack.c.b16 %v4516, %v4515
        %v4532 = vpack.c.b16 %v4518, %v4517
        %v4533 = vpack.c.b16 %v4520, %v4519
        %v4534 = vpack.c.b16 %v4522, %v4521
        %v4535 = vpack.c.b16 %v4524, %v4523
        %v4536 = vpack.c.b16 %v4526, %v4525
        %v4537 = vpack.c.b16 %v4528, %v4527
        %v4538 = vpack.c.b16 %v4530, %v4529
        %4547 = vmatprep.subr.bf16.mxu0 0
        %4548 = vmatpush1.bf16.msra.mxu0 %v4531
        %4549 = vmatprep.subr.bf16.mxu0 0
        %4550 = vmatpush1.bf16.msra.mxu0 %v4532
        %4551 = vmatprep.subr.bf16.mxu0 0
        %4552 = vmatpush1.bf16.msra.mxu0 %v4533
        %4553 = vmatprep.subr.bf16.mxu0 0
        %4554 = vmatpush1.bf16.msra.mxu0 %v4534
        %4555 = vmatprep.subr.bf16.mxu0 0
        %4556 = vmatpush1.bf16.msra.mxu0 %v4535
        %4557 = vmatprep.subr.bf16.mxu0 0
        %4558 = vmatpush1.bf16.msra.mxu0 %v4536
        %4559 = vmatprep.subr.bf16.mxu0 0
        %4560 = vmatpush1.bf16.msra.mxu0 %v4537
        %4561 = vmatprep.subr.bf16.mxu0 0
        %4562 = vmatpush1.bf16.msra.mxu0 %v4538
        %4563 = vmatprep.subr.bf16.mxu0 0
        %4564 = vmatpush1.bf16.msra.mxu0 0
        %4565 = vmatprep.subr.bf16.mxu0 0
        %4566 = vmatpush1.bf16.msra.mxu0 0
        %4567 = vmatprep.subr.bf16.mxu0 0
        %4568 = vmatpush1.bf16.msra.mxu0 0
        %4569 = vmatprep.subr.bf16.mxu0 0
        %4570 = vmatpush1.bf16.msra.mxu0 0
        %4571 = vmatprep.subr.bf16.mxu0 0
        %4572 = vmatpush1.bf16.msra.mxu0 0
        %4573 = vmatprep.subr.bf16.mxu0 0
        %4574 = vmatpush1.bf16.msra.mxu0 0
        %4575 = vmatprep.subr.bf16.mxu0 0
        %4576 = vmatpush1.bf16.msra.mxu0 0
        %4577 = vmatprep.subr.bf16.mxu0 0
        %4578 = vmatpush1.bf16.msra.mxu0 0
        %4579 = vmatprep.mubr.bf16.mxu0 0
        %4580 = vmatmul.mubr.bf16.gmra.mrb[0].mxu0 %v4475
        %v4581 = vpop.f32.mrb[0].mxu0
        %v4582 = vadd.f32 %v4497, %v4581
        %v4583 = vpop.f32.mrb[0].mxu0
        %v4584 = vpop.f32.mrb[0].mxu0
        %v4585 = vadd.f32 %v4497, %v4584
        %v4586 = vpop.f32.mrb[0].mxu0
        %4587 = vdwg.mxu0
        %v4588 = vld [vmem:[%s1071] sm:$0x1]
        %v4589 = vld [vmem:[%s1079] sm:$0x1]
        %v4590 = vmul.f32 %v4358, 1.4142135
        %v4591 = vmul.f32 %v4359, 1.4142135
        %v4592 = vadd.f32 %v4590, %v4582
        %v4593 = vadd.f32 %v4591, %v4585
        %4594 = vadd.xlane.f32.xlu0 %v4592
        %v4595 = vpop.xlane.xlu0 %4594
        %4596 = vadd.xlane.f32.xlu0 %v4593
        %v4597 = vpop.xlane.xlu0 %4596
        %v4598 = vmul.f32 %v4595, 0.03125
        %v4599 = vmul.f32 %v4597, 0.03125
        %v4600 = vsub.f32 %v4592, %v4598
        %v4601 = vsub.f32 %v4593, %v4599
        %v4602 = vmul.f32 %v4600, %v1290
        %v4603 = vmul.f32 %v4601, %v1290
        %v4604 = vmul.f32 %v4602, %v4602
        %v4605 = vmul.f32 %v4603, %v4603
        %4606 = vadd.xlane.f32.xlu0 %v4604
        %v4607 = vpop.xlane.xlu0 %4606
        %4608 = vadd.xlane.f32.xlu0 %v4605
        %v4609 = vpop.xlane.xlu0 %4608
        %v4610 = vmul.f32 %v4607, 0.03125
        %v4611 = vmul.f32 %v4609, 0.03125
        %v4612 = vadd.f32 %v4610, 1e-05
        %v4613 = vadd.f32 %v4611, 1e-05
        %v4614 = vrsqrt.pop %v4612
        %v4615 = vrsqrt.pop %v4613
        %v4616 = vmul.f32 %v4602, %v4614
        %v4617 = vmul.f32 %v4603, %v4615
        %v4619 = vlaneseq
        %v4620 = vshrl.u32 %v4619, 7
        %v4621 = vsub.s32 0, %v4620
        %v4622 = vrot.slane %v4588, %v4621
        %v4624 = vmul.f32 %v4616, %v4622
        %v4625 = vmul.f32 %v4617, %v4622
        %v4627 = vlaneseq
        %v4628 = vshrl.u32 %v4627, 7
        %v4629 = vsub.s32 0, %v4628
        %v4630 = vrot.slane %v4589, %v4629
        %v4632 = vadd.f32 %v4624, %v4630
        %v4633 = vadd.f32 %v4625, %v4630
        %4634 = vst [vmem:[#allocation2] sm:$0xff] %v4632
        %4635 = vst [vmem:[#allocation2 + $0x8] sm:$0xff] %v4633
        %4636 = vst [vmem:[#allocation15] sm:$0xff] %v4632
        %4637 = vst [vmem:[#allocation15 + $0x8] sm:$0xff] %v4633
        // Predicated region
        $region165: #{gnova_decoder_forward.1} parent=131 // pred_check
          %p4638 = pneg %p753
        $region166: #{gnova_decoder_forward.1} parent=131 // pred_check_branch
          %4640 = sbr.rel (%p4638) target = $region168
        $region167: #{gnova_decoder_forward.1} parent=131 // pred_region
          %s4642 = ssub.s32 256, 256
          %4643 = vsyncadd [#allocation5], %s4642
          %s4644 = sshll.u32 [#allocation15], 4
          %s4645 = int_to_ptr.vmem [resolvable:$true] %s4644
          %4650 = dma.vmem_to_hbm [thread:$0]  %s4645, 256, %s28, [#allocation5], 128, 128, 8
        $region168: #{gnova_decoder_forward.1} parent=131 // pred_fallthru
          _
        // Predicated region
        $region169: #{gnova_decoder_forward.1} parent=131 // pred_check
          %p4651 = pneg %p753
        $region170: #{gnova_decoder_forward.1} parent=131 // pred_check_branch
          %4653 = sbr.rel (%p4651) target = $region172
        $region171: #{gnova_decoder_forward.1} parent=131 // pred_region
          %4654 = dma.done [#allocation5], 256
        $region172: #{gnova_decoder_forward.1} parent=131 // pred_fallthru
          _
      $region132: #{gnova_decoder_forward.1} parent=5 // pred_fallthru
        _
      %p4655 = scmp.le.s32.totalorder 2, %s47
      // Predicated region
      $region173: #{gnova_decoder_forward.1} parent=5 // pred_check
        %p4656 = pneg %p4655
      $region174: #{gnova_decoder_forward.1} parent=5 // pred_check_branch
        %4658 = sbr.rel (%p4656) target = $region176
      $region175: #{gnova_decoder_forward.1} parent=5 // pred_region
        %s4659 = ssub.s32 %s47, 2
      $region176: #{gnova_decoder_forward.1} parent=5 // pred_fallthru
        _
    $region6: #{gnova_decoder_forward.1} parent=1 // loop_footer
      %s51 = sadd.s32 1, %s47
    $region7: #{gnova_decoder_forward.1} parent=1 // loop_footer_branch
      %46 = sbr.rel target = $region3
    $region8: #{gnova_decoder_forward.1} parent=1 // loop_exit
      _
    %4660 = vsyncpa [#allocation4], 1
    %s4661 = scalar_lea.sflag [#allocation4], 1
    %4662 = vsyncpa %s4661, 1
    %4663 = vsyncpa [#allocation7], 1
    %s4664 = scalar_lea.sflag [#allocation7], 1
    %4665 = vsyncpa %s4664, 1
    %4666 = vsyncpa [#allocation10], 1
    %s4667 = scalar_lea.sflag [#allocation10], 1
    %4668 = vsyncpa %s4667, 1
    %4669 = vsyncpa [#allocation13], 1
    %s4670 = scalar_lea.sflag [#allocation13], 1
    %4671 = vsyncpa %s4670, 1
    %4672 = vsyncpa [#allocation5], 1
    %s4673 = scalar_lea.sflag [#allocation5], 1
    %4674 = vsyncpa %s4673, 1

</llo_original>
